<compile_context>
chip_gen: v7x
topology: tpu7x:2x2x1
jax: 0.10.0
libtpu: 0.0.40
codegen_flags: <defaults>
</compile_context>

<pallas_src>
import functools

import jax
import jax.numpy as jnp
from jax import lax
from jax.experimental import pallas as pl
from jax.experimental.pallas import tpu as pltpu

_VMEM_LIMIT = 48 * 1024 * 1024   # safe on v5e/v6e (128 MiB) and v7x (64 MiB)
_SLOPE = 0.2
_EPS = 1e-5


# ---------------------------------------------------------------------------
# Stage-1 kernel: strided 3x3x3 conv + bias (raw output + pre-bias stats).
# Input layout per depth tap: (1, 1, Sw*Hp2, W2, Cin)  — W phases folded into
# the H axis so the array stays rank-5; the kernel splits them back.
# ---------------------------------------------------------------------------
def _conv1_kernel(x0_ref, x1_ref, x2_ref, w_ref, b_ref, y_ref, st_ref,
                  *, sh, sw, ho, wo):
    cin = x0_ref.shape[-1]
    w2p = x0_ref.shape[-2]
    hp2 = x0_ref.shape[2] // sw
    cout = w_ref.shape[-1]

    wins = []
    for ref in (x0_ref, x1_ref, x2_ref):                 # depth taps kd = 0,1,2
        tap = ref[...].reshape(sw, hp2, w2p, cin)        # (Sw, Hp2, W2, Cin)
        for kh in range(3):
            for kw in range(3):
                ph = tap[kw % sw]                        # static phase pick
                if sh == 1:
                    rows = ph[kh:kh + ho]
                else:                                    # H stride: leading-dim trick
                    rows = ph[kh:kh + sh * ho].reshape(ho, sh, w2p, cin)[:, 0]
                off = kw // sw
                wins.append(rows[:, off:off + wo, :])    # (ho, wo, Cin)

    lhs = jnp.concatenate(wins, axis=-1).reshape(ho * wo, 27 * cin)
    acc = jnp.dot(lhs, w_ref[...], preferred_element_type=jnp.float32)

    ssum = jnp.sum(acc, axis=0, keepdims=True)           # pre-bias stats (f32)
    ssq = jnp.sum(acc * acc, axis=0, keepdims=True)
    st_ref[...] = jnp.concatenate([ssum, ssq], axis=0).reshape(1, 1, 2, cout)

    y = acc + b_ref[...]
    y_ref[...] = y.reshape(1, 1, ho, wo, cout).astype(y_ref.dtype)


# ---------------------------------------------------------------------------
# Stage-2 kernel: fused InstanceNorm1 + LeakyReLU + zero-pad + 3x3x3 conv2.
# Depth taps are clamped reads of y1_raw; invalid taps are masked to zero.
# ---------------------------------------------------------------------------
def _conv2_kernel(x0_ref, x1_ref, x2_ref, m_ref, r_ref, w_ref, b_ref,
                  y_ref, st_ref, *, slope):
    ho, wo, c = x1_ref.shape[2], x1_ref.shape[3], x1_ref.shape[4]
    cout = w_ref.shape[-1]
    d = pl.program_id(1)
    nd = pl.num_programs(1)

    mean = m_ref[...]                                    # (1, 1, C)
    rstd = r_ref[...]

    wins = []
    for kd, ref in enumerate((x0_ref, x1_ref, x2_ref)):
        t = ref[...].reshape(ho, wo, c).astype(jnp.float32)
        t = (t - mean) * rstd                            # InstanceNorm1
        t = jnp.where(t >= 0, t, slope * t)              # LeakyReLU
        if kd == 0:                                      # depth halo masking
            t = jnp.where(d > 0, t, 0.0)
        elif kd == 2:
            t = jnp.where(d + 1 < nd, t, 0.0)
        t = t.astype(jnp.bfloat16)
        # zero-pad H and W by 1 in VMEM (concat — no HBM padded intermediate)
        zr = jnp.zeros((1, wo, c), jnp.bfloat16)
        t = jnp.concatenate([zr, t, zr], axis=0)
        zc = jnp.zeros((ho + 2, 1, c), jnp.bfloat16)
        t = jnp.concatenate([zc, t, zc], axis=1)         # (ho+2, wo+2, C)
        for kh in range(3):
            for kw in range(3):
                wins.append(t[kh:kh + ho, kw:kw + wo, :])

    lhs = jnp.concatenate(wins, axis=-1).reshape(ho * wo, 27 * c)
    acc = jnp.dot(lhs, w_ref[...], preferred_element_type=jnp.float32)

    ssum = jnp.sum(acc, axis=0, keepdims=True)
    ssq = jnp.sum(acc * acc, axis=0, keepdims=True)
    st_ref[...] = jnp.concatenate([ssum, ssq], axis=0).reshape(1, 1, 2, cout)

    y = acc + b_ref[...]
    y_ref[...] = y.reshape(1, 1, ho, wo, cout).astype(y_ref.dtype)


# ---------------------------------------------------------------------------
# Stage-3 kernel: final InstanceNorm2 + LeakyReLU.
# ---------------------------------------------------------------------------
def _finalize_kernel(y_ref, m_ref, r_ref, o_ref, *, slope):
    c = y_ref.shape[-1]
    y = y_ref[...].astype(jnp.float32)                   # (1,1,ho,wo,C)
    m = m_ref[...].reshape(1, 1, 1, 1, c)
    r = r_ref[...].reshape(1, 1, 1, 1, c)
    t = (y - m) * r
    o_ref[...] = jnp.where(t >= 0, t, slope * t).astype(o_ref.dtype)


# ---------------------------------------------------------------------------
# pallas_call wrappers
# ---------------------------------------------------------------------------
def _conv1_call(xph, wflat, bias, stride, dims):
    sd, sh, sw = stride
    do, ho, wo = dims
    n, dp, shp, w2c, cin = xph.shape
    kdim, cout = wflat.shape
    b2d = bias.reshape(1, cout)

    def tap_spec(kd):
        return pl.BlockSpec((1, 1, shp, w2c, cin),
                            lambda nn, dd, kd=kd: (nn, dd * sd + kd, 0, 0, 0))

    kern = functools.partial(_conv1_kernel, sh=sh, sw=sw, ho=ho, wo=wo)
    return pl.pallas_call(
        kern,
        out_shape=(jax.ShapeDtypeStruct((n, do, ho, wo, cout), jnp.bfloat16),
                   jax.ShapeDtypeStruct((n, do, 2, cout), jnp.float32)),
        grid_spec=pltpu.PrefetchScalarGridSpec(
            num_scalar_prefetch=0,
            grid=(n, do),
            in_specs=[tap_spec(0), tap_spec(1), tap_spec(2),
                      pl.BlockSpec((kdim, cout), lambda nn, dd: (0, 0)),
                      pl.BlockSpec((1, cout), lambda nn, dd: (0, 0))],
            out_specs=(pl.BlockSpec((1, 1, ho, wo, cout),
                                    lambda nn, dd: (nn, dd, 0, 0, 0)),
                       pl.BlockSpec((1, 1, 2, cout),
                                    lambda nn, dd: (nn, dd, 0, 0))),
        ),
        compiler_params=pltpu.CompilerParams(
            dimension_semantics=("parallel", "parallel"),
            vmem_limit_bytes=_VMEM_LIMIT),
    )(xph, xph, xph, wflat, b2d)


def _conv2_call(y1_raw, mean1, rstd1, wflat, bias, slope=_SLOPE):
    n, do, ho, wo, c = y1_raw.shape
    kdim, cout = wflat.shape
    b2d = bias.reshape(1, cout)
    m3 = mean1.reshape(n, 1, c).astype(jnp.float32)
    r3 = rstd1.reshape(n, 1, c).astype(jnp.float32)

    kern = functools.partial(_conv2_kernel, slope=slope)
    return pl.pallas_call(
        kern,
        out_shape=(jax.ShapeDtypeStruct((n, do, ho, wo, cout), jnp.bfloat16),
                   jax.ShapeDtypeStruct((n, do, 2, cout), jnp.float32)),
        grid_spec=pltpu.PrefetchScalarGridSpec(
            num_scalar_prefetch=0,
            grid=(n, do),
            in_specs=[
                pl.BlockSpec((1, 1, ho, wo, c),
                             lambda nn, dd: (nn, jnp.maximum(dd - 1, 0), 0, 0, 0)),
                pl.BlockSpec((1, 1, ho, wo, c),
                             lambda nn, dd: (nn, dd, 0, 0, 0)),
                pl.BlockSpec((1, 1, ho, wo, c),
                             lambda nn, dd: (nn, jnp.minimum(dd + 1, do - 1), 0, 0, 0)),
                pl.BlockSpec((1, 1, c), lambda nn, dd: (nn, 0, 0)),
                pl.BlockSpec((1, 1, c), lambda nn, dd: (nn, 0, 0)),
                pl.BlockSpec((kdim, cout), lambda nn, dd: (0, 0)),
                pl.BlockSpec((1, cout), lambda nn, dd: (0, 0)),
            ],
            out_specs=(pl.BlockSpec((1, 1, ho, wo, cout),
                                    lambda nn, dd: (nn, dd, 0, 0, 0)),
                       pl.BlockSpec((1, 1, 2, cout),
                                    lambda nn, dd: (nn, dd, 0, 0))),
        ),
        compiler_params=pltpu.CompilerParams(
            dimension_semantics=("parallel", "parallel"),
            vmem_limit_bytes=_VMEM_LIMIT),
    )(y1_raw, y1_raw, y1_raw, m3, r3, wflat, b2d)


def _finalize_call(y2_raw, mean2, rstd2, slope=_SLOPE):
    n, do, ho, wo, c = y2_raw.shape
    m3 = mean2.reshape(n, 1, c).astype(jnp.float32)
    r3 = rstd2.reshape(n, 1, c).astype(jnp.float32)
    kern = functools.partial(_finalize_kernel, slope=slope)
    return pl.pallas_call(
        kern,
        out_shape=jax.ShapeDtypeStruct((n, do, ho, wo, c), jnp.float32),
        grid_spec=pltpu.PrefetchScalarGridSpec(
            num_scalar_prefetch=0,
            grid=(n, do),
            in_specs=[pl.BlockSpec((1, 1, ho, wo, c),
                                   lambda nn, dd: (nn, dd, 0, 0, 0)),
                      pl.BlockSpec((1, 1, c), lambda nn, dd: (nn, 0, 0)),
                      pl.BlockSpec((1, 1, c), lambda nn, dd: (nn, 0, 0))],
            out_specs=pl.BlockSpec((1, 1, ho, wo, c),
                                   lambda nn, dd: (nn, dd, 0, 0, 0)),
        ),
        compiler_params=pltpu.CompilerParams(
            dimension_semantics=("parallel", "parallel"),
            vmem_limit_bytes=_VMEM_LIMIT),
    )(y2_raw, m3, r3)


def _instance_stats(st, count, bias, eps=_EPS):
    """st: (N, Do, 2, C) pre-bias partials -> per-(n,c) mean (incl. bias), rstd."""
    tot = jnp.sum(st, axis=1)                             # (N, 2, C)
    mean0 = tot[:, 0, :] / count
    var = jnp.maximum(tot[:, 1, :] / count - mean0 * mean0, 0.0)
    mean = mean0 + bias.reshape(1, -1).astype(jnp.float32)
    return mean, lax.rsqrt(var + eps)


# ---------------------------------------------------------------------------
# DownBlock forward
# ---------------------------------------------------------------------------
def down_block_forward(x_ncdhw, params, stride):
    """x_ncdhw: (N, Cin, D, H, W) f32 -> (N, Cout, Do, Ho, Wo) f32."""
    if isinstance(stride, int):
        stride = (stride, stride, stride)
    sd, sh, sw = stride

    n, cin, d, h, w = x_ncdhw.shape
    cout = params["w1"].shape[0]

    # NCDHW -> NDHWC, bf16 (halves HBM traffic of the first conv).
    x = jnp.transpose(x_ncdhw, (0, 2, 3, 4, 1)).astype(jnp.bfloat16)

    do = (d + 2 - 3) // sd + 1
    ho = (h + 2 - 3) // sh + 1
    wo = (w + 2 - 3) // sw + 1

    # Pad D/H/W by 1 (extra H rows if needed by the stride-reshape trick),
    # split W into `sw` phases so strided windows become contiguous slices,
    # fold the phase axis into H so the array stays rank-5.
    hp2 = max(h + 2, 2 + sh * ho)
    w2c = 2 // sw + wo
    xp = jnp.pad(x, ((0, 0), (1, 1), (1, hp2 - h - 1), (1, 1), (0, 0)))
    phases = []
    for p in range(sw):
        ph = xp[:, :, :, p::sw, :][:, :, :, :w2c, :]
        if ph.shape[3] < w2c:
            ph = jnp.pad(ph, ((0, 0), (0, 0), (0, 0),
                              (0, w2c - ph.shape[3]), (0, 0)))
        phases.append(ph)
    xph = jnp.stack(phases, axis=2).reshape(n, d + 2, sw * hp2, w2c, cin)

    # PyTorch weights (Cout, Cin, kd, kh, kw) -> flat (27*Cin, Cout), bf16,
    # matching the in-kernel (kd, kh, kw, cin) window concatenation order.
    w1f = jnp.transpose(params["w1"], (2, 3, 4, 1, 0)).reshape(27 * cin, cout)
    w1f = w1f.astype(jnp.bfloat16)
    w2f = jnp.transpose(params["w2"], (2, 3, 4, 1, 0)).reshape(27 * cout, cout)
    w2f = w2f.astype(jnp.bfloat16)
    b1 = params["b1"].astype(jnp.float32)
    b2 = params["b2"].astype(jnp.float32)

    # stage 1: strided conv + bias
    y1_raw, st1 = _conv1_call(xph, w1f, b1, (sd, sh, sw), (do, ho, wo))
    m1, r1 = _instance_stats(st1, float(do * ho * wo), b1)

    # stage 2: fused IN1 + LeakyReLU + zero-pad + conv2 + bias
    y2_raw, st2 = _conv2_call(y1_raw, m1, r1, w2f, b2)
    m2, r2 = _instance_stats(st2, float(do * ho * wo), b2)

    # stage 3: final IN2 + LeakyReLU
    y2 = _finalize_call(y2_raw, m2, r2)

    return jnp.transpose(y2, (0, 4, 1, 2, 3))              # NDHWC -> NCDHW


# ---------------------------------------------------------------------------
# Pure-JAX reference (module semantics, f32)
# ---------------------------------------------------------------------------
def _reference(x_ncdhw, params, stride):
    if isinstance(stride, int):
        stride = (stride, stride, stride)

    def conv(x, w, b, s):
        y = lax.conv_general_dilated(
            x, w, window_strides=s, padding=[(1, 1)] * 3,
            dimension_numbers=("NCDHW", "OIDHW", "NCDHW"),
            precision=lax.Precision.HIGHEST)
        return y + b.reshape(1, -1, 1, 1, 1)

    def in_lrelu(y):
        mean = jnp.mean(y, axis=(2, 3, 4), keepdims=True)
        var = jnp.mean((y - mean) ** 2, axis=(2, 3, 4), keepdims=True)
        yn = (y - mean) * lax.rsqrt(var + _EPS)
        return jnp.where(yn >= 0, yn, _SLOPE * yn)

    y = in_lrelu(conv(x_ncdhw, params["w1"], params["b1"], stride))
    y = in_lrelu(conv(y, params["w2"], params["b2"], (1, 1, 1)))
    return y


# ---------------------------------------------------------------------------
if __name__ == "__main__":
    key = jax.random.PRNGKey(0)
    kx, k1, k2, k3, k4 = jax.random.split(key, 5)

    N, Cin, Cout = 2, 4, 8
    D = H = W = 8
    stride = (2, 2, 2)

    x = jax.random.normal(kx, (N, Cin, D, H, W), dtype=jnp.float32)
    params = {
        "w1": 0.1 * jax.random.normal(k1, (Cout, Cin, 3, 3, 3), dtype=jnp.float32),
        "b1": 0.1 * jax.random.normal(k2, (Cout,), dtype=jnp.float32),
        "w2": 0.1 * jax.random.normal(k3, (Cout, Cout, 3, 3, 3), dtype=jnp.float32),
        "b2": 0.1 * jax.random.normal(k4, (Cout,), dtype=jnp.float32),
    }

    fwd = jax.jit(functools.partial(down_block_forward, stride=stride))
    out = jax.block_until_ready(fwd(x, params))

    assert out.shape == (N, Cout, D // 2, H // 2, W // 2), out.shape
    ref = _reference(x, params, stride)
    max_err = float(jnp.max(jnp.abs(out.astype(jnp.float32) - ref)))
    # bf16 matmul inputs / bf16 intermediates vs. f32 reference (post-IN O(1)).
    assert max_err < 1e-1, f"max abs error {max_err}"

    print("KERNEL_OK")
</pallas_src>

<mosaic_0001>
module attributes {stable_mosaic.version = 11 : i64} {
  func.func @_conv1_kernel(%arg0: i32, %arg1: i32, %arg2: memref<1x1x20x5x4xbf16, #tpu.memory_space<vmem>>, %arg3: memref<1x1x20x5x4xbf16, #tpu.memory_space<vmem>>, %arg4: memref<1x1x20x5x4xbf16, #tpu.memory_space<vmem>>, %arg5: memref<108x8xbf16, #tpu.memory_space<vmem>>, %arg6: memref<1x8xf32, #tpu.memory_space<vmem>>, %arg7: memref<1x1x4x4x8xbf16, #tpu.memory_space<vmem>>, %arg8: memref<1x1x2x8xf32, #tpu.memory_space<vmem>>) attributes {dimension_semantics = [#tpu.dimension_semantics<parallel>, #tpu.dimension_semantics<parallel>], iteration_bounds = array<i64: 2, 4>, scalar_prefetch = 0 : i64, scratch_operands = 0 : i64, tpu.core_type = #tpu.core_type<tc>, window_params = [{transform_indices = @transform_0, window_bounds = array<i64: 1, 1, 20, 5, 4>}, {transform_indices = @transform_1, window_bounds = array<i64: 1, 1, 20, 5, 4>}, {transform_indices = @transform_2, window_bounds = array<i64: 1, 1, 20, 5, 4>}, {pipeline_mode = #tpu.pipeline_mode<synchronous>, transform_indices = @transform_3, window_bounds = array<i64: 108, 8>}, {pipeline_mode = #tpu.pipeline_mode<synchronous>, transform_indices = @transform_4, window_bounds = array<i64: 1, 8>}, {transform_indices = @transform_5, window_bounds = array<i64: 1, 1, 4, 4, 8>}, {transform_indices = @transform_6, window_bounds = array<i64: 1, 1, 2, 8>}]} {
    %c0 = arith.constant 0 : index
    %c0_0 = arith.constant 0 : index
    %c0_1 = arith.constant 0 : index
    %c0_2 = arith.constant 0 : index
    %c0_3 = arith.constant 0 : index
    %0 = vector.load %arg2[%c0, %c0_0, %c0_1, %c0_2, %c0_3] : memref<1x1x20x5x4xbf16, #tpu.memory_space<vmem>>, vector<1x1x20x5x4xbf16>
    %1 = vector.shape_cast %0 : vector<1x1x20x5x4xbf16> to vector<2x10x5x4xbf16>
    %2 = vector.extract_strided_slice %1 {offsets = [0, 0, 0, 0], sizes = [1, 10, 5, 4], strides = [1, 1, 1, 1]} : vector<2x10x5x4xbf16> to vector<1x10x5x4xbf16>
    %3 = vector.shape_cast %2 : vector<1x10x5x4xbf16> to vector<10x5x4xbf16>
    %4 = vector.extract_strided_slice %3 {offsets = [0, 0, 0], sizes = [8, 5, 4], strides = [1, 1, 1]} : vector<10x5x4xbf16> to vector<8x5x4xbf16>
    %5 = vector.shape_cast %4 : vector<8x5x4xbf16> to vector<4x2x5x4xbf16>
    %6 = vector.extract_strided_slice %5 {offsets = [0, 0, 0, 0], sizes = [4, 1, 5, 4], strides = [1, 1, 1, 1]} : vector<4x2x5x4xbf16> to vector<4x1x5x4xbf16>
    %7 = vector.shape_cast %6 : vector<4x1x5x4xbf16> to vector<4x5x4xbf16>
    %8 = vector.extract_strided_slice %7 {offsets = [0, 0, 0], sizes = [4, 4, 4], strides = [1, 1, 1]} : vector<4x5x4xbf16> to vector<4x4x4xbf16>
    %9 = vector.extract_strided_slice %1 {offsets = [1, 0, 0, 0], sizes = [1, 10, 5, 4], strides = [1, 1, 1, 1]} : vector<2x10x5x4xbf16> to vector<1x10x5x4xbf16>
    %10 = vector.shape_cast %9 : vector<1x10x5x4xbf16> to vector<10x5x4xbf16>
    %11 = vector.extract_strided_slice %10 {offsets = [0, 0, 0], sizes = [8, 5, 4], strides = [1, 1, 1]} : vector<10x5x4xbf16> to vector<8x5x4xbf16>
    %12 = vector.shape_cast %11 : vector<8x5x4xbf16> to vector<4x2x5x4xbf16>
    %13 = vector.extract_strided_slice %12 {offsets = [0, 0, 0, 0], sizes = [4, 1, 5, 4], strides = [1, 1, 1, 1]} : vector<4x2x5x4xbf16> to vector<4x1x5x4xbf16>
    %14 = vector.shape_cast %13 : vector<4x1x5x4xbf16> to vector<4x5x4xbf16>
    %15 = vector.extract_strided_slice %14 {offsets = [0, 0, 0], sizes = [4, 4, 4], strides = [1, 1, 1]} : vector<4x5x4xbf16> to vector<4x4x4xbf16>
    %16 = vector.extract_strided_slice %1 {offsets = [0, 0, 0, 0], sizes = [1, 10, 5, 4], strides = [1, 1, 1, 1]} : vector<2x10x5x4xbf16> to vector<1x10x5x4xbf16>
    %17 = vector.shape_cast %16 : vector<1x10x5x4xbf16> to vector<10x5x4xbf16>
    %18 = vector.extract_strided_slice %17 {offsets = [0, 0, 0], sizes = [8, 5, 4], strides = [1, 1, 1]} : vector<10x5x4xbf16> to vector<8x5x4xbf16>
    %19 = vector.shape_cast %18 : vector<8x5x4xbf16> to vector<4x2x5x4xbf16>
    %20 = vector.extract_strided_slice %19 {offsets = [0, 0, 0, 0], sizes = [4, 1, 5, 4], strides = [1, 1, 1, 1]} : vector<4x2x5x4xbf16> to vector<4x1x5x4xbf16>
    %21 = vector.shape_cast %20 : vector<4x1x5x4xbf16> to vector<4x5x4xbf16>
    %22 = vector.extract_strided_slice %21 {offsets = [0, 1, 0], sizes = [4, 4, 4], strides = [1, 1, 1]} : vector<4x5x4xbf16> to vector<4x4x4xbf16>
    %23 = vector.extract_strided_slice %1 {offsets = [0, 0, 0, 0], sizes = [1, 10, 5, 4], strides = [1, 1, 1, 1]} : vector<2x10x5x4xbf16> to vector<1x10x5x4xbf16>
    %24 = vector.shape_cast %23 : vector<1x10x5x4xbf16> to vector<10x5x4xbf16>
    %25 = vector.extract_strided_slice %24 {offsets = [1, 0, 0], sizes = [8, 5, 4], strides = [1, 1, 1]} : vector<10x5x4xbf16> to vector<8x5x4xbf16>
    %26 = vector.shape_cast %25 : vector<8x5x4xbf16> to vector<4x2x5x4xbf16>
    %27 = vector.extract_strided_slice %26 {offsets = [0, 0, 0, 0], sizes = [4, 1, 5, 4], strides = [1, 1, 1, 1]} : vector<4x2x5x4xbf16> to vector<4x1x5x4xbf16>
    %28 = vector.shape_cast %27 : vector<4x1x5x4xbf16> to vector<4x5x4xbf16>
    %29 = vector.extract_strided_slice %28 {offsets = [0, 0, 0], sizes = [4, 4, 4], strides = [1, 1, 1]} : vector<4x5x4xbf16> to vector<4x4x4xbf16>
    %30 = vector.extract_strided_slice %1 {offsets = [1, 0, 0, 0], sizes = [1, 10, 5, 4], strides = [1, 1, 1, 1]} : vector<2x10x5x4xbf16> to vector<1x10x5x4xbf16>
    %31 = vector.shape_cast %30 : vector<1x10x5x4xbf16> to vector<10x5x4xbf16>
    %32 = vector.extract_strided_slice %31 {offsets = [1, 0, 0], sizes = [8, 5, 4], strides = [1, 1, 1]} : vector<10x5x4xbf16> to vector<8x5x4xbf16>
    %33 = vector.shape_cast %32 : vector<8x5x4xbf16> to vector<4x2x5x4xbf16>
    %34 = vector.extract_strided_slice %33 {offsets = [0, 0, 0, 0], sizes = [4, 1, 5, 4], strides = [1, 1, 1, 1]} : vector<4x2x5x4xbf16> to vector<4x1x5x4xbf16>
    %35 = vector.shape_cast %34 : vector<4x1x5x4xbf16> to vector<4x5x4xbf16>
    %36 = vector.extract_strided_slice %35 {offsets = [0, 0, 0], sizes = [4, 4, 4], strides = [1, 1, 1]} : vector<4x5x4xbf16> to vector<4x4x4xbf16>
    %37 = vector.extract_strided_slice %1 {offsets = [0, 0, 0, 0], sizes = [1, 10, 5, 4], strides = [1, 1, 1, 1]} : vector<2x10x5x4xbf16> to vector<1x10x5x4xbf16>
    %38 = vector.shape_cast %37 : vector<1x10x5x4xbf16> to vector<10x5x4xbf16>
    %39 = vector.extract_strided_slice %38 {offsets = [1, 0, 0], sizes = [8, 5, 4], strides = [1, 1, 1]} : vector<10x5x4xbf16> to vector<8x5x4xbf16>
    %40 = vector.shape_cast %39 : vector<8x5x4xbf16> to vector<4x2x5x4xbf16>
    %41 = vector.extract_strided_slice %40 {offsets = [0, 0, 0, 0], sizes = [4, 1, 5, 4], strides = [1, 1, 1, 1]} : vector<4x2x5x4xbf16> to vector<4x1x5x4xbf16>
    %42 = vector.shape_cast %41 : vector<4x1x5x4xbf16> to vector<4x5x4xbf16>
    %43 = vector.extract_strided_slice %42 {offsets = [0, 1, 0], sizes = [4, 4, 4], strides = [1, 1, 1]} : vector<4x5x4xbf16> to vector<4x4x4xbf16>
    %44 = vector.extract_strided_slice %1 {offsets = [0, 0, 0, 0], sizes = [1, 10, 5, 4], strides = [1, 1, 1, 1]} : vector<2x10x5x4xbf16> to vector<1x10x5x4xbf16>
    %45 = vector.shape_cast %44 : vector<1x10x5x4xbf16> to vector<10x5x4xbf16>
    %46 = vector.extract_strided_slice %45 {offsets = [2, 0, 0], sizes = [8, 5, 4], strides = [1, 1, 1]} : vector<10x5x4xbf16> to vector<8x5x4xbf16>
    %47 = vector.shape_cast %46 : vector<8x5x4xbf16> to vector<4x2x5x4xbf16>
    %48 = vector.extract_strided_slice %47 {offsets = [0, 0, 0, 0], sizes = [4, 1, 5, 4], strides = [1, 1, 1, 1]} : vector<4x2x5x4xbf16> to vector<4x1x5x4xbf16>
    %49 = vector.shape_cast %48 : vector<4x1x5x4xbf16> to vector<4x5x4xbf16>
    %50 = vector.extract_strided_slice %49 {offsets = [0, 0, 0], sizes = [4, 4, 4], strides = [1, 1, 1]} : vector<4x5x4xbf16> to vector<4x4x4xbf16>
    %51 = vector.extract_strided_slice %1 {offsets = [1, 0, 0, 0], sizes = [1, 10, 5, 4], strides = [1, 1, 1, 1]} : vector<2x10x5x4xbf16> to vector<1x10x5x4xbf16>
    %52 = vector.shape_cast %51 : vector<1x10x5x4xbf16> to vector<10x5x4xbf16>
    %53 = vector.extract_strided_slice %52 {offsets = [2, 0, 0], sizes = [8, 5, 4], strides = [1, 1, 1]} : vector<10x5x4xbf16> to vector<8x5x4xbf16>
    %54 = vector.shape_cast %53 : vector<8x5x4xbf16> to vector<4x2x5x4xbf16>
    %55 = vector.extract_strided_slice %54 {offsets = [0, 0, 0, 0], sizes = [4, 1, 5, 4], strides = [1, 1, 1, 1]} : vector<4x2x5x4xbf16> to vector<4x1x5x4xbf16>
    %56 = vector.shape_cast %55 : vector<4x1x5x4xbf16> to vector<4x5x4xbf16>
    %57 = vector.extract_strided_slice %56 {offsets = [0, 0, 0], sizes = [4, 4, 4], strides = [1, 1, 1]} : vector<4x5x4xbf16> to vector<4x4x4xbf16>
    %58 = vector.extract_strided_slice %1 {offsets = [0, 0, 0, 0], sizes = [1, 10, 5, 4], strides = [1, 1, 1, 1]} : vector<2x10x5x4xbf16> to vector<1x10x5x4xbf16>
    %59 = vector.shape_cast %58 : vector<1x10x5x4xbf16> to vector<10x5x4xbf16>
    %60 = vector.extract_strided_slice %59 {offsets = [2, 0, 0], sizes = [8, 5, 4], strides = [1, 1, 1]} : vector<10x5x4xbf16> to vector<8x5x4xbf16>
    %61 = vector.shape_cast %60 : vector<8x5x4xbf16> to vector<4x2x5x4xbf16>
    %62 = vector.extract_strided_slice %61 {offsets = [0, 0, 0, 0], sizes = [4, 1, 5, 4], strides = [1, 1, 1, 1]} : vector<4x2x5x4xbf16> to vector<4x1x5x4xbf16>
    %63 = vector.shape_cast %62 : vector<4x1x5x4xbf16> to vector<4x5x4xbf16>
    %64 = vector.extract_strided_slice %63 {offsets = [0, 1, 0], sizes = [4, 4, 4], strides = [1, 1, 1]} : vector<4x5x4xbf16> to vector<4x4x4xbf16>
    %c0_4 = arith.constant 0 : index
    %c0_5 = arith.constant 0 : index
    %c0_6 = arith.constant 0 : index
    %c0_7 = arith.constant 0 : index
    %c0_8 = arith.constant 0 : index
    %65 = vector.load %arg3[%c0_4, %c0_5, %c0_6, %c0_7, %c0_8] : memref<1x1x20x5x4xbf16, #tpu.memory_space<vmem>>, vector<1x1x20x5x4xbf16>
    %66 = vector.shape_cast %65 : vector<1x1x20x5x4xbf16> to vector<2x10x5x4xbf16>
    %67 = vector.extract_strided_slice %66 {offsets = [0, 0, 0, 0], sizes = [1, 10, 5, 4], strides = [1, 1, 1, 1]} : vector<2x10x5x4xbf16> to vector<1x10x5x4xbf16>
    %68 = vector.shape_cast %67 : vector<1x10x5x4xbf16> to vector<10x5x4xbf16>
    %69 = vector.extract_strided_slice %68 {offsets = [0, 0, 0], sizes = [8, 5, 4], strides = [1, 1, 1]} : vector<10x5x4xbf16> to vector<8x5x4xbf16>
    %70 = vector.shape_cast %69 : vector<8x5x4xbf16> to vector<4x2x5x4xbf16>
    %71 = vector.extract_strided_slice %70 {offsets = [0, 0, 0, 0], sizes = [4, 1, 5, 4], strides = [1, 1, 1, 1]} : vector<4x2x5x4xbf16> to vector<4x1x5x4xbf16>
    %72 = vector.shape_cast %71 : vector<4x1x5x4xbf16> to vector<4x5x4xbf16>
    %73 = vector.extract_strided_slice %72 {offsets = [0, 0, 0], sizes = [4, 4, 4], strides = [1, 1, 1]} : vector<4x5x4xbf16> to vector<4x4x4xbf16>
    %74 = vector.extract_strided_slice %66 {offsets = [1, 0, 0, 0], sizes = [1, 10, 5, 4], strides = [1, 1, 1, 1]} : vector<2x10x5x4xbf16> to vector<1x10x5x4xbf16>
    %75 = vector.shape_cast %74 : vector<1x10x5x4xbf16> to vector<10x5x4xbf16>
    %76 = vector.extract_strided_slice %75 {offsets = [0, 0, 0], sizes = [8, 5, 4], strides = [1, 1, 1]} : vector<10x5x4xbf16> to vector<8x5x4xbf16>
    %77 = vector.shape_cast %76 : vector<8x5x4xbf16> to vector<4x2x5x4xbf16>
    %78 = vector.extract_strided_slice %77 {offsets = [0, 0, 0, 0], sizes = [4, 1, 5, 4], strides = [1, 1, 1, 1]} : vector<4x2x5x4xbf16> to vector<4x1x5x4xbf16>
    %79 = vector.shape_cast %78 : vector<4x1x5x4xbf16> to vector<4x5x4xbf16>
    %80 = vector.extract_strided_slice %79 {offsets = [0, 0, 0], sizes = [4, 4, 4], strides = [1, 1, 1]} : vector<4x5x4xbf16> to vector<4x4x4xbf16>
    %81 = vector.extract_strided_slice %66 {offsets = [0, 0, 0, 0], sizes = [1, 10, 5, 4], strides = [1, 1, 1, 1]} : vector<2x10x5x4xbf16> to vector<1x10x5x4xbf16>
    %82 = vector.shape_cast %81 : vector<1x10x5x4xbf16> to vector<10x5x4xbf16>
    %83 = vector.extract_strided_slice %82 {offsets = [0, 0, 0], sizes = [8, 5, 4], strides = [1, 1, 1]} : vector<10x5x4xbf16> to vector<8x5x4xbf16>
    %84 = vector.shape_cast %83 : vector<8x5x4xbf16> to vector<4x2x5x4xbf16>
    %85 = vector.extract_strided_slice %84 {offsets = [0, 0, 0, 0], sizes = [4, 1, 5, 4], strides = [1, 1, 1, 1]} : vector<4x2x5x4xbf16> to vector<4x1x5x4xbf16>
    %86 = vector.shape_cast %85 : vector<4x1x5x4xbf16> to vector<4x5x4xbf16>
    %87 = vector.extract_strided_slice %86 {offsets = [0, 1, 0], sizes = [4, 4, 4], strides = [1, 1, 1]} : vector<4x5x4xbf16> to vector<4x4x4xbf16>
    %88 = vector.extract_strided_slice %66 {offsets = [0, 0, 0, 0], sizes = [1, 10, 5, 4], strides = [1, 1, 1, 1]} : vector<2x10x5x4xbf16> to vector<1x10x5x4xbf16>
    %89 = vector.shape_cast %88 : vector<1x10x5x4xbf16> to vector<10x5x4xbf16>
    %90 = vector.extract_strided_slice %89 {offsets = [1, 0, 0], sizes = [8, 5, 4], strides = [1, 1, 1]} : vector<10x5x4xbf16> to vector<8x5x4xbf16>
    %91 = vector.shape_cast %90 : vector<8x5x4xbf16> to vector<4x2x5x4xbf16>
    %92 = vector.extract_strided_slice %91 {offsets = [0, 0, 0, 0], sizes = [4, 1, 5, 4], strides = [1, 1, 1, 1]} : vector<4x2x5x4xbf16> to vector<4x1x5x4xbf16>
    %93 = vector.shape_cast %92 : vector<4x1x5x4xbf16> to vector<4x5x4xbf16>
    %94 = vector.extract_strided_slice %93 {offsets = [0, 0, 0], sizes = [4, 4, 4], strides = [1, 1, 1]} : vector<4x5x4xbf16> to vector<4x4x4xbf16>
    %95 = vector.extract_strided_slice %66 {offsets = [1, 0, 0, 0], sizes = [1, 10, 5, 4], strides = [1, 1, 1, 1]} : vector<2x10x5x4xbf16> to vector<1x10x5x4xbf16>
    %96 = vector.shape_cast %95 : vector<1x10x5x4xbf16> to vector<10x5x4xbf16>
    %97 = vector.extract_strided_slice %96 {offsets = [1, 0, 0], sizes = [8, 5, 4], strides = [1, 1, 1]} : vector<10x5x4xbf16> to vector<8x5x4xbf16>
    %98 = vector.shape_cast %97 : vector<8x5x4xbf16> to vector<4x2x5x4xbf16>
    %99 = vector.extract_strided_slice %98 {offsets = [0, 0, 0, 0], sizes = [4, 1, 5, 4], strides = [1, 1, 1, 1]} : vector<4x2x5x4xbf16> to vector<4x1x5x4xbf16>
    %100 = vector.shape_cast %99 : vector<4x1x5x4xbf16> to vector<4x5x4xbf16>
    %101 = vector.extract_strided_slice %100 {offsets = [0, 0, 0], sizes = [4, 4, 4], strides = [1, 1, 1]} : vector<4x5x4xbf16> to vector<4x4x4xbf16>
    %102 = vector.extract_strided_slice %66 {offsets = [0, 0, 0, 0], sizes = [1, 10, 5, 4], strides = [1, 1, 1, 1]} : vector<2x10x5x4xbf16> to vector<1x10x5x4xbf16>
    %103 = vector.shape_cast %102 : vector<1x10x5x4xbf16> to vector<10x5x4xbf16>
    %104 = vector.extract_strided_slice %103 {offsets = [1, 0, 0], sizes = [8, 5, 4], strides = [1, 1, 1]} : vector<10x5x4xbf16> to vector<8x5x4xbf16>
    %105 = vector.shape_cast %104 : vector<8x5x4xbf16> to vector<4x2x5x4xbf16>
    %106 = vector.extract_strided_slice %105 {offsets = [0, 0, 0, 0], sizes = [4, 1, 5, 4], strides = [1, 1, 1, 1]} : vector<4x2x5x4xbf16> to vector<4x1x5x4xbf16>
    %107 = vector.shape_cast %106 : vector<4x1x5x4xbf16> to vector<4x5x4xbf16>
    %108 = vector.extract_strided_slice %107 {offsets = [0, 1, 0], sizes = [4, 4, 4], strides = [1, 1, 1]} : vector<4x5x4xbf16> to vector<4x4x4xbf16>
    %109 = vector.extract_strided_slice %66 {offsets = [0, 0, 0, 0], sizes = [1, 10, 5, 4], strides = [1, 1, 1, 1]} : vector<2x10x5x4xbf16> to vector<1x10x5x4xbf16>
    %110 = vector.shape_cast %109 : vector<1x10x5x4xbf16> to vector<10x5x4xbf16>
    %111 = vector.extract_strided_slice %110 {offsets = [2, 0, 0], sizes = [8, 5, 4], strides = [1, 1, 1]} : vector<10x5x4xbf16> to vector<8x5x4xbf16>
    %112 = vector.shape_cast %111 : vector<8x5x4xbf16> to vector<4x2x5x4xbf16>
    %113 = vector.extract_strided_slice %112 {offsets = [0, 0, 0, 0], sizes = [4, 1, 5, 4], strides = [1, 1, 1, 1]} : vector<4x2x5x4xbf16> to vector<4x1x5x4xbf16>
    %114 = vector.shape_cast %113 : vector<4x1x5x4xbf16> to vector<4x5x4xbf16>
    %115 = vector.extract_strided_slice %114 {offsets = [0, 0, 0], sizes = [4, 4, 4], strides = [1, 1, 1]} : vector<4x5x4xbf16> to vector<4x4x4xbf16>
    %116 = vector.extract_strided_slice %66 {offsets = [1, 0, 0, 0], sizes = [1, 10, 5, 4], strides = [1, 1, 1, 1]} : vector<2x10x5x4xbf16> to vector<1x10x5x4xbf16>
    %117 = vector.shape_cast %116 : vector<1x10x5x4xbf16> to vector<10x5x4xbf16>
    %118 = vector.extract_strided_slice %117 {offsets = [2, 0, 0], sizes = [8, 5, 4], strides = [1, 1, 1]} : vector<10x5x4xbf16> to vector<8x5x4xbf16>
    %119 = vector.shape_cast %118 : vector<8x5x4xbf16> to vector<4x2x5x4xbf16>
    %120 = vector.extract_strided_slice %119 {offsets = [0, 0, 0, 0], sizes = [4, 1, 5, 4], strides = [1, 1, 1, 1]} : vector<4x2x5x4xbf16> to vector<4x1x5x4xbf16>
    %121 = vector.shape_cast %120 : vector<4x1x5x4xbf16> to vector<4x5x4xbf16>
    %122 = vector.extract_strided_slice %121 {offsets = [0, 0, 0], sizes = [4, 4, 4], strides = [1, 1, 1]} : vector<4x5x4xbf16> to vector<4x4x4xbf16>
    %123 = vector.extract_strided_slice %66 {offsets = [0, 0, 0, 0], sizes = [1, 10, 5, 4], strides = [1, 1, 1, 1]} : vector<2x10x5x4xbf16> to vector<1x10x5x4xbf16>
    %124 = vector.shape_cast %123 : vector<1x10x5x4xbf16> to vector<10x5x4xbf16>
    %125 = vector.extract_strided_slice %124 {offsets = [2, 0, 0], sizes = [8, 5, 4], strides = [1, 1, 1]} : vector<10x5x4xbf16> to vector<8x5x4xbf16>
    %126 = vector.shape_cast %125 : vector<8x5x4xbf16> to vector<4x2x5x4xbf16>
    %127 = vector.extract_strided_slice %126 {offsets = [0, 0, 0, 0], sizes = [4, 1, 5, 4], strides = [1, 1, 1, 1]} : vector<4x2x5x4xbf16> to vector<4x1x5x4xbf16>
    %128 = vector.shape_cast %127 : vector<4x1x5x4xbf16> to vector<4x5x4xbf16>
    %129 = vector.extract_strided_slice %128 {offsets = [0, 1, 0], sizes = [4, 4, 4], strides = [1, 1, 1]} : vector<4x5x4xbf16> to vector<4x4x4xbf16>
    %c0_9 = arith.constant 0 : index
    %c0_10 = arith.constant 0 : index
    %c0_11 = arith.constant 0 : index
    %c0_12 = arith.constant 0 : index
    %c0_13 = arith.constant 0 : index
    %130 = vector.load %arg4[%c0_9, %c0_10, %c0_11, %c0_12, %c0_13] : memref<1x1x20x5x4xbf16, #tpu.memory_space<vmem>>, vector<1x1x20x5x4xbf16>
    %131 = vector.shape_cast %130 : vector<1x1x20x5x4xbf16> to vector<2x10x5x4xbf16>
    %132 = vector.extract_strided_slice %131 {offsets = [0, 0, 0, 0], sizes = [1, 10, 5, 4], strides = [1, 1, 1, 1]} : vector<2x10x5x4xbf16> to vector<1x10x5x4xbf16>
    %133 = vector.shape_cast %132 : vector<1x10x5x4xbf16> to vector<10x5x4xbf16>
    %134 = vector.extract_strided_slice %133 {offsets = [0, 0, 0], sizes = [8, 5, 4], strides = [1, 1, 1]} : vector<10x5x4xbf16> to vector<8x5x4xbf16>
    %135 = vector.shape_cast %134 : vector<8x5x4xbf16> to vector<4x2x5x4xbf16>
    %136 = vector.extract_strided_slice %135 {offsets = [0, 0, 0, 0], sizes = [4, 1, 5, 4], strides = [1, 1, 1, 1]} : vector<4x2x5x4xbf16> to vector<4x1x5x4xbf16>
    %137 = vector.shape_cast %136 : vector<4x1x5x4xbf16> to vector<4x5x4xbf16>
    %138 = vector.extract_strided_slice %137 {offsets = [0, 0, 0], sizes = [4, 4, 4], strides = [1, 1, 1]} : vector<4x5x4xbf16> to vector<4x4x4xbf16>
    %139 = vector.extract_strided_slice %131 {offsets = [1, 0, 0, 0], sizes = [1, 10, 5, 4], strides = [1, 1, 1, 1]} : vector<2x10x5x4xbf16> to vector<1x10x5x4xbf16>
    %140 = vector.shape_cast %139 : vector<1x10x5x4xbf16> to vector<10x5x4xbf16>
    %141 = vector.extract_strided_slice %140 {offsets = [0, 0, 0], sizes = [8, 5, 4], strides = [1, 1, 1]} : vector<10x5x4xbf16> to vector<8x5x4xbf16>
    %142 = vector.shape_cast %141 : vector<8x5x4xbf16> to vector<4x2x5x4xbf16>
    %143 = vector.extract_strided_slice %142 {offsets = [0, 0, 0, 0], sizes = [4, 1, 5, 4], strides = [1, 1, 1, 1]} : vector<4x2x5x4xbf16> to vector<4x1x5x4xbf16>
    %144 = vector.shape_cast %143 : vector<4x1x5x4xbf16> to vector<4x5x4xbf16>
    %145 = vector.extract_strided_slice %144 {offsets = [0, 0, 0], sizes = [4, 4, 4], strides = [1, 1, 1]} : vector<4x5x4xbf16> to vector<4x4x4xbf16>
    %146 = vector.extract_strided_slice %131 {offsets = [0, 0, 0, 0], sizes = [1, 10, 5, 4], strides = [1, 1, 1, 1]} : vector<2x10x5x4xbf16> to vector<1x10x5x4xbf16>
    %147 = vector.shape_cast %146 : vector<1x10x5x4xbf16> to vector<10x5x4xbf16>
    %148 = vector.extract_strided_slice %147 {offsets = [0, 0, 0], sizes = [8, 5, 4], strides = [1, 1, 1]} : vector<10x5x4xbf16> to vector<8x5x4xbf16>
    %149 = vector.shape_cast %148 : vector<8x5x4xbf16> to vector<4x2x5x4xbf16>
    %150 = vector.extract_strided_slice %149 {offsets = [0, 0, 0, 0], sizes = [4, 1, 5, 4], strides = [1, 1, 1, 1]} : vector<4x2x5x4xbf16> to vector<4x1x5x4xbf16>
    %151 = vector.shape_cast %150 : vector<4x1x5x4xbf16> to vector<4x5x4xbf16>
    %152 = vector.extract_strided_slice %151 {offsets = [0, 1, 0], sizes = [4, 4, 4], strides = [1, 1, 1]} : vector<4x5x4xbf16> to vector<4x4x4xbf16>
    %153 = vector.extract_strided_slice %131 {offsets = [0, 0, 0, 0], sizes = [1, 10, 5, 4], strides = [1, 1, 1, 1]} : vector<2x10x5x4xbf16> to vector<1x10x5x4xbf16>
    %154 = vector.shape_cast %153 : vector<1x10x5x4xbf16> to vector<10x5x4xbf16>
    %155 = vector.extract_strided_slice %154 {offsets = [1, 0, 0], sizes = [8, 5, 4], strides = [1, 1, 1]} : vector<10x5x4xbf16> to vector<8x5x4xbf16>
    %156 = vector.shape_cast %155 : vector<8x5x4xbf16> to vector<4x2x5x4xbf16>
    %157 = vector.extract_strided_slice %156 {offsets = [0, 0, 0, 0], sizes = [4, 1, 5, 4], strides = [1, 1, 1, 1]} : vector<4x2x5x4xbf16> to vector<4x1x5x4xbf16>
    %158 = vector.shape_cast %157 : vector<4x1x5x4xbf16> to vector<4x5x4xbf16>
    %159 = vector.extract_strided_slice %158 {offsets = [0, 0, 0], sizes = [4, 4, 4], strides = [1, 1, 1]} : vector<4x5x4xbf16> to vector<4x4x4xbf16>
    %160 = vector.extract_strided_slice %131 {offsets = [1, 0, 0, 0], sizes = [1, 10, 5, 4], strides = [1, 1, 1, 1]} : vector<2x10x5x4xbf16> to vector<1x10x5x4xbf16>
    %161 = vector.shape_cast %160 : vector<1x10x5x4xbf16> to vector<10x5x4xbf16>
    %162 = vector.extract_strided_slice %161 {offsets = [1, 0, 0], sizes = [8, 5, 4], strides = [1, 1, 1]} : vector<10x5x4xbf16> to vector<8x5x4xbf16>
    %163 = vector.shape_cast %162 : vector<8x5x4xbf16> to vector<4x2x5x4xbf16>
    %164 = vector.extract_strided_slice %163 {offsets = [0, 0, 0, 0], sizes = [4, 1, 5, 4], strides = [1, 1, 1, 1]} : vector<4x2x5x4xbf16> to vector<4x1x5x4xbf16>
    %165 = vector.shape_cast %164 : vector<4x1x5x4xbf16> to vector<4x5x4xbf16>
    %166 = vector.extract_strided_slice %165 {offsets = [0, 0, 0], sizes = [4, 4, 4], strides = [1, 1, 1]} : vector<4x5x4xbf16> to vector<4x4x4xbf16>
    %167 = vector.extract_strided_slice %131 {offsets = [0, 0, 0, 0], sizes = [1, 10, 5, 4], strides = [1, 1, 1, 1]} : vector<2x10x5x4xbf16> to vector<1x10x5x4xbf16>
    %168 = vector.shape_cast %167 : vector<1x10x5x4xbf16> to vector<10x5x4xbf16>
    %169 = vector.extract_strided_slice %168 {offsets = [1, 0, 0], sizes = [8, 5, 4], strides = [1, 1, 1]} : vector<10x5x4xbf16> to vector<8x5x4xbf16>
    %170 = vector.shape_cast %169 : vector<8x5x4xbf16> to vector<4x2x5x4xbf16>
    %171 = vector.extract_strided_slice %170 {offsets = [0, 0, 0, 0], sizes = [4, 1, 5, 4], strides = [1, 1, 1, 1]} : vector<4x2x5x4xbf16> to vector<4x1x5x4xbf16>
    %172 = vector.shape_cast %171 : vector<4x1x5x4xbf16> to vector<4x5x4xbf16>
    %173 = vector.extract_strided_slice %172 {offsets = [0, 1, 0], sizes = [4, 4, 4], strides = [1, 1, 1]} : vector<4x5x4xbf16> to vector<4x4x4xbf16>
    %174 = vector.extract_strided_slice %131 {offsets = [0, 0, 0, 0], sizes = [1, 10, 5, 4], strides = [1, 1, 1, 1]} : vector<2x10x5x4xbf16> to vector<1x10x5x4xbf16>
    %175 = vector.shape_cast %174 : vector<1x10x5x4xbf16> to vector<10x5x4xbf16>
    %176 = vector.extract_strided_slice %175 {offsets = [2, 0, 0], sizes = [8, 5, 4], strides = [1, 1, 1]} : vector<10x5x4xbf16> to vector<8x5x4xbf16>
    %177 = vector.shape_cast %176 : vector<8x5x4xbf16> to vector<4x2x5x4xbf16>
    %178 = vector.extract_strided_slice %177 {offsets = [0, 0, 0, 0], sizes = [4, 1, 5, 4], strides = [1, 1, 1, 1]} : vector<4x2x5x4xbf16> to vector<4x1x5x4xbf16>
    %179 = vector.shape_cast %178 : vector<4x1x5x4xbf16> to vector<4x5x4xbf16>
    %180 = vector.extract_strided_slice %179 {offsets = [0, 0, 0], sizes = [4, 4, 4], strides = [1, 1, 1]} : vector<4x5x4xbf16> to vector<4x4x4xbf16>
    %181 = vector.extract_strided_slice %131 {offsets = [1, 0, 0, 0], sizes = [1, 10, 5, 4], strides = [1, 1, 1, 1]} : vector<2x10x5x4xbf16> to vector<1x10x5x4xbf16>
    %182 = vector.shape_cast %181 : vector<1x10x5x4xbf16> to vector<10x5x4xbf16>
    %183 = vector.extract_strided_slice %182 {offsets = [2, 0, 0], sizes = [8, 5, 4], strides = [1, 1, 1]} : vector<10x5x4xbf16> to vector<8x5x4xbf16>
    %184 = vector.shape_cast %183 : vector<8x5x4xbf16> to vector<4x2x5x4xbf16>
    %185 = vector.extract_strided_slice %184 {offsets = [0, 0, 0, 0], sizes = [4, 1, 5, 4], strides = [1, 1, 1, 1]} : vector<4x2x5x4xbf16> to vector<4x1x5x4xbf16>
    %186 = vector.shape_cast %185 : vector<4x1x5x4xbf16> to vector<4x5x4xbf16>
    %187 = vector.extract_strided_slice %186 {offsets = [0, 0, 0], sizes = [4, 4, 4], strides = [1, 1, 1]} : vector<4x5x4xbf16> to vector<4x4x4xbf16>
    %188 = vector.extract_strided_slice %131 {offsets = [0, 0, 0, 0], sizes = [1, 10, 5, 4], strides = [1, 1, 1, 1]} : vector<2x10x5x4xbf16> to vector<1x10x5x4xbf16>
    %189 = vector.shape_cast %188 : vector<1x10x5x4xbf16> to vector<10x5x4xbf16>
    %190 = vector.extract_strided_slice %189 {offsets = [2, 0, 0], sizes = [8, 5, 4], strides = [1, 1, 1]} : vector<10x5x4xbf16> to vector<8x5x4xbf16>
    %191 = vector.shape_cast %190 : vector<8x5x4xbf16> to vector<4x2x5x4xbf16>
    %192 = vector.extract_strided_slice %191 {offsets = [0, 0, 0, 0], sizes = [4, 1, 5, 4], strides = [1, 1, 1, 1]} : vector<4x2x5x4xbf16> to vector<4x1x5x4xbf16>
    %193 = vector.shape_cast %192 : vector<4x1x5x4xbf16> to vector<4x5x4xbf16>
    %194 = vector.extract_strided_slice %193 {offsets = [0, 1, 0], sizes = [4, 4, 4], strides = [1, 1, 1]} : vector<4x5x4xbf16> to vector<4x4x4xbf16>
    %195 = tpu.concatenate %8, %15, %22, %29, %36, %43, %50, %57, %64, %73, %80, %87, %94, %101, %108, %115 in 2 : vector<4x4x4xbf16>, vector<4x4x4xbf16>, vector<4x4x4xbf16>, vector<4x4x4xbf16>, vector<4x4x4xbf16>, vector<4x4x4xbf16>, vector<4x4x4xbf16>, vector<4x4x4xbf16>, vector<4x4x4xbf16>, vector<4x4x4xbf16>, vector<4x4x4xbf16>, vector<4x4x4xbf16>, vector<4x4x4xbf16>, vector<4x4x4xbf16>, vector<4x4x4xbf16>, vector<4x4x4xbf16> -> vector<4x4x64xbf16>
    %196 = tpu.concatenate %122, %129, %138, %145, %152, %159, %166, %173, %180, %187, %194 in 2 : vector<4x4x4xbf16>, vector<4x4x4xbf16>, vector<4x4x4xbf16>, vector<4x4x4xbf16>, vector<4x4x4xbf16>, vector<4x4x4xbf16>, vector<4x4x4xbf16>, vector<4x4x4xbf16>, vector<4x4x4xbf16>, vector<4x4x4xbf16>, vector<4x4x4xbf16> -> vector<4x4x44xbf16>
    %197 = tpu.concatenate %195, %196 in 2 : vector<4x4x64xbf16>, vector<4x4x44xbf16> -> vector<4x4x108xbf16>
    %198 = vector.shape_cast %197 : vector<4x4x108xbf16> to vector<16x108xbf16>
    %c0_14 = arith.constant 0 : index
    %c0_15 = arith.constant 0 : index
    %199 = vector.load %arg5[%c0_14, %c0_15] : memref<108x8xbf16, #tpu.memory_space<vmem>>, vector<108x8xbf16>
    %cst = arith.constant dense<0.000000e+00> : vector<16x8xf32>
    %200 = tpu.matmul %198, %199, %cst {dimension_numbers = #tpu.dot_dimension_numbers<[1], [0], [0], [1], [0, 0, 1, 1], [], []>} : vector<16x108xbf16>, vector<108x8xbf16>, vector<16x8xf32> -> vector<16x8xf32>
    %cst_16 = arith.constant dense<0.000000e+00> : vector<8xf32>
    %201 = vector.multi_reduction <add>, %200, %cst_16 [0] : vector<16x8xf32> to vector<8xf32>
    %202 = vector.shape_cast %201 : vector<8xf32> to vector<1x8xf32>
    %203 = arith.mulf %200, %200 : vector<16x8xf32>
    %cst_17 = arith.constant dense<0.000000e+00> : vector<8xf32>
    %204 = vector.multi_reduction <add>, %203, %cst_17 [0] : vector<16x8xf32> to vector<8xf32>
    %205 = vector.shape_cast %204 : vector<8xf32> to vector<1x8xf32>
    %206 = tpu.concatenate %202, %205 in 0 : vector<1x8xf32>, vector<1x8xf32> -> vector<2x8xf32>
    %207 = vector.shape_cast %206 : vector<2x8xf32> to vector<1x1x2x8xf32>
    %c0_18 = arith.constant 0 : index
    %c0_19 = arith.constant 0 : index
    %c0_20 = arith.constant 0 : index
    %c0_21 = arith.constant 0 : index
    %208 = vector.load %arg8[%c0_18, %c0_19, %c0_20, %c0_21] : memref<1x1x2x8xf32, #tpu.memory_space<vmem>>, vector<1x1x2x8xf32>
    tpu.vector_store %arg8[%c0_18, %c0_19, %c0_20, %c0_21], %207 {strides = array<i32>} : memref<1x1x2x8xf32, #tpu.memory_space<vmem>>, vector<1x1x2x8xf32>,
    %c0_22 = arith.constant 0 : index
    %c0_23 = arith.constant 0 : index
    %209 = vector.load %arg6[%c0_22, %c0_23] : memref<1x8xf32, #tpu.memory_space<vmem>>, vector<1x8xf32>
    %210 = vector.broadcast %209 : vector<1x8xf32> to vector<16x8xf32>
    %211 = arith.addf %200, %210 : vector<16x8xf32>
    %212 = vector.shape_cast %211 : vector<16x8xf32> to vector<1x1x4x4x8xf32>
    %213 = arith.truncf %212 : vector<1x1x4x4x8xf32> to vector<1x1x4x4x8xbf16>
    %c0_24 = arith.constant 0 : index
    %c0_25 = arith.constant 0 : index
    %c0_26 = arith.constant 0 : index
    %c0_27 = arith.constant 0 : index
    %c0_28 = arith.constant 0 : index
    %214 = vector.load %arg7[%c0_24, %c0_25, %c0_26, %c0_27, %c0_28] : memref<1x1x4x4x8xbf16, #tpu.memory_space<vmem>>, vector<1x1x4x4x8xbf16>
    tpu.vector_store %arg7[%c0_24, %c0_25, %c0_26, %c0_27, %c0_28], %213 {strides = array<i32>} : memref<1x1x4x4x8xbf16, #tpu.memory_space<vmem>>, vector<1x1x4x4x8xbf16>,
    return
  }
  func.func @transform_0(%arg0: i32, %arg1: i32) -> (i32, i32, i32, i32, i32) {
    %c2_i32 = arith.constant 2 : i32
    %0 = arith.muli %arg1, %c2_i32 : i32
    %c0_i32 = arith.constant 0 : i32
    %1 = arith.addi %0, %c0_i32 : i32
    %c0_i32_0 = arith.constant 0 : i32
    %c0_i32_1 = arith.constant 0 : i32
    %c0_i32_2 = arith.constant 0 : i32
    %c0_i32_3 = arith.constant 0 : i32
    return %arg0, %1, %c0_i32_0, %c0_i32_1, %c0_i32_2 : i32, i32, i32, i32, i32
  }
  func.func @transform_1(%arg0: i32, %arg1: i32) -> (i32, i32, i32, i32, i32) {
    %c2_i32 = arith.constant 2 : i32
    %0 = arith.muli %arg1, %c2_i32 : i32
    %c1_i32 = arith.constant 1 : i32
    %1 = arith.addi %0, %c1_i32 : i32
    %c0_i32 = arith.constant 0 : i32
    %c0_i32_0 = arith.constant 0 : i32
    %c0_i32_1 = arith.constant 0 : i32
    %c0_i32_2 = arith.constant 0 : i32
    return %arg0, %1, %c0_i32, %c0_i32_0, %c0_i32_1 : i32, i32, i32, i32, i32
  }
  func.func @transform_2(%arg0: i32, %arg1: i32) -> (i32, i32, i32, i32, i32) {
    %c2_i32 = arith.constant 2 : i32
    %0 = arith.muli %arg1, %c2_i32 : i32
    %c2_i32_0 = arith.constant 2 : i32
    %1 = arith.addi %0, %c2_i32_0 : i32
    %c0_i32 = arith.constant 0 : i32
    %c0_i32_1 = arith.constant 0 : i32
    %c0_i32_2 = arith.constant 0 : i32
    %c0_i32_3 = arith.constant 0 : i32
    return %arg0, %1, %c0_i32, %c0_i32_1, %c0_i32_2 : i32, i32, i32, i32, i32
  }
  func.func @transform_3(%arg0: i32, %arg1: i32) -> (i32, i32) {
    %c0_i32 = arith.constant 0 : i32
    %c0_i32_0 = arith.constant 0 : i32
    %c0_i32_1 = arith.constant 0 : i32
    return %c0_i32, %c0_i32_0 : i32, i32
  }
  func.func @transform_4(%arg0: i32, %arg1: i32) -> (i32, i32) {
    %c0_i32 = arith.constant 0 : i32
    %c0_i32_0 = arith.constant 0 : i32
    %c0_i32_1 = arith.constant 0 : i32
    return %c0_i32, %c0_i32_0 : i32, i32
  }
  func.func @transform_5(%arg0: i32, %arg1: i32) -> (i32, i32, i32, i32, i32) {
    %c0_i32 = arith.constant 0 : i32
    %c0_i32_0 = arith.constant 0 : i32
    %c0_i32_1 = arith.constant 0 : i32
    %c0_i32_2 = arith.constant 0 : i32
    return %arg0, %arg1, %c0_i32, %c0_i32_0, %c0_i32_1 : i32, i32, i32, i32, i32
  }
  func.func @transform_6(%arg0: i32, %arg1: i32) -> (i32, i32, i32, i32) {
    %c0_i32 = arith.constant 0 : i32
    %c0_i32_0 = arith.constant 0 : i32
    %c0_i32_1 = arith.constant 0 : i32
    return %arg0, %arg1, %c0_i32, %c0_i32_0 : i32, i32, i32, i32
  }
}

module attributes {stable_mosaic.version = 11 : i64} {
  func.func @_conv2_kernel(%arg0: i32, %arg1: i32, %arg2: memref<1x1x4x4x8xbf16, #tpu.memory_space<vmem>>, %arg3: memref<1x1x4x4x8xbf16, #tpu.memory_space<vmem>>, %arg4: memref<1x1x4x4x8xbf16, #tpu.memory_space<vmem>>, %arg5: memref<1x1x8xf32, #tpu.memory_space<vmem>>, %arg6: memref<1x1x8xf32, #tpu.memory_space<vmem>>, %arg7: memref<216x8xbf16, #tpu.memory_space<vmem>>, %arg8: memref<1x8xf32, #tpu.memory_space<vmem>>, %arg9: memref<1x1x4x4x8xbf16, #tpu.memory_space<vmem>>, %arg10: memref<1x1x2x8xf32, #tpu.memory_space<vmem>>) attributes {dimension_semantics = [#tpu.dimension_semantics<parallel>, #tpu.dimension_semantics<parallel>], iteration_bounds = array<i64: 2, 4>, scalar_prefetch = 0 : i64, scratch_operands = 0 : i64, tpu.core_type = #tpu.core_type<tc>, window_params = [{transform_indices = @transform_0, window_bounds = array<i64: 1, 1, 4, 4, 8>}, {transform_indices = @transform_1, window_bounds = array<i64: 1, 1, 4, 4, 8>}, {transform_indices = @transform_2, window_bounds = array<i64: 1, 1, 4, 4, 8>}, {transform_indices = @transform_3, window_bounds = array<i64: 1, 1, 8>}, {transform_indices = @transform_4, window_bounds = array<i64: 1, 1, 8>}, {pipeline_mode = #tpu.pipeline_mode<synchronous>, transform_indices = @transform_5, window_bounds = array<i64: 216, 8>}, {pipeline_mode = #tpu.pipeline_mode<synchronous>, transform_indices = @transform_6, window_bounds = array<i64: 1, 8>}, {transform_indices = @transform_7, window_bounds = array<i64: 1, 1, 4, 4, 8>}, {transform_indices = @transform_8, window_bounds = array<i64: 1, 1, 2, 8>}]} {
    %c0 = arith.constant 0 : index
    %c0_0 = arith.constant 0 : index
    %c0_1 = arith.constant 0 : index
    %0 = vector.load %arg5[%c0, %c0_0, %c0_1] : memref<1x1x8xf32, #tpu.memory_space<vmem>>, vector<1x1x8xf32>
    %c0_2 = arith.constant 0 : index
    %c0_3 = arith.constant 0 : index
    %c0_4 = arith.constant 0 : index
    %1 = vector.load %arg6[%c0_2, %c0_3, %c0_4] : memref<1x1x8xf32, #tpu.memory_space<vmem>>, vector<1x1x8xf32>
    %c0_5 = arith.constant 0 : index
    %c0_6 = arith.constant 0 : index
    %c0_7 = arith.constant 0 : index
    %c0_8 = arith.constant 0 : index
    %c0_9 = arith.constant 0 : index
    %2 = vector.load %arg2[%c0_5, %c0_6, %c0_7, %c0_8, %c0_9] : memref<1x1x4x4x8xbf16, #tpu.memory_space<vmem>>, vector<1x1x4x4x8xbf16>
    %3 = vector.shape_cast %2 : vector<1x1x4x4x8xbf16> to vector<4x4x8xbf16>
    %4 = arith.extf %3 : vector<4x4x8xbf16> to vector<4x4x8xf32>
    %5 = vector.broadcast %0 : vector<1x1x8xf32> to vector<4x4x8xf32>
    %6 = arith.subf %4, %5 : vector<4x4x8xf32>
    %7 = vector.broadcast %1 : vector<1x1x8xf32> to vector<4x4x8xf32>
    %8 = arith.mulf %6, %7 : vector<4x4x8xf32>
    %cst = arith.constant 0.000000e+00 : f32
    %9 = vector.broadcast %cst : f32 to vector<4x4x8xf32>
    %10 = arith.cmpf oge, %8, %9 : vector<4x4x8xf32>
    %cst_10 = arith.constant 2.000000e-01 : f32
    %11 = vector.broadcast %cst_10 : f32 to vector<4x4x8xf32>
    %12 = arith.mulf %11, %8 : vector<4x4x8xf32>
    %13 = arith.select %10, %8, %12 : vector<4x4x8xi1>, vector<4x4x8xf32>
    %c0_i32 = arith.constant 0 : i32
    %14 = arith.cmpi sgt, %arg1, %c0_i32 : i32
    %cst_11 = arith.constant 0.000000e+00 : f32
    %15 = vector.broadcast %cst_11 : f32 to vector<4x4x8xf32>
    %16 = arith.select %14, %13, %15 : vector<4x4x8xf32>
    %17 = arith.truncf %16 : vector<4x4x8xf32> to vector<4x4x8xbf16>
    %cst_12 = arith.constant 0.000000e+00 : bf16
    %18 = vector.broadcast %cst_12 : bf16 to vector<1x4x8xbf16>
    %19 = tpu.concatenate %18, %17, %18 in 0 : vector<1x4x8xbf16>, vector<4x4x8xbf16>, vector<1x4x8xbf16> -> vector<6x4x8xbf16>
    %cst_13 = arith.constant 0.000000e+00 : bf16
    %20 = vector.broadcast %cst_13 : bf16 to vector<6x1x8xbf16>
    %21 = tpu.concatenate %20, %19, %20 in 1 : vector<6x1x8xbf16>, vector<6x4x8xbf16>, vector<6x1x8xbf16> -> vector<6x6x8xbf16>
    %22 = vector.extract_strided_slice %21 {offsets = [0, 0, 0], sizes = [4, 4, 8], strides = [1, 1, 1]} : vector<6x6x8xbf16> to vector<4x4x8xbf16>
    %23 = vector.extract_strided_slice %21 {offsets = [0, 1, 0], sizes = [4, 4, 8], strides = [1, 1, 1]} : vector<6x6x8xbf16> to vector<4x4x8xbf16>
    %24 = vector.extract_strided_slice %21 {offsets = [0, 2, 0], sizes = [4, 4, 8], strides = [1, 1, 1]} : vector<6x6x8xbf16> to vector<4x4x8xbf16>
    %25 = vector.extract_strided_slice %21 {offsets = [1, 0, 0], sizes = [4, 4, 8], strides = [1, 1, 1]} : vector<6x6x8xbf16> to vector<4x4x8xbf16>
    %26 = vector.extract_strided_slice %21 {offsets = [1, 1, 0], sizes = [4, 4, 8], strides = [1, 1, 1]} : vector<6x6x8xbf16> to vector<4x4x8xbf16>
    %27 = vector.extract_strided_slice %21 {offsets = [1, 2, 0], sizes = [4, 4, 8], strides = [1, 1, 1]} : vector<6x6x8xbf16> to vector<4x4x8xbf16>
    %28 = vector.extract_strided_slice %21 {offsets = [2, 0, 0], sizes = [4, 4, 8], strides = [1, 1, 1]} : vector<6x6x8xbf16> to vector<4x4x8xbf16>
    %29 = vector.extract_strided_slice %21 {offsets = [2, 1, 0], sizes = [4, 4, 8], strides = [1, 1, 1]} : vector<6x6x8xbf16> to vector<4x4x8xbf16>
    %30 = vector.extract_strided_slice %21 {offsets = [2, 2, 0], sizes = [4, 4, 8], strides = [1, 1, 1]} : vector<6x6x8xbf16> to vector<4x4x8xbf16>
    %c0_14 = arith.constant 0 : index
    %c0_15 = arith.constant 0 : index
    %c0_16 = arith.constant 0 : index
    %c0_17 = arith.constant 0 : index
    %c0_18 = arith.constant 0 : index
    %31 = vector.load %arg3[%c0_14, %c0_15, %c0_16, %c0_17, %c0_18] : memref<1x1x4x4x8xbf16, #tpu.memory_space<vmem>>, vector<1x1x4x4x8xbf16>
    %32 = vector.shape_cast %31 : vector<1x1x4x4x8xbf16> to vector<4x4x8xbf16>
    %33 = arith.extf %32 : vector<4x4x8xbf16> to vector<4x4x8xf32>
    %34 = vector.broadcast %0 : vector<1x1x8xf32> to vector<4x4x8xf32>
    %35 = arith.subf %33, %34 : vector<4x4x8xf32>
    %36 = vector.broadcast %1 : vector<1x1x8xf32> to vector<4x4x8xf32>
    %37 = arith.mulf %35, %36 : vector<4x4x8xf32>
    %cst_19 = arith.constant 0.000000e+00 : f32
    %38 = vector.broadcast %cst_19 : f32 to vector<4x4x8xf32>
    %39 = arith.cmpf oge, %37, %38 : vector<4x4x8xf32>
    %cst_20 = arith.constant 2.000000e-01 : f32
    %40 = vector.broadcast %cst_20 : f32 to vector<4x4x8xf32>
    %41 = arith.mulf %40, %37 : vector<4x4x8xf32>
    %42 = arith.select %39, %37, %41 : vector<4x4x8xi1>, vector<4x4x8xf32>
    %43 = arith.truncf %42 : vector<4x4x8xf32> to vector<4x4x8xbf16>
    %cst_21 = arith.constant 0.000000e+00 : bf16
    %44 = vector.broadcast %cst_21 : bf16 to vector<1x4x8xbf16>
    %45 = tpu.concatenate %44, %43, %44 in 0 : vector<1x4x8xbf16>, vector<4x4x8xbf16>, vector<1x4x8xbf16> -> vector<6x4x8xbf16>
    %cst_22 = arith.constant 0.000000e+00 : bf16
    %46 = vector.broadcast %cst_22 : bf16 to vector<6x1x8xbf16>
    %47 = tpu.concatenate %46, %45, %46 in 1 : vector<6x1x8xbf16>, vector<6x4x8xbf16>, vector<6x1x8xbf16> -> vector<6x6x8xbf16>
    %48 = vector.extract_strided_slice %47 {offsets = [0, 0, 0], sizes = [4, 4, 8], strides = [1, 1, 1]} : vector<6x6x8xbf16> to vector<4x4x8xbf16>
    %49 = vector.extract_strided_slice %47 {offsets = [0, 1, 0], sizes = [4, 4, 8], strides = [1, 1, 1]} : vector<6x6x8xbf16> to vector<4x4x8xbf16>
    %50 = vector.extract_strided_slice %47 {offsets = [0, 2, 0], sizes = [4, 4, 8], strides = [1, 1, 1]} : vector<6x6x8xbf16> to vector<4x4x8xbf16>
    %51 = vector.extract_strided_slice %47 {offsets = [1, 0, 0], sizes = [4, 4, 8], strides = [1, 1, 1]} : vector<6x6x8xbf16> to vector<4x4x8xbf16>
    %52 = vector.extract_strided_slice %47 {offsets = [1, 1, 0], sizes = [4, 4, 8], strides = [1, 1, 1]} : vector<6x6x8xbf16> to vector<4x4x8xbf16>
    %53 = vector.extract_strided_slice %47 {offsets = [1, 2, 0], sizes = [4, 4, 8], strides = [1, 1, 1]} : vector<6x6x8xbf16> to vector<4x4x8xbf16>
    %54 = vector.extract_strided_slice %47 {offsets = [2, 0, 0], sizes = [4, 4, 8], strides = [1, 1, 1]} : vector<6x6x8xbf16> to vector<4x4x8xbf16>
    %55 = vector.extract_strided_slice %47 {offsets = [2, 1, 0], sizes = [4, 4, 8], strides = [1, 1, 1]} : vector<6x6x8xbf16> to vector<4x4x8xbf16>
    %56 = vector.extract_strided_slice %47 {offsets = [2, 2, 0], sizes = [4, 4, 8], strides = [1, 1, 1]} : vector<6x6x8xbf16> to vector<4x4x8xbf16>
    %c0_23 = arith.constant 0 : index
    %c0_24 = arith.constant 0 : index
    %c0_25 = arith.constant 0 : index
    %c0_26 = arith.constant 0 : index
    %c0_27 = arith.constant 0 : index
    %57 = vector.load %arg4[%c0_23, %c0_24, %c0_25, %c0_26, %c0_27] : memref<1x1x4x4x8xbf16, #tpu.memory_space<vmem>>, vector<1x1x4x4x8xbf16>
    %58 = vector.shape_cast %57 : vector<1x1x4x4x8xbf16> to vector<4x4x8xbf16>
    %59 = arith.extf %58 : vector<4x4x8xbf16> to vector<4x4x8xf32>
    %60 = vector.broadcast %0 : vector<1x1x8xf32> to vector<4x4x8xf32>
    %61 = arith.subf %59, %60 : vector<4x4x8xf32>
    %62 = vector.broadcast %1 : vector<1x1x8xf32> to vector<4x4x8xf32>
    %63 = arith.mulf %61, %62 : vector<4x4x8xf32>
    %cst_28 = arith.constant 0.000000e+00 : f32
    %64 = vector.broadcast %cst_28 : f32 to vector<4x4x8xf32>
    %65 = arith.cmpf oge, %63, %64 : vector<4x4x8xf32>
    %cst_29 = arith.constant 2.000000e-01 : f32
    %66 = vector.broadcast %cst_29 : f32 to vector<4x4x8xf32>
    %67 = arith.mulf %66, %63 : vector<4x4x8xf32>
    %68 = arith.select %65, %63, %67 : vector<4x4x8xi1>, vector<4x4x8xf32>
    %c1_i32 = arith.constant 1 : i32
    %69 = arith.addi %arg1, %c1_i32 : i32
    %c4_i32 = arith.constant 4 : i32
    %70 = arith.cmpi slt, %69, %c4_i32 : i32
    %cst_30 = arith.constant 0.000000e+00 : f32
    %71 = vector.broadcast %cst_30 : f32 to vector<4x4x8xf32>
    %72 = arith.select %70, %68, %71 : vector<4x4x8xf32>
    %73 = arith.truncf %72 : vector<4x4x8xf32> to vector<4x4x8xbf16>
    %cst_31 = arith.constant 0.000000e+00 : bf16
    %74 = vector.broadcast %cst_31 : bf16 to vector<1x4x8xbf16>
    %75 = tpu.concatenate %74, %73, %74 in 0 : vector<1x4x8xbf16>, vector<4x4x8xbf16>, vector<1x4x8xbf16> -> vector<6x4x8xbf16>
    %cst_32 = arith.constant 0.000000e+00 : bf16
    %76 = vector.broadcast %cst_32 : bf16 to vector<6x1x8xbf16>
    %77 = tpu.concatenate %76, %75, %76 in 1 : vector<6x1x8xbf16>, vector<6x4x8xbf16>, vector<6x1x8xbf16> -> vector<6x6x8xbf16>
    %78 = vector.extract_strided_slice %77 {offsets = [0, 0, 0], sizes = [4, 4, 8], strides = [1, 1, 1]} : vector<6x6x8xbf16> to vector<4x4x8xbf16>
    %79 = vector.extract_strided_slice %77 {offsets = [0, 1, 0], sizes = [4, 4, 8], strides = [1, 1, 1]} : vector<6x6x8xbf16> to vector<4x4x8xbf16>
    %80 = vector.extract_strided_slice %77 {offsets = [0, 2, 0], sizes = [4, 4, 8], strides = [1, 1, 1]} : vector<6x6x8xbf16> to vector<4x4x8xbf16>
    %81 = vector.extract_strided_slice %77 {offsets = [1, 0, 0], sizes = [4, 4, 8], strides = [1, 1, 1]} : vector<6x6x8xbf16> to vector<4x4x8xbf16>
    %82 = vector.extract_strided_slice %77 {offsets = [1, 1, 0], sizes = [4, 4, 8], strides = [1, 1, 1]} : vector<6x6x8xbf16> to vector<4x4x8xbf16>
    %83 = vector.extract_strided_slice %77 {offsets = [1, 2, 0], sizes = [4, 4, 8], strides = [1, 1, 1]} : vector<6x6x8xbf16> to vector<4x4x8xbf16>
    %84 = vector.extract_strided_slice %77 {offsets = [2, 0, 0], sizes = [4, 4, 8], strides = [1, 1, 1]} : vector<6x6x8xbf16> to vector<4x4x8xbf16>
    %85 = vector.extract_strided_slice %77 {offsets = [2, 1, 0], sizes = [4, 4, 8], strides = [1, 1, 1]} : vector<6x6x8xbf16> to vector<4x4x8xbf16>
    %86 = vector.extract_strided_slice %77 {offsets = [2, 2, 0], sizes = [4, 4, 8], strides = [1, 1, 1]} : vector<6x6x8xbf16> to vector<4x4x8xbf16>
    %87 = tpu.concatenate %22, %23, %24, %25, %26, %27, %28, %29, %30, %48, %49, %50, %51, %52, %53, %54 in 2 : vector<4x4x8xbf16>, vector<4x4x8xbf16>, vector<4x4x8xbf16>, vector<4x4x8xbf16>, vector<4x4x8xbf16>, vector<4x4x8xbf16>, vector<4x4x8xbf16>, vector<4x4x8xbf16>, vector<4x4x8xbf16>, vector<4x4x8xbf16>, vector<4x4x8xbf16>, vector<4x4x8xbf16>, vector<4x4x8xbf16>, vector<4x4x8xbf16>, vector<4x4x8xbf16>, vector<4x4x8xbf16> -> vector<4x4x128xbf16>
    %88 = tpu.concatenate %55, %56, %78, %79, %80, %81, %82, %83, %84, %85, %86 in 2 : vector<4x4x8xbf16>, vector<4x4x8xbf16>, vector<4x4x8xbf16>, vector<4x4x8xbf16>, vector<4x4x8xbf16>, vector<4x4x8xbf16>, vector<4x4x8xbf16>, vector<4x4x8xbf16>, vector<4x4x8xbf16>, vector<4x4x8xbf16>, vector<4x4x8xbf16> -> vector<4x4x88xbf16>
    %89 = tpu.concatenate %87, %88 in 2 : vector<4x4x128xbf16>, vector<4x4x88xbf16> -> vector<4x4x216xbf16>
    %90 = vector.shape_cast %89 : vector<4x4x216xbf16> to vector<16x216xbf16>
    %c0_33 = arith.constant 0 : index
    %c0_34 = arith.constant 0 : index
    %91 = vector.load %arg7[%c0_33, %c0_34] : memref<216x8xbf16, #tpu.memory_space<vmem>>, vector<216x8xbf16>
    %cst_35 = arith.constant dense<0.000000e+00> : vector<16x8xf32>
    %92 = tpu.matmul %90, %91, %cst_35 {dimension_numbers = #tpu.dot_dimension_numbers<[1], [0], [0], [1], [0, 0, 1, 1], [], []>} : vector<16x216xbf16>, vector<216x8xbf16>, vector<16x8xf32> -> vector<16x8xf32>
    %cst_36 = arith.constant dense<0.000000e+00> : vector<8xf32>
    %93 = vector.multi_reduction <add>, %92, %cst_36 [0] : vector<16x8xf32> to vector<8xf32>
    %94 = vector.shape_cast %93 : vector<8xf32> to vector<1x8xf32>
    %95 = arith.mulf %92, %92 : vector<16x8xf32>
    %cst_37 = arith.constant dense<0.000000e+00> : vector<8xf32>
    %96 = vector.multi_reduction <add>, %95, %cst_37 [0] : vector<16x8xf32> to vector<8xf32>
    %97 = vector.shape_cast %96 : vector<8xf32> to vector<1x8xf32>
    %98 = tpu.concatenate %94, %97 in 0 : vector<1x8xf32>, vector<1x8xf32> -> vector<2x8xf32>
    %99 = vector.shape_cast %98 : vector<2x8xf32> to vector<1x1x2x8xf32>
    %c0_38 = arith.constant 0 : index
    %c0_39 = arith.constant 0 : index
    %c0_40 = arith.constant 0 : index
    %c0_41 = arith.constant 0 : index
    %100 = vector.load %arg10[%c0_38, %c0_39, %c0_40, %c0_41] : memref<1x1x2x8xf32, #tpu.memory_space<vmem>>, vector<1x1x2x8xf32>
    tpu.vector_store %arg10[%c0_38, %c0_39, %c0_40, %c0_41], %99 {strides = array<i32>} : memref<1x1x2x8xf32, #tpu.memory_space<vmem>>, vector<1x1x2x8xf32>,
    %c0_42 = arith.constant 0 : index
    %c0_43 = arith.constant 0 : index
    %101 = vector.load %arg8[%c0_42, %c0_43] : memref<1x8xf32, #tpu.memory_space<vmem>>, vector<1x8xf32>
    %102 = vector.broadcast %101 : vector<1x8xf32> to vector<16x8xf32>
    %103 = arith.addf %92, %102 : vector<16x8xf32>
    %104 = vector.shape_cast %103 : vector<16x8xf32> to vector<1x1x4x4x8xf32>
    %105 = arith.truncf %104 : vector<1x1x4x4x8xf32> to vector<1x1x4x4x8xbf16>
    %c0_44 = arith.constant 0 : index
    %c0_45 = arith.constant 0 : index
    %c0_46 = arith.constant 0 : index
    %c0_47 = arith.constant 0 : index
    %c0_48 = arith.constant 0 : index
    %106 = vector.load %arg9[%c0_44, %c0_45, %c0_46, %c0_47, %c0_48] : memref<1x1x4x4x8xbf16, #tpu.memory_space<vmem>>, vector<1x1x4x4x8xbf16>
    tpu.vector_store %arg9[%c0_44, %c0_45, %c0_46, %c0_47, %c0_48], %105 {strides = array<i32>} : memref<1x1x4x4x8xbf16, #tpu.memory_space<vmem>>, vector<1x1x4x4x8xbf16>,
    return
  }
  func.func @transform_0(%arg0: i32, %arg1: i32) -> (i32, i32, i32, i32, i32) {
    %c1_i32 = arith.constant 1 : i32
    %0 = arith.subi %arg1, %c1_i32 : i32
    %c0_i32 = arith.constant 0 : i32
    %1 = arith.maxsi %0, %c0_i32 : i32
    %c0_i32_0 = arith.constant 0 : i32
    %c0_i32_1 = arith.constant 0 : i32
    %c0_i32_2 = arith.constant 0 : i32
    %c0_i32_3 = arith.constant 0 : i32
    return %arg0, %1, %c0_i32_0, %c0_i32_1, %c0_i32_2 : i32, i32, i32, i32, i32
  }
  func.func @transform_1(%arg0: i32, %arg1: i32) -> (i32, i32, i32, i32, i32) {
    %c0_i32 = arith.constant 0 : i32
    %c0_i32_0 = arith.constant 0 : i32
    %c0_i32_1 = arith.constant 0 : i32
    %c0_i32_2 = arith.constant 0 : i32
    return %arg0, %arg1, %c0_i32, %c0_i32_0, %c0_i32_1 : i32, i32, i32, i32, i32
  }
  func.func @transform_2(%arg0: i32, %arg1: i32) -> (i32, i32, i32, i32, i32) {
    %c1_i32 = arith.constant 1 : i32
    %0 = arith.addi %arg1, %c1_i32 : i32
    %c3_i32 = arith.constant 3 : i32
    %1 = arith.minsi %0, %c3_i32 : i32
    %c0_i32 = arith.constant 0 : i32
    %c0_i32_0 = arith.constant 0 : i32
    %c0_i32_1 = arith.constant 0 : i32
    %c0_i32_2 = arith.constant 0 : i32
    return %arg0, %1, %c0_i32, %c0_i32_0, %c0_i32_1 : i32, i32, i32, i32, i32
  }
  func.func @transform_3(%arg0: i32, %arg1: i32) -> (i32, i32, i32) {
    %c0_i32 = arith.constant 0 : i32
    %c0_i32_0 = arith.constant 0 : i32
    %c0_i32_1 = arith.constant 0 : i32
    return %arg0, %c0_i32, %c0_i32_0 : i32, i32, i32
  }
  func.func @transform_4(%arg0: i32, %arg1: i32) -> (i32, i32, i32) {
    %c0_i32 = arith.constant 0 : i32
    %c0_i32_0 = arith.constant 0 : i32
    %c0_i32_1 = arith.constant 0 : i32
    return %arg0, %c0_i32, %c0_i32_0 : i32, i32, i32
  }
  func.func @transform_5(%arg0: i32, %arg1: i32) -> (i32, i32) {
    %c0_i32 = arith.constant 0 : i32
    %c0_i32_0 = arith.constant 0 : i32
    %c0_i32_1 = arith.constant 0 : i32
    return %c0_i32, %c0_i32_0 : i32, i32
  }
  func.func @transform_6(%arg0: i32, %arg1: i32) -> (i32, i32) {
    %c0_i32 = arith.constant 0 : i32
    %c0_i32_0 = arith.constant 0 : i32
    %c0_i32_1 = arith.constant 0 : i32
    return %c0_i32, %c0_i32_0 : i32, i32
  }
  func.func @transform_7(%arg0: i32, %arg1: i32) -> (i32, i32, i32, i32, i32) {
    %c0_i32 = arith.constant 0 : i32
    %c0_i32_0 = arith.constant 0 : i32
    %c0_i32_1 = arith.constant 0 : i32
    %c0_i32_2 = arith.constant 0 : i32
    return %arg0, %arg1, %c0_i32, %c0_i32_0, %c0_i32_1 : i32, i32, i32, i32, i32
  }
  func.func @transform_8(%arg0: i32, %arg1: i32) -> (i32, i32, i32, i32) {
    %c0_i32 = arith.constant 0 : i32
    %c0_i32_0 = arith.constant 0 : i32
    %c0_i32_1 = arith.constant 0 : i32
    return %arg0, %arg1, %c0_i32, %c0_i32_0 : i32, i32, i32, i32
  }
}

module attributes {stable_mosaic.version = 11 : i64} {
  func.func @_finalize_kernel(%arg0: i32, %arg1: i32, %arg2: memref<1x1x4x4x8xbf16, #tpu.memory_space<vmem>>, %arg3: memref<1x1x8xf32, #tpu.memory_space<vmem>>, %arg4: memref<1x1x8xf32, #tpu.memory_space<vmem>>, %arg5: memref<1x1x4x4x8xf32, #tpu.memory_space<vmem>>) attributes {dimension_semantics = [#tpu.dimension_semantics<parallel>, #tpu.dimension_semantics<parallel>], iteration_bounds = array<i64: 2, 4>, scalar_prefetch = 0 : i64, scratch_operands = 0 : i64, tpu.core_type = #tpu.core_type<tc>, window_params = [{transform_indices = @transform_0, window_bounds = array<i64: 1, 1, 4, 4, 8>}, {transform_indices = @transform_1, window_bounds = array<i64: 1, 1, 8>}, {transform_indices = @transform_2, window_bounds = array<i64: 1, 1, 8>}, {transform_indices = @transform_3, window_bounds = array<i64: 1, 1, 4, 4, 8>}]} {
    %c0 = arith.constant 0 : index
    %c0_0 = arith.constant 0 : index
    %c0_1 = arith.constant 0 : index
    %c0_2 = arith.constant 0 : index
    %c0_3 = arith.constant 0 : index
    %0 = vector.load %arg2[%c0, %c0_0, %c0_1, %c0_2, %c0_3] : memref<1x1x4x4x8xbf16, #tpu.memory_space<vmem>>, vector<1x1x4x4x8xbf16>
    %1 = arith.extf %0 : vector<1x1x4x4x8xbf16> to vector<1x1x4x4x8xf32>
    %c0_4 = arith.constant 0 : index
    %c0_5 = arith.constant 0 : index
    %c0_6 = arith.constant 0 : index
    %2 = vector.load %arg3[%c0_4, %c0_5, %c0_6] : memref<1x1x8xf32, #tpu.memory_space<vmem>>, vector<1x1x8xf32>
    %3 = vector.shape_cast %2 : vector<1x1x8xf32> to vector<1x1x1x1x8xf32>
    %c0_7 = arith.constant 0 : index
    %c0_8 = arith.constant 0 : index
    %c0_9 = arith.constant 0 : index
    %4 = vector.load %arg4[%c0_7, %c0_8, %c0_9] : memref<1x1x8xf32, #tpu.memory_space<vmem>>, vector<1x1x8xf32>
    %5 = vector.shape_cast %4 : vector<1x1x8xf32> to vector<1x1x1x1x8xf32>
    %6 = vector.broadcast %3 : vector<1x1x1x1x8xf32> to vector<1x1x4x4x8xf32>
    %7 = arith.subf %1, %6 : vector<1x1x4x4x8xf32>
    %8 = vector.broadcast %5 : vector<1x1x1x1x8xf32> to vector<1x1x4x4x8xf32>
    %9 = arith.mulf %7, %8 : vector<1x1x4x4x8xf32>
    %cst = arith.constant 0.000000e+00 : f32
    %10 = vector.broadcast %cst : f32 to vector<1x1x4x4x8xf32>
    %11 = arith.cmpf oge, %9, %10 : vector<1x1x4x4x8xf32>
    %cst_10 = arith.constant 2.000000e-01 : f32
    %12 = vector.broadcast %cst_10 : f32 to vector<1x1x4x4x8xf32>
    %13 = arith.mulf %12, %9 : vector<1x1x4x4x8xf32>
    %14 = arith.select %11, %9, %13 : vector<1x1x4x4x8xi1>, vector<1x1x4x4x8xf32>
    %c0_11 = arith.constant 0 : index
    %c0_12 = arith.constant 0 : index
    %c0_13 = arith.constant 0 : index
    %c0_14 = arith.constant 0 : index
    %c0_15 = arith.constant 0 : index
    %15 = vector.load %arg5[%c0_11, %c0_12, %c0_13, %c0_14, %c0_15] : memref<1x1x4x4x8xf32, #tpu.memory_space<vmem>>, vector<1x1x4x4x8xf32>
    tpu.vector_store %arg5[%c0_11, %c0_12, %c0_13, %c0_14, %c0_15], %14 {strides = array<i32>} : memref<1x1x4x4x8xf32, #tpu.memory_space<vmem>>, vector<1x1x4x4x8xf32>,
    return
  }
  func.func @transform_0(%arg0: i32, %arg1: i32) -> (i32, i32, i32, i32, i32) {
    %c0_i32 = arith.constant 0 : i32
    %c0_i32_0 = arith.constant 0 : i32
    %c0_i32_1 = arith.constant 0 : i32
    %c0_i32_2 = arith.constant 0 : i32
    return %arg0, %arg1, %c0_i32, %c0_i32_0, %c0_i32_1 : i32, i32, i32, i32, i32
  }
  func.func @transform_1(%arg0: i32, %arg1: i32) -> (i32, i32, i32) {
    %c0_i32 = arith.constant 0 : i32
    %c0_i32_0 = arith.constant 0 : i32
    %c0_i32_1 = arith.constant 0 : i32
    return %arg0, %c0_i32, %c0_i32_0 : i32, i32, i32
  }
  func.func @transform_2(%arg0: i32, %arg1: i32) -> (i32, i32, i32) {
    %c0_i32 = arith.constant 0 : i32
    %c0_i32_0 = arith.constant 0 : i32
    %c0_i32_1 = arith.constant 0 : i32
    return %arg0, %c0_i32, %c0_i32_0 : i32, i32, i32
  }
  func.func @transform_3(%arg0: i32, %arg1: i32) -> (i32, i32, i32, i32, i32) {
    %c0_i32 = arith.constant 0 : i32
    %c0_i32_0 = arith.constant 0 : i32
    %c0_i32_1 = arith.constant 0 : i32
    %c0_i32_2 = arith.constant 0 : i32
    return %arg0, %arg1, %c0_i32, %c0_i32_0, %c0_i32_1 : i32, i32, i32, i32, i32
  }
}

</mosaic_0001>

<llo_original>
// kernel: down_block_forward.3
$region0: #{down_block_forward.3}
  #allocation0 [shape = 'u32[]', space=smem, size = 0x4, offset = 0x4, fixed_abs, tag = 'smem constant byte address 0x4 - core index']
  #allocation1 [shape = 'u32[144,128]{1,0:T(1,128)}', space=vmem, size = 0x12000, scoped, tag = 'internal scratch']
  %s0 = inlined_call_operand.vmem [shape: bf16[2,10,20,5,4], index: 0, kind: input, shape index: {}, may-alias: {0,1,2}]
  %s1 = inlined_call_operand.vmem [shape: bf16[2,10,20,5,4], index: 1, kind: input, shape index: {}, may-alias: {0,1,2}]
  %s2 = inlined_call_operand.vmem [shape: bf16[2,10,20,5,4], index: 2, kind: input, shape index: {}, may-alias: {0,1,2}]
  %s3 = inlined_call_operand.vmem [shape: bf16[108,8], index: 3, kind: input, shape index: {}]
  %s4 = inlined_call_operand.vmem [shape: f32[1,8], index: 4, kind: input, shape index: {}]
  %s5 = inlined_call_operand.vmem [shape: bf16[2,4,4,4,8], index: 5, kind: output, shape index: {0}]
  %s6 = inlined_call_operand.vmem [shape: f32[2,4,2,8], index: 6, kind: output, shape index: {1}]
  %7 = xla_tuple %s5, %s6
  %s8 = sld [smem:[#allocation0]]
  $region61: #{down_block_forward.3} parent=0
    _
  %s10 = ssub.s32 1, %s8
  %s11 = scalar_select 0, %s10, %s8
  loop: start=0, step=1, limit=10
  $region2: #{down_block_forward.3} parent=0 // loop_pre_header
    _
  $region3: #{down_block_forward.3} parent=0 // loop_header
    %s13 = sphi 0, %s17
    %p14 = scmp.ge.s32.totalorder %s13, 10
    %s20 = sphi 0, %s32
    %s21 = sphi 0, %s28
    %s22 = sphi 0, %s20
    %s23 = sphi 0, %s21
    %s24 = sphi 0, %s22
    %s25 = sphi 0, %s23
    %s39 = sphi 0, %s41
    %s42 = sphi 0, %s39
    %s43 = sphi 0, %s42
    %s59 = sphi 0, %s43
    %s71 = sphi 0, %s73
    %s74 = sphi 0, %s71
    %s75 = sphi 0, %s74
    %s91 = sphi 0, %s75
    %s103 = sphi 0, %s105
    %s106 = sphi 0, %s103
    %s107 = sphi 0, %s106
    %s123 = sphi 0, %s107
    %s127 = sphi 0, %s127
    %s129 = sphi 0, %s127
    %s130 = sphi 0, %s129
    %s144 = sphi 0, %s130
    %s148 = sphi 0, %s148
    %s150 = sphi 0, %s148
    %s151 = sphi 0, %s150
    %s165 = sphi 0, %s151
    %s173 = sphi 0, %s175
    %s176 = sphi 0, %s173
    %s177 = sphi 0, %s176
    %s193 = sphi 0, %s177
    %s201 = sphi 0, %s203
    %s204 = sphi 0, %s201
    %s205 = sphi 0, %s204
    %s221 = sphi 0, %s205
  $region4: #{down_block_forward.3} parent=0 // loop_header_branch
    %16 = sbr.rel (%p14) target = $region8
  $region5: #{down_block_forward.3} parent=0 // loop_body
    %s18 = ssub.s32 %s13, 1
    %s19 = ssub.s32 %s13, 2
    %s26 = sadd.s32 1, %s21
    %p27 = scmp.ge.s32.totalorder %s26, 4
    %s28 = scalar_select %p27, 0, %s26
    %s29 = sadd.s32 1, %s20
    %s30 = scalar_select %p27, %s29, %s20
    %p31 = scmp.ge.s32.totalorder %s30, 2
    %s32 = scalar_select %p31, 0, %s30
    %s33 = smul.u32 %s21, 2
    %s34 = smul.u32 %s28, 2
    %s35 = ssub.s32 %s20, %s32
    %s36 = ssub.s32 %s33, %s34
    %s37 = sor.u32 %s35, %s36
    %p38 = scmp.eq.s32.totalorder %s37, 0
    %s40 = sadd.s32 %s39, 1
    %s41 = scalar_select %p38, %s39, %s40
    %p44 = pneg %p38
    %p45 = scmp.eq.s32.totalorder %s13, 7
    %p46 = por %p44, %p45
    %p47 = scmp.ne.s32.totalorder %s39, %s42
    %p48 = scmp.eq.s32.totalorder %s13, 0
    %p49 = por %p47, %p48
    %p50 = scmp.ne.s32.totalorder %s39, %s42
    %p51 = scmp.eq.s32.totalorder %s18, 7
    %p52 = por %p50, %p51
    %p53 = scmp.ne.s32.totalorder %s42, %s43
    %p54 = scmp.eq.s32.totalorder %s18, 0
    %p55 = por %p53, %p54
    %p56 = scmp.ne.s32.totalorder %s42, %s43
    %p57 = scmp.eq.s32.totalorder %s19, 7
    %p58 = por %p56, %p57
    %p60 = scmp.ne.s32.totalorder %s43, %s59
    %p61 = scmp.eq.s32.totalorder %s19, 0
    %p62 = por %p60, %p61
    %s63 = smul.u32 %s21, 2
    %s64 = sadd.s32 %s63, 1
    %s65 = smul.u32 %s28, 2
    %s66 = sadd.s32 %s65, 1
    %s67 = ssub.s32 %s20, %s32
    %s68 = ssub.s32 %s64, %s66
    %s69 = sor.u32 %s67, %s68
    %p70 = scmp.eq.s32.totalorder %s69, 0
    %s72 = sadd.s32 %s71, 1
    %s73 = scalar_select %p70, %s71, %s72
    %p76 = pneg %p70
    %p77 = scmp.eq.s32.totalorder %s13, 7
    %p78 = por %p76, %p77
    %p79 = scmp.ne.s32.totalorder %s71, %s74
    %p80 = scmp.eq.s32.totalorder %s13, 0
    %p81 = por %p79, %p80
    %p82 = scmp.ne.s32.totalorder %s71, %s74
    %p83 = scmp.eq.s32.totalorder %s18, 7
    %p84 = por %p82, %p83
    %p85 = scmp.ne.s32.totalorder %s74, %s75
    %p86 = scmp.eq.s32.totalorder %s18, 0
    %p87 = por %p85, %p86
    %p88 = scmp.ne.s32.totalorder %s74, %s75
    %p89 = scmp.eq.s32.totalorder %s19, 7
    %p90 = por %p88, %p89
    %p92 = scmp.ne.s32.totalorder %s75, %s91
    %p93 = scmp.eq.s32.totalorder %s19, 0
    %p94 = por %p92, %p93
    %s95 = smul.u32 %s21, 2
    %s96 = sadd.s32 %s95, 2
    %s97 = smul.u32 %s28, 2
    %s98 = sadd.s32 %s97, 2
    %s99 = ssub.s32 %s20, %s32
    %s100 = ssub.s32 %s96, %s98
    %s101 = sor.u32 %s99, %s100
    %p102 = scmp.eq.s32.totalorder %s101, 0
    %s104 = sadd.s32 %s103, 1
    %s105 = scalar_select %p102, %s103, %s104
    %p108 = pneg %p102
    %p109 = scmp.eq.s32.totalorder %s13, 7
    %p110 = por %p108, %p109
    %p111 = scmp.ne.s32.totalorder %s103, %s106
    %p112 = scmp.eq.s32.totalorder %s13, 0
    %p113 = por %p111, %p112
    %p114 = scmp.ne.s32.totalorder %s103, %s106
    %p115 = scmp.eq.s32.totalorder %s18, 7
    %p116 = por %p114, %p115
    %p117 = scmp.ne.s32.totalorder %s106, %s107
    %p118 = scmp.eq.s32.totalorder %s18, 0
    %p119 = por %p117, %p118
    %p120 = scmp.ne.s32.totalorder %s106, %s107
    %p121 = scmp.eq.s32.totalorder %s19, 7
    %p122 = por %p120, %p121
    %p124 = scmp.ne.s32.totalorder %s107, %s123
    %p125 = scmp.eq.s32.totalorder %s19, 0
    %p126 = por %p124, %p125
    %s128 = sadd.s32 %s127, 1
    %p131 = scmp.eq.s32.totalorder %s13, 7
    %p132 = scmp.ne.s32.totalorder %s127, %s129
    %p133 = scmp.eq.s32.totalorder %s13, 0
    %p134 = por %p132, %p133
    %p135 = scmp.ne.s32.totalorder %s127, %s129
    %p136 = scmp.eq.s32.totalorder %s18, 7
    %p137 = por %p135, %p136
    %p138 = scmp.ne.s32.totalorder %s129, %s130
    %p139 = scmp.eq.s32.totalorder %s18, 0
    %p140 = por %p138, %p139
    %p141 = scmp.ne.s32.totalorder %s129, %s130
    %p142 = scmp.eq.s32.totalorder %s19, 7
    %p143 = por %p141, %p142
    %p145 = scmp.ne.s32.totalorder %s130, %s144
    %p146 = scmp.eq.s32.totalorder %s19, 0
    %p147 = por %p145, %p146
    %s149 = sadd.s32 %s148, 1
    %p152 = scmp.eq.s32.totalorder %s13, 7
    %p153 = scmp.ne.s32.totalorder %s148, %s150
    %p154 = scmp.eq.s32.totalorder %s13, 0
    %p155 = por %p153, %p154
    %p156 = scmp.ne.s32.totalorder %s148, %s150
    %p157 = scmp.eq.s32.totalorder %s18, 7
    %p158 = por %p156, %p157
    %p159 = scmp.ne.s32.totalorder %s150, %s151
    %p160 = scmp.eq.s32.totalorder %s18, 0
    %p161 = por %p159, %p160
    %p162 = scmp.ne.s32.totalorder %s150, %s151
    %p163 = scmp.eq.s32.totalorder %s19, 7
    %p164 = por %p162, %p163
    %p166 = scmp.ne.s32.totalorder %s151, %s165
    %p167 = scmp.eq.s32.totalorder %s19, 0
    %p168 = por %p166, %p167
    %s169 = ssub.s32 %s20, %s32
    %s170 = ssub.s32 %s21, %s28
    %s171 = sor.u32 %s169, %s170
    %p172 = scmp.eq.s32.totalorder %s171, 0
    %s174 = sadd.s32 %s173, 1
    %s175 = scalar_select %p172, %s173, %s174
    %p178 = pneg %p172
    %p179 = scmp.eq.s32.totalorder %s13, 7
    %p180 = por %p178, %p179
    %p181 = scmp.ne.s32.totalorder %s173, %s176
    %p182 = scmp.eq.s32.totalorder %s13, 0
    %p183 = por %p181, %p182
    %p184 = scmp.ne.s32.totalorder %s173, %s176
    %p185 = scmp.eq.s32.totalorder %s18, 7
    %p186 = por %p184, %p185
    %p187 = scmp.ne.s32.totalorder %s176, %s177
    %p188 = scmp.eq.s32.totalorder %s18, 0
    %p189 = por %p187, %p188
    %p190 = scmp.ne.s32.totalorder %s176, %s177
    %p191 = scmp.eq.s32.totalorder %s19, 7
    %p192 = por %p190, %p191
    %p194 = scmp.ne.s32.totalorder %s177, %s193
    %p195 = scmp.eq.s32.totalorder %s19, 0
    %p196 = por %p194, %p195
    %s197 = ssub.s32 %s20, %s32
    %s198 = ssub.s32 %s21, %s28
    %s199 = sor.u32 %s197, %s198
    %p200 = scmp.eq.s32.totalorder %s199, 0
    %s202 = sadd.s32 %s201, 1
    %s203 = scalar_select %p200, %s201, %s202
    %p206 = pneg %p200
    %p207 = scmp.eq.s32.totalorder %s13, 7
    %p208 = por %p206, %p207
    %p209 = scmp.ne.s32.totalorder %s201, %s204
    %p210 = scmp.eq.s32.totalorder %s13, 0
    %p211 = por %p209, %p210
    %p212 = scmp.ne.s32.totalorder %s201, %s204
    %p213 = scmp.eq.s32.totalorder %s18, 7
    %p214 = por %p212, %p213
    %p215 = scmp.ne.s32.totalorder %s204, %s205
    %p216 = scmp.eq.s32.totalorder %s18, 0
    %p217 = por %p215, %p216
    %p218 = scmp.ne.s32.totalorder %s204, %s205
    %p219 = scmp.eq.s32.totalorder %s19, 7
    %p220 = por %p218, %p219
    %p222 = scmp.ne.s32.totalorder %s205, %s221
    %p223 = scmp.eq.s32.totalorder %s19, 0
    %p224 = por %p222, %p223
    %p225 = scmp.le.s32.totalorder 1, %s13
    %p226 = scmp.lt.s32.totalorder %s13, 9
    %p227 = pnand %p225, %p226
    %p228 = pneg %p227
    // Predicated region
    $region9: #{down_block_forward.3} parent=5 // pred_check
      _
    $region10: #{down_block_forward.3} parent=5 // pred_check_branch
      %230 = sbr.rel (%p227) target = $region12
    $region11: #{down_block_forward.3} parent=5 // pred_region
      %s231 = ssub.s32 %s13, 1
      // Predicated region
      $region13: #{down_block_forward.3} parent=11 // pred_check
        %p232 = pneg %p140
      $region14: #{down_block_forward.3} parent=11 // pred_check_branch
        %234 = sbr.rel (%p232) target = $region16
      $region15: #{down_block_forward.3} parent=11 // pred_region
        _
      $region16: #{down_block_forward.3} parent=11 // pred_fallthru
        _
      // Predicated region
      $region17: #{down_block_forward.3} parent=11 // pred_check
        %p235 = pneg %p161
      $region18: #{down_block_forward.3} parent=11 // pred_check_branch
        %237 = sbr.rel (%p235) target = $region20
      $region19: #{down_block_forward.3} parent=11 // pred_region
        _
      $region20: #{down_block_forward.3} parent=11 // pred_fallthru
        _
    $region12: #{down_block_forward.3} parent=5 // pred_fallthru
      _
    %p238 = scmp.lt.s32.totalorder %s13, 8
    // Predicated region
    $region21: #{down_block_forward.3} parent=5 // pred_check
      %p239 = pneg %p238
    $region22: #{down_block_forward.3} parent=5 // pred_check_branch
      %241 = sbr.rel (%p239) target = $region24
    $region23: #{down_block_forward.3} parent=5 // pred_region
      // Predicated region
      $region25: #{down_block_forward.3} parent=23 // pred_check
        %p242 = pneg %p49
      $region26: #{down_block_forward.3} parent=23 // pred_check_branch
        %244 = sbr.rel (%p242) target = $region28
      $region27: #{down_block_forward.3} parent=23 // pred_region
        %s245 = smul.u32 %s21, 2
        %p246 = scmp.lt.s32.totalorder %s20, 1
        %s247 = scalar_select %p246, %s20, 1
        %p248 = scmp.lt.s32.totalorder %s245, 9
        %s249 = scalar_select %p248, %s245, 9
        %s250 = smul.addr %s249, 20
        %s251 = smul.addr %s247, 200
        %s252 = sadd.s32 %s250, %s251
        %s253 = smul.addr %s252, 4
        %s254 = scalar_lea.vmem %s0, %s253
        %s255 = smul.u32 %s21, 2
      $region28: #{down_block_forward.3} parent=23 // pred_fallthru
        _
      // Predicated region
      $region29: #{down_block_forward.3} parent=23 // pred_check
        %p256 = pneg %p81
      $region30: #{down_block_forward.3} parent=23 // pred_check_branch
        %258 = sbr.rel (%p256) target = $region32
      $region31: #{down_block_forward.3} parent=23 // pred_region
        %s259 = smul.u32 %s21, 2
        %s260 = sadd.s32 %s259, 1
        %p261 = scmp.lt.s32.totalorder %s20, 1
        %s262 = scalar_select %p261, %s20, 1
        %p263 = scmp.lt.s32.totalorder %s260, 9
        %s264 = scalar_select %p263, %s260, 9
        %s265 = smul.addr %s264, 20
        %s266 = smul.addr %s262, 200
        %s267 = sadd.s32 %s265, %s266
        %s268 = smul.addr %s267, 4
        %s269 = scalar_lea.vmem %s1, %s268
        %s270 = smul.u32 %s21, 2
        %s271 = sadd.s32 %s270, 1
      $region32: #{down_block_forward.3} parent=23 // pred_fallthru
        _
      // Predicated region
      $region33: #{down_block_forward.3} parent=23 // pred_check
        %p272 = pneg %p113
      $region34: #{down_block_forward.3} parent=23 // pred_check_branch
        %274 = sbr.rel (%p272) target = $region36
      $region35: #{down_block_forward.3} parent=23 // pred_region
        %s275 = smul.u32 %s21, 2
        %s276 = sadd.s32 %s275, 2
        %p277 = scmp.lt.s32.totalorder %s20, 1
        %s278 = scalar_select %p277, %s20, 1
        %p279 = scmp.lt.s32.totalorder %s276, 9
        %s280 = scalar_select %p279, %s276, 9
        %s281 = smul.addr %s280, 20
        %s282 = smul.addr %s278, 200
        %s283 = sadd.s32 %s281, %s282
        %s284 = smul.addr %s283, 4
        %s285 = scalar_lea.vmem %s2, %s284
        %s286 = smul.u32 %s21, 2
        %s287 = sadd.s32 %s286, 2
      $region36: #{down_block_forward.3} parent=23 // pred_fallthru
        _
    $region24: #{down_block_forward.3} parent=5 // pred_fallthru
      _
    %p288 = scmp.le.s32.totalorder 1, %s13
    %p289 = scmp.lt.s32.totalorder %s13, 9
    %p290 = pnand %p288, %p289
    %p291 = pneg %p290
    // Predicated region
    $region37: #{down_block_forward.3} parent=5 // pred_check
      _
    $region38: #{down_block_forward.3} parent=5 // pred_check_branch
      %293 = sbr.rel (%p290) target = $region40
    $region39: #{down_block_forward.3} parent=5 // pred_region
      %s294 = ssub.s32 %s13, 1
      %s295 = smul.u32 %s23, 2
      %p296 = scmp.lt.s32.totalorder %s22, 1
      %s297 = scalar_select %p296, %s22, 1
      %p298 = scmp.lt.s32.totalorder %s295, 9
      %s299 = scalar_select %p298, %s295, 9
      %s300 = smul.addr %s299, 20
      %s301 = smul.addr %s297, 200
      %s302 = sadd.s32 %s300, %s301
      %s303 = smul.addr %s302, 4
      %s304 = scalar_lea.vmem %s0, %s303
      %p305 = pneg %p55
      %p306 = pneg %p52
      %s307 = smul.u32 %s23, 2
      %s308 = sadd.s32 %s307, 1
      %p309 = scmp.lt.s32.totalorder %s22, 1
      %s310 = scalar_select %p309, %s22, 1
      %p311 = scmp.lt.s32.totalorder %s308, 9
      %s312 = scalar_select %p311, %s308, 9
      %s313 = smul.addr %s312, 20
      %s314 = smul.addr %s310, 200
      %s315 = sadd.s32 %s313, %s314
      %s316 = smul.addr %s315, 4
      %s317 = scalar_lea.vmem %s1, %s316
      %p318 = pneg %p87
      %p319 = pneg %p84
      %s320 = smul.u32 %s23, 2
      %s321 = sadd.s32 %s320, 2
      %p322 = scmp.lt.s32.totalorder %s22, 1
      %s323 = scalar_select %p322, %s22, 1
      %p324 = scmp.lt.s32.totalorder %s321, 9
      %s325 = scalar_select %p324, %s321, 9
      %s326 = smul.addr %s325, 20
      %s327 = smul.addr %s323, 200
      %s328 = sadd.s32 %s326, %s327
      %s329 = smul.addr %s328, 4
      %s330 = scalar_lea.vmem %s2, %s329
      %p331 = pneg %p119
      %p332 = pneg %p116
      %p333 = pneg %p140
      %p334 = pneg %p137
      %p335 = pneg %p161
      %p336 = pneg %p158
      %p337 = pneg %p189
      %p338 = pneg %p186
      %p339 = scmp.lt.s32.totalorder %s22, 1
      %s340 = scalar_select %p339, %s22, 1
      %p341 = scmp.lt.s32.totalorder %s23, 3
      %s342 = scalar_select %p341, %s23, 3
      %s343 = smul.addr %s342, 4
      %s344 = smul.addr %s340, 16
      %s345 = sadd.s32 %s343, %s344
      %s346 = smul.addr %s345, 2
      %s347 = scalar_lea.vmem %s5, %s346
      %p348 = pneg %p217
      %p349 = pneg %p214
      %p350 = scmp.lt.s32.totalorder %s22, 1
      %s351 = scalar_select %p350, %s22, 1
      %p352 = scmp.lt.s32.totalorder %s23, 3
      %s353 = scalar_select %p352, %s23, 3
      %s354 = smul.addr %s351, 4
      %s355 = sadd.s32 %s353, %s354
      %s356 = smul.addr %s355, 2
      %s357 = scalar_lea.vmem %s6, %s356
      %s358 = smul.u32 %s23, 2
      %p359 = scmp.lt.s32.totalorder %s22, 1
      %s360 = scalar_select %p359, %s22, 1
      %p361 = scmp.lt.s32.totalorder %s358, 9
      %s362 = scalar_select %p361, %s358, 9
      %s363 = smul.addr %s362, 20
      %s364 = smul.addr %s360, 200
      %s365 = sadd.s32 %s363, %s364
      %s366 = smul.addr %s365, 4
      %s367 = scalar_lea.vmem %s0, %s366
      %s368 = smul.u32 %s23, 2
      %s369 = smul.u32 %s23, 2
      %s370 = sadd.s32 %s369, 1
      %p371 = scmp.lt.s32.totalorder %s22, 1
      %s372 = scalar_select %p371, %s22, 1
      %p373 = scmp.lt.s32.totalorder %s370, 9
      %s374 = scalar_select %p373, %s370, 9
      %s375 = smul.addr %s374, 20
      %s376 = smul.addr %s372, 200
      %s377 = sadd.s32 %s375, %s376
      %s378 = smul.addr %s377, 4
      %s379 = scalar_lea.vmem %s1, %s378
      %s380 = smul.u32 %s23, 2
      %s381 = sadd.s32 %s380, 1
      %s382 = smul.u32 %s23, 2
      %s383 = sadd.s32 %s382, 2
      %p384 = scmp.lt.s32.totalorder %s22, 1
      %s385 = scalar_select %p384, %s22, 1
      %p386 = scmp.lt.s32.totalorder %s383, 9
      %s387 = scalar_select %p386, %s383, 9
      %s388 = smul.addr %s387, 20
      %s389 = smul.addr %s385, 200
      %s390 = sadd.s32 %s388, %s389
      %s391 = smul.addr %s390, 4
      %s392 = scalar_lea.vmem %s2, %s391
      %s393 = smul.u32 %s23, 2
      %s394 = sadd.s32 %s393, 2
      %p395 = scmp.lt.s32.totalorder %s22, 1
      %s396 = scalar_select %p395, %s22, 1
      %p397 = scmp.lt.s32.totalorder %s23, 3
      %s398 = scalar_select %p397, %s23, 3
      %s399 = smul.addr %s398, 4
      %s400 = smul.addr %s396, 16
      %s401 = sadd.s32 %s399, %s400
      %s402 = smul.addr %s401, 2
      %s403 = scalar_lea.vmem %s5, %s402
      %p404 = scmp.lt.s32.totalorder %s22, 1
      %s405 = scalar_select %p404, %s22, 1
      %p406 = scmp.lt.s32.totalorder %s23, 3
      %s407 = scalar_select %p406, %s23, 3
      %s408 = smul.addr %s405, 4
      %s409 = sadd.s32 %s407, %s408
      %s410 = smul.addr %s409, 2
      %s411 = scalar_lea.vmem %s6, %s410
      %v413 = vld [vmem:[%s367] sm:$0x7]
      %v414 = vld [vmem:[%s367 + $0x4] sm:$0x7]
      %v415 = vld [vmem:[%s367 + $0x8] sm:$0x7]
      %v416 = vld [vmem:[%s367 + $0xc] sm:$0x7]
      %v417 = vld [vmem:[%s367 + $0x10] sm:$0x7]
      %v418 = vld [vmem:[%s367 + $0x14] sm:$0x7]
      %v419 = vld [vmem:[%s367 + $0x18] sm:$0x7]
      %v420 = vld [vmem:[%s367 + $0x1c] sm:$0x7]
      %v421 = vld [vmem:[%s367 + $0x20] sm:$0x7]
      %v422 = vld [vmem:[%s367 + $0x28] sm:$0x7]
      %v423 = vld [vmem:[%s367 + $0x2c] sm:$0x7]
      %v424 = vld [vmem:[%s367 + $0x30] sm:$0x7]
      %v425 = vld [vmem:[%s367 + $0x34] sm:$0x7]
      %v426 = vld [vmem:[%s367 + $0x38] sm:$0x7]
      %v427 = vld [vmem:[%s367 + $0x3c] sm:$0x7]
      %v428 = vld [vmem:[%s367 + $0x40] sm:$0x7]
      %v429 = vld [vmem:[%s367 + $0x44] sm:$0x7]
      %v430 = vld [vmem:[%s367 + $0x48] sm:$0x7]
      %v431 = vld [vmem:[%s379] sm:$0x7]
      %v432 = vld [vmem:[%s379 + $0x4] sm:$0x7]
      %v433 = vld [vmem:[%s379 + $0x8] sm:$0x7]
      %v434 = vld [vmem:[%s379 + $0xc] sm:$0x7]
      %v435 = vld [vmem:[%s379 + $0x10] sm:$0x7]
      %v436 = vld [vmem:[%s379 + $0x14] sm:$0x7]
      %v437 = vld [vmem:[%s379 + $0x18] sm:$0x7]
      %v438 = vld [vmem:[%s379 + $0x1c] sm:$0x7]
      %v439 = vld [vmem:[%s379 + $0x20] sm:$0x7]
      %v440 = vld [vmem:[%s379 + $0x28] sm:$0x7]
      %v441 = vld [vmem:[%s379 + $0x2c] sm:$0x7]
      %v442 = vld [vmem:[%s379 + $0x30] sm:$0x7]
      %v443 = vld [vmem:[%s379 + $0x34] sm:$0x7]
      %v444 = vld [vmem:[%s379 + $0x38] sm:$0x7]
      %v445 = vld [vmem:[%s379 + $0x3c] sm:$0x7]
      %v446 = vld [vmem:[%s379 + $0x40] sm:$0x7]
      %v447 = vld [vmem:[%s379 + $0x44] sm:$0x7]
      %v448 = vld [vmem:[%s379 + $0x48] sm:$0x7]
      %v449 = vld [vmem:[%s392] sm:$0x7]
      %v450 = vld [vmem:[%s392 + $0x4] sm:$0x7]
      %v451 = vld [vmem:[%s392 + $0x8] sm:$0x7]
      %v452 = vld [vmem:[%s392 + $0xc] sm:$0x7]
      %v453 = vld [vmem:[%s392 + $0x10] sm:$0x7]
      %v454 = vld [vmem:[%s392 + $0x14] sm:$0x7]
      %v455 = vld [vmem:[%s392 + $0x18] sm:$0x7]
      %v456 = vld [vmem:[%s392 + $0x1c] sm:$0x7]
      %v457 = vld [vmem:[%s392 + $0x20] sm:$0x7]
      %v458 = vld [vmem:[%s392 + $0x28] sm:$0x7]
      %v459 = vld [vmem:[%s392 + $0x2c] sm:$0x7]
      %v460 = vld [vmem:[%s392 + $0x30] sm:$0x7]
      %v461 = vld [vmem:[%s392 + $0x34] sm:$0x7]
      %v462 = vld [vmem:[%s392 + $0x38] sm:$0x7]
      %v463 = vld [vmem:[%s392 + $0x3c] sm:$0x7]
      %v464 = vld [vmem:[%s392 + $0x40] sm:$0x7]
      %v465 = vld [vmem:[%s392 + $0x44] sm:$0x7]
      %v466 = vld [vmem:[%s392 + $0x48] sm:$0x7]
      %v471 = vunpack.c.l.b16 %v422
      %v472 = vunpack.c.l.b16 %v424
      %v473 = vunpack.c.l.b16 %v426
      %v474 = vunpack.c.l.b16 %v428
      %v475 = vpack.c.b16 %v471, %v471
      %v476 = vpack.c.b16 %v472, %v472
      %v477 = vpack.c.b16 %v473, %v473
      %v478 = vpack.c.b16 %v474, %v474
      %479 = vrot.lane.b32.xlu0 %v475, 4
      %v480 = vpop.permute.xlu0 %479
      %481 = vrot.lane.b32.xlu0 %v476, 4
      %v482 = vpop.permute.xlu0 %481
      %483 = vrot.lane.b32.xlu0 %v477, 4
      %v484 = vpop.permute.xlu0 %483
      %485 = vrot.lane.b32.xlu0 %v478, 4
      %v486 = vpop.permute.xlu0 %485
      %v491 = vunpack.c.l.b16 %v413
      %v492 = vunpack.c.l.b16 %v415
      %v493 = vunpack.c.l.b16 %v417
      %v494 = vunpack.c.l.b16 %v419
      %v495 = vpack.c.b16 %v491, %v491
      %v496 = vpack.c.b16 %v492, %v492
      %v497 = vpack.c.b16 %v493, %v493
      %v498 = vpack.c.b16 %v494, %v494
      %v500 = vshrl.u32 %v495, 16
      %v502 = vshll.u32 %v495, 16
      %v504 = vrot.slane %v502, 1
      %v505 = vor.u32 %v500, %v504
      %v507 = vshrl.u32 %v496, 16
      %v509 = vshll.u32 %v496, 16
      %v511 = vrot.slane %v509, 1
      %v512 = vor.u32 %v507, %v511
      %v514 = vshrl.u32 %v497, 16
      %v516 = vshll.u32 %v497, 16
      %v518 = vrot.slane %v516, 1
      %v519 = vor.u32 %v514, %v518
      %v521 = vshrl.u32 %v498, 16
      %v523 = vshll.u32 %v498, 16
      %v525 = vrot.slane %v523, 1
      %v526 = vor.u32 %v521, %v525
      %527 = vrot.lane.b32.xlu0 %v505, 8
      %v528 = vpop.permute.xlu0 %527
      %529 = vrot.lane.b32.xlu0 %v512, 8
      %v530 = vpop.permute.xlu0 %529
      %531 = vrot.lane.b32.xlu0 %v519, 8
      %v532 = vpop.permute.xlu0 %531
      %533 = vrot.lane.b32.xlu0 %v526, 8
      %v534 = vpop.permute.xlu0 %533
      %v539 = vunpack.c.l.b16 %v414
      %v540 = vunpack.c.l.b16 %v416
      %v541 = vunpack.c.l.b16 %v418
      %v542 = vunpack.c.l.b16 %v420
      %v543 = vpack.c.b16 %v539, %v539
      %v544 = vpack.c.b16 %v540, %v540
      %v545 = vpack.c.b16 %v541, %v541
      %v546 = vpack.c.b16 %v542, %v542
      %547 = vrot.lane.b32.xlu0 %v543, 12
      %v548 = vpop.permute.xlu0 %547
      %549 = vrot.lane.b32.xlu0 %v544, 12
      %v550 = vpop.permute.xlu0 %549
      %551 = vrot.lane.b32.xlu0 %v545, 12
      %v552 = vpop.permute.xlu0 %551
      %553 = vrot.lane.b32.xlu0 %v546, 12
      %v554 = vpop.permute.xlu0 %553
      %v559 = vunpack.c.l.b16 %v423
      %v560 = vunpack.c.l.b16 %v425
      %v561 = vunpack.c.l.b16 %v427
      %v562 = vunpack.c.l.b16 %v429
      %v563 = vpack.c.b16 %v559, %v559
      %v564 = vpack.c.b16 %v560, %v560
      %v565 = vpack.c.b16 %v561, %v561
      %v566 = vpack.c.b16 %v562, %v562
      %567 = vrot.lane.b32.xlu0 %v563, 16
      %v568 = vpop.permute.xlu0 %567
      %569 = vrot.lane.b32.xlu0 %v564, 16
      %v570 = vpop.permute.xlu0 %569
      %571 = vrot.lane.b32.xlu0 %v565, 16
      %v572 = vpop.permute.xlu0 %571
      %573 = vrot.lane.b32.xlu0 %v566, 16
      %v574 = vpop.permute.xlu0 %573
      %v576 = vshrl.u32 %v543, 16
      %v578 = vshll.u32 %v543, 16
      %v580 = vrot.slane %v578, 1
      %v581 = vor.u32 %v576, %v580
      %v583 = vshrl.u32 %v544, 16
      %v585 = vshll.u32 %v544, 16
      %v587 = vrot.slane %v585, 1
      %v588 = vor.u32 %v583, %v587
      %v590 = vshrl.u32 %v545, 16
      %v592 = vshll.u32 %v545, 16
      %v594 = vrot.slane %v592, 1
      %v595 = vor.u32 %v590, %v594
      %v597 = vshrl.u32 %v546, 16
      %v599 = vshll.u32 %v546, 16
      %v601 = vrot.slane %v599, 1
      %v602 = vor.u32 %v597, %v601
      %603 = vrot.lane.b32.xlu0 %v581, 20
      %v604 = vpop.permute.xlu0 %603
      %605 = vrot.lane.b32.xlu0 %v588, 20
      %v606 = vpop.permute.xlu0 %605
      %607 = vrot.lane.b32.xlu0 %v595, 20
      %v608 = vpop.permute.xlu0 %607
      %609 = vrot.lane.b32.xlu0 %v602, 20
      %v610 = vpop.permute.xlu0 %609
      %v612 = vunpack.c.l.b16 %v421
      %v613 = vpack.c.b16 %v612, %v612
      %614 = vrot.lane.b32.xlu0 %v496, 24
      %v615 = vpop.permute.xlu0 %614
      %616 = vrot.lane.b32.xlu0 %v497, 24
      %v617 = vpop.permute.xlu0 %616
      %618 = vrot.lane.b32.xlu0 %v498, 24
      %v619 = vpop.permute.xlu0 %618
      %620 = vrot.lane.b32.xlu0 %v613, 24
      %v621 = vpop.permute.xlu0 %620
      %v623 = vunpack.c.l.b16 %v430
      %v624 = vpack.c.b16 %v623, %v623
      %625 = vrot.lane.b32.xlu0 %v476, 28
      %v626 = vpop.permute.xlu0 %625
      %627 = vrot.lane.b32.xlu0 %v477, 28
      %v628 = vpop.permute.xlu0 %627
      %629 = vrot.lane.b32.xlu0 %v478, 28
      %v630 = vpop.permute.xlu0 %629
      %631 = vrot.lane.b32.xlu0 %v624, 28
      %v632 = vpop.permute.xlu0 %631
      %v634 = vshrl.u32 %v613, 16
      %v636 = vshll.u32 %v613, 16
      %v638 = vrot.slane %v636, 1
      %v639 = vor.u32 %v634, %v638
      %640 = vrot.lane.b32.xlu0 %v512, 32
      %v641 = vpop.permute.xlu0 %640
      %642 = vrot.lane.b32.xlu0 %v519, 32
      %v643 = vpop.permute.xlu0 %642
      %644 = vrot.lane.b32.xlu0 %v526, 32
      %v645 = vpop.permute.xlu0 %644
      %646 = vrot.lane.b32.xlu0 %v639, 32
      %v647 = vpop.permute.xlu0 %646
      %v652 = vunpack.c.l.b16 %v431
      %v653 = vunpack.c.l.b16 %v433
      %v654 = vunpack.c.l.b16 %v435
      %v655 = vunpack.c.l.b16 %v437
      %v656 = vpack.c.b16 %v652, %v652
      %v657 = vpack.c.b16 %v653, %v653
      %v658 = vpack.c.b16 %v654, %v654
      %v659 = vpack.c.b16 %v655, %v655
      %660 = vrot.lane.b32.xlu0 %v656, 36
      %v661 = vpop.permute.xlu0 %660
      %662 = vrot.lane.b32.xlu0 %v657, 36
      %v663 = vpop.permute.xlu0 %662
      %664 = vrot.lane.b32.xlu0 %v658, 36
      %v665 = vpop.permute.xlu0 %664
      %666 = vrot.lane.b32.xlu0 %v659, 36
      %v667 = vpop.permute.xlu0 %666
      %v672 = vunpack.c.l.b16 %v440
      %v673 = vunpack.c.l.b16 %v442
      %v674 = vunpack.c.l.b16 %v444
      %v675 = vunpack.c.l.b16 %v446
      %v676 = vpack.c.b16 %v672, %v672
      %v677 = vpack.c.b16 %v673, %v673
      %v678 = vpack.c.b16 %v674, %v674
      %v679 = vpack.c.b16 %v675, %v675
      %680 = vrot.lane.b32.xlu0 %v676, 40
      %v681 = vpop.permute.xlu0 %680
      %682 = vrot.lane.b32.xlu0 %v677, 40
      %v683 = vpop.permute.xlu0 %682
      %684 = vrot.lane.b32.xlu0 %v678, 40
      %v685 = vpop.permute.xlu0 %684
      %686 = vrot.lane.b32.xlu0 %v679, 40
      %v687 = vpop.permute.xlu0 %686
      %v689 = vshrl.u32 %v656, 16
      %v691 = vshll.u32 %v656, 16
      %v693 = vrot.slane %v691, 1
      %v694 = vor.u32 %v689, %v693
      %v696 = vshrl.u32 %v657, 16
      %v698 = vshll.u32 %v657, 16
      %v700 = vrot.slane %v698, 1
      %v701 = vor.u32 %v696, %v700
      %v703 = vshrl.u32 %v658, 16
      %v705 = vshll.u32 %v658, 16
      %v707 = vrot.slane %v705, 1
      %v708 = vor.u32 %v703, %v707
      %v710 = vshrl.u32 %v659, 16
      %v712 = vshll.u32 %v659, 16
      %v714 = vrot.slane %v712, 1
      %v715 = vor.u32 %v710, %v714
      %716 = vrot.lane.b32.xlu0 %v694, 44
      %v717 = vpop.permute.xlu0 %716
      %718 = vrot.lane.b32.xlu0 %v701, 44
      %v719 = vpop.permute.xlu0 %718
      %720 = vrot.lane.b32.xlu0 %v708, 44
      %v721 = vpop.permute.xlu0 %720
      %722 = vrot.lane.b32.xlu0 %v715, 44
      %v723 = vpop.permute.xlu0 %722
      %v728 = vunpack.c.l.b16 %v432
      %v729 = vunpack.c.l.b16 %v434
      %v730 = vunpack.c.l.b16 %v436
      %v731 = vunpack.c.l.b16 %v438
      %v732 = vpack.c.b16 %v728, %v728
      %v733 = vpack.c.b16 %v729, %v729
      %v734 = vpack.c.b16 %v730, %v730
      %v735 = vpack.c.b16 %v731, %v731
      %736 = vrot.lane.b32.xlu0 %v732, 48
      %v737 = vpop.permute.xlu0 %736
      %738 = vrot.lane.b32.xlu0 %v733, 48
      %v739 = vpop.permute.xlu0 %738
      %740 = vrot.lane.b32.xlu0 %v734, 48
      %v741 = vpop.permute.xlu0 %740
      %742 = vrot.lane.b32.xlu0 %v735, 48
      %v743 = vpop.permute.xlu0 %742
      %v748 = vunpack.c.l.b16 %v441
      %v749 = vunpack.c.l.b16 %v443
      %v750 = vunpack.c.l.b16 %v445
      %v751 = vunpack.c.l.b16 %v447
      %v752 = vpack.c.b16 %v748, %v748
      %v753 = vpack.c.b16 %v749, %v749
      %v754 = vpack.c.b16 %v750, %v750
      %v755 = vpack.c.b16 %v751, %v751
      %756 = vrot.lane.b32.xlu0 %v752, 52
      %v757 = vpop.permute.xlu0 %756
      %758 = vrot.lane.b32.xlu0 %v753, 52
      %v759 = vpop.permute.xlu0 %758
      %760 = vrot.lane.b32.xlu0 %v754, 52
      %v761 = vpop.permute.xlu0 %760
      %762 = vrot.lane.b32.xlu0 %v755, 52
      %v763 = vpop.permute.xlu0 %762
      %v765 = vshrl.u32 %v732, 16
      %v767 = vshll.u32 %v732, 16
      %v769 = vrot.slane %v767, 1
      %v770 = vor.u32 %v765, %v769
      %v772 = vshrl.u32 %v733, 16
      %v774 = vshll.u32 %v733, 16
      %v776 = vrot.slane %v774, 1
      %v777 = vor.u32 %v772, %v776
      %v779 = vshrl.u32 %v734, 16
      %v781 = vshll.u32 %v734, 16
      %v783 = vrot.slane %v781, 1
      %v784 = vor.u32 %v779, %v783
      %v786 = vshrl.u32 %v735, 16
      %v788 = vshll.u32 %v735, 16
      %v790 = vrot.slane %v788, 1
      %v791 = vor.u32 %v786, %v790
      %792 = vrot.lane.b32.xlu0 %v770, 56
      %v793 = vpop.permute.xlu0 %792
      %794 = vrot.lane.b32.xlu0 %v777, 56
      %v795 = vpop.permute.xlu0 %794
      %796 = vrot.lane.b32.xlu0 %v784, 56
      %v797 = vpop.permute.xlu0 %796
      %798 = vrot.lane.b32.xlu0 %v791, 56
      %v799 = vpop.permute.xlu0 %798
      %v801 = vunpack.c.l.b16 %v439
      %v802 = vpack.c.b16 %v801, %v801
      %803 = vrot.lane.b32.xlu0 %v657, 60
      %v804 = vpop.permute.xlu0 %803
      %805 = vrot.lane.b32.xlu0 %v658, 60
      %v806 = vpop.permute.xlu0 %805
      %807 = vrot.lane.b32.xlu0 %v659, 60
      %v808 = vpop.permute.xlu0 %807
      %809 = vrot.lane.b32.xlu0 %v802, 60
      %v810 = vpop.permute.xlu0 %809
      %vm811 = vcmask 31744
      %v814 = vsel %vm811, %v413, %v480
      %v817 = vsel %vm811, %v415, %v482
      %v820 = vsel %vm811, %v417, %v484
      %v823 = vsel %vm811, %v419, %v486
      %vm824 = vcmask 64512
      %v826 = vsel %vm824, %v814, %v528
      %v828 = vsel %vm824, %v817, %v530
      %v830 = vsel %vm824, %v820, %v532
      %v832 = vsel %vm824, %v823, %v534
      %vm833 = vcmask 97280
      %v835 = vsel %vm833, %v826, %v548
      %v837 = vsel %vm833, %v828, %v550
      %v839 = vsel %vm833, %v830, %v552
      %v841 = vsel %vm833, %v832, %v554
      %vm842 = vcmask 130048
      %v844 = vsel %vm842, %v835, %v568
      %v846 = vsel %vm842, %v837, %v570
      %v848 = vsel %vm842, %v839, %v572
      %v850 = vsel %vm842, %v841, %v574
      %vm851 = vcmask 162816
      %v853 = vsel %vm851, %v844, %v604
      %v855 = vsel %vm851, %v846, %v606
      %v857 = vsel %vm851, %v848, %v608
      %v859 = vsel %vm851, %v850, %v610
      %vm860 = vcmask 195584
      %v862 = vsel %vm860, %v853, %v615
      %v864 = vsel %vm860, %v855, %v617
      %v866 = vsel %vm860, %v857, %v619
      %v868 = vsel %vm860, %v859, %v621
      %vm869 = vcmask 228352
      %v871 = vsel %vm869, %v862, %v626
      %v873 = vsel %vm869, %v864, %v628
      %v875 = vsel %vm869, %v866, %v630
      %v877 = vsel %vm869, %v868, %v632
      %vm878 = vcmask 261120
      %v880 = vsel %vm878, %v871, %v641
      %v882 = vsel %vm878, %v873, %v643
      %v884 = vsel %vm878, %v875, %v645
      %v886 = vsel %vm878, %v877, %v647
      %vm887 = vcmask 293888
      %v889 = vsel %vm887, %v880, %v661
      %v891 = vsel %vm887, %v882, %v663
      %v893 = vsel %vm887, %v884, %v665
      %v895 = vsel %vm887, %v886, %v667
      %vm896 = vcmask 326656
      %v898 = vsel %vm896, %v889, %v681
      %v900 = vsel %vm896, %v891, %v683
      %v902 = vsel %vm896, %v893, %v685
      %v904 = vsel %vm896, %v895, %v687
      %vm905 = vcmask 359424
      %v907 = vsel %vm905, %v898, %v717
      %v909 = vsel %vm905, %v900, %v719
      %v911 = vsel %vm905, %v902, %v721
      %v913 = vsel %vm905, %v904, %v723
      %vm914 = vcmask 392192
      %v916 = vsel %vm914, %v907, %v737
      %v918 = vsel %vm914, %v909, %v739
      %v920 = vsel %vm914, %v911, %v741
      %v922 = vsel %vm914, %v913, %v743
      %vm923 = vcmask 424960
      %v925 = vsel %vm923, %v916, %v757
      %v927 = vsel %vm923, %v918, %v759
      %v929 = vsel %vm923, %v920, %v761
      %v931 = vsel %vm923, %v922, %v763
      %vm932 = vcmask 457728
      %v934 = vsel %vm932, %v925, %v793
      %v936 = vsel %vm932, %v927, %v795
      %v938 = vsel %vm932, %v929, %v797
      %v940 = vsel %vm932, %v931, %v799
      %vm941 = vcmask 490496
      %v943 = vsel %vm941, %v934, %v804
      %v945 = vsel %vm941, %v936, %v806
      %v947 = vsel %vm941, %v938, %v808
      %v949 = vsel %vm941, %v940, %v810
      %v951 = vshrl.u32 %v802, 16
      %v953 = vshll.u32 %v802, 16
      %v955 = vrot.slane %v953, 1
      %v956 = vor.u32 %v951, %v955
      %957 = vrot.lane.b32.xlu0 %v701, 4
      %v958 = vpop.permute.xlu0 %957
      %959 = vrot.lane.b32.xlu0 %v708, 4
      %v960 = vpop.permute.xlu0 %959
      %961 = vrot.lane.b32.xlu0 %v715, 4
      %v962 = vpop.permute.xlu0 %961
      %963 = vrot.lane.b32.xlu0 %v956, 4
      %v964 = vpop.permute.xlu0 %963
      %v969 = vunpack.c.l.b16 %v449
      %v970 = vunpack.c.l.b16 %v451
      %v971 = vunpack.c.l.b16 %v453
      %v972 = vunpack.c.l.b16 %v455
      %v973 = vpack.c.b16 %v969, %v969
      %v974 = vpack.c.b16 %v970, %v970
      %v975 = vpack.c.b16 %v971, %v971
      %v976 = vpack.c.b16 %v972, %v972
      %977 = vrot.lane.b32.xlu0 %v973, 8
      %v978 = vpop.permute.xlu0 %977
      %979 = vrot.lane.b32.xlu0 %v974, 8
      %v980 = vpop.permute.xlu0 %979
      %981 = vrot.lane.b32.xlu0 %v975, 8
      %v982 = vpop.permute.xlu0 %981
      %983 = vrot.lane.b32.xlu0 %v976, 8
      %v984 = vpop.permute.xlu0 %983
      %v989 = vunpack.c.l.b16 %v458
      %v990 = vunpack.c.l.b16 %v460
      %v991 = vunpack.c.l.b16 %v462
      %v992 = vunpack.c.l.b16 %v464
      %v993 = vpack.c.b16 %v989, %v989
      %v994 = vpack.c.b16 %v990, %v990
      %v995 = vpack.c.b16 %v991, %v991
      %v996 = vpack.c.b16 %v992, %v992
      %997 = vrot.lane.b32.xlu0 %v993, 12
      %v998 = vpop.permute.xlu0 %997
      %999 = vrot.lane.b32.xlu0 %v994, 12
      %v1000 = vpop.permute.xlu0 %999
      %1001 = vrot.lane.b32.xlu0 %v995, 12
      %v1002 = vpop.permute.xlu0 %1001
      %1003 = vrot.lane.b32.xlu0 %v996, 12
      %v1004 = vpop.permute.xlu0 %1003
      %v1006 = vshrl.u32 %v973, 16
      %v1008 = vshll.u32 %v973, 16
      %v1010 = vrot.slane %v1008, 1
      %v1011 = vor.u32 %v1006, %v1010
      %v1013 = vshrl.u32 %v974, 16
      %v1015 = vshll.u32 %v974, 16
      %v1017 = vrot.slane %v1015, 1
      %v1018 = vor.u32 %v1013, %v1017
      %v1020 = vshrl.u32 %v975, 16
      %v1022 = vshll.u32 %v975, 16
      %v1024 = vrot.slane %v1022, 1
      %v1025 = vor.u32 %v1020, %v1024
      %v1027 = vshrl.u32 %v976, 16
      %v1029 = vshll.u32 %v976, 16
      %v1031 = vrot.slane %v1029, 1
      %v1032 = vor.u32 %v1027, %v1031
      %1033 = vrot.lane.b32.xlu0 %v1011, 16
      %v1034 = vpop.permute.xlu0 %1033
      %1035 = vrot.lane.b32.xlu0 %v1018, 16
      %v1036 = vpop.permute.xlu0 %1035
      %1037 = vrot.lane.b32.xlu0 %v1025, 16
      %v1038 = vpop.permute.xlu0 %1037
      %1039 = vrot.lane.b32.xlu0 %v1032, 16
      %v1040 = vpop.permute.xlu0 %1039
      %v1045 = vunpack.c.l.b16 %v450
      %v1046 = vunpack.c.l.b16 %v452
      %v1047 = vunpack.c.l.b16 %v454
      %v1048 = vunpack.c.l.b16 %v456
      %v1049 = vpack.c.b16 %v1045, %v1045
      %v1050 = vpack.c.b16 %v1046, %v1046
      %v1051 = vpack.c.b16 %v1047, %v1047
      %v1052 = vpack.c.b16 %v1048, %v1048
      %1053 = vrot.lane.b32.xlu0 %v1049, 20
      %v1054 = vpop.permute.xlu0 %1053
      %1055 = vrot.lane.b32.xlu0 %v1050, 20
      %v1056 = vpop.permute.xlu0 %1055
      %1057 = vrot.lane.b32.xlu0 %v1051, 20
      %v1058 = vpop.permute.xlu0 %1057
      %1059 = vrot.lane.b32.xlu0 %v1052, 20
      %v1060 = vpop.permute.xlu0 %1059
      %v1065 = vunpack.c.l.b16 %v459
      %v1066 = vunpack.c.l.b16 %v461
      %v1067 = vunpack.c.l.b16 %v463
      %v1068 = vunpack.c.l.b16 %v465
      %v1069 = vpack.c.b16 %v1065, %v1065
      %v1070 = vpack.c.b16 %v1066, %v1066
      %v1071 = vpack.c.b16 %v1067, %v1067
      %v1072 = vpack.c.b16 %v1068, %v1068
      %1073 = vrot.lane.b32.xlu0 %v1069, 24
      %v1074 = vpop.permute.xlu0 %1073
      %1075 = vrot.lane.b32.xlu0 %v1070, 24
      %v1076 = vpop.permute.xlu0 %1075
      %1077 = vrot.lane.b32.xlu0 %v1071, 24
      %v1078 = vpop.permute.xlu0 %1077
      %1079 = vrot.lane.b32.xlu0 %v1072, 24
      %v1080 = vpop.permute.xlu0 %1079
      %v1082 = vshrl.u32 %v1049, 16
      %v1084 = vshll.u32 %v1049, 16
      %v1086 = vrot.slane %v1084, 1
      %v1087 = vor.u32 %v1082, %v1086
      %v1089 = vshrl.u32 %v1050, 16
      %v1091 = vshll.u32 %v1050, 16
      %v1093 = vrot.slane %v1091, 1
      %v1094 = vor.u32 %v1089, %v1093
      %v1096 = vshrl.u32 %v1051, 16
      %v1098 = vshll.u32 %v1051, 16
      %v1100 = vrot.slane %v1098, 1
      %v1101 = vor.u32 %v1096, %v1100
      %v1103 = vshrl.u32 %v1052, 16
      %v1105 = vshll.u32 %v1052, 16
      %v1107 = vrot.slane %v1105, 1
      %v1108 = vor.u32 %v1103, %v1107
      %1109 = vrot.lane.b32.xlu0 %v1087, 28
      %v1110 = vpop.permute.xlu0 %1109
      %1111 = vrot.lane.b32.xlu0 %v1094, 28
      %v1112 = vpop.permute.xlu0 %1111
      %1113 = vrot.lane.b32.xlu0 %v1101, 28
      %v1114 = vpop.permute.xlu0 %1113
      %1115 = vrot.lane.b32.xlu0 %v1108, 28
      %v1116 = vpop.permute.xlu0 %1115
      %v1118 = vunpack.c.l.b16 %v457
      %v1119 = vpack.c.b16 %v1118, %v1118
      %1120 = vrot.lane.b32.xlu0 %v974, 32
      %v1121 = vpop.permute.xlu0 %1120
      %1122 = vrot.lane.b32.xlu0 %v975, 32
      %v1123 = vpop.permute.xlu0 %1122
      %1124 = vrot.lane.b32.xlu0 %v976, 32
      %v1125 = vpop.permute.xlu0 %1124
      %1126 = vrot.lane.b32.xlu0 %v1119, 32
      %v1127 = vpop.permute.xlu0 %1126
      %v1129 = vunpack.c.l.b16 %v466
      %v1130 = vpack.c.b16 %v1129, %v1129
      %1131 = vrot.lane.b32.xlu0 %v994, 36
      %v1132 = vpop.permute.xlu0 %1131
      %1133 = vrot.lane.b32.xlu0 %v995, 36
      %v1134 = vpop.permute.xlu0 %1133
      %1135 = vrot.lane.b32.xlu0 %v996, 36
      %v1136 = vpop.permute.xlu0 %1135
      %1137 = vrot.lane.b32.xlu0 %v1130, 36
      %v1138 = vpop.permute.xlu0 %1137
      %v1140 = vshrl.u32 %v1119, 16
      %v1142 = vshll.u32 %v1119, 16
      %v1144 = vrot.slane %v1142, 1
      %v1145 = vor.u32 %v1140, %v1144
      %1146 = vrot.lane.b32.xlu0 %v1018, 40
      %v1147 = vpop.permute.xlu0 %1146
      %1148 = vrot.lane.b32.xlu0 %v1025, 40
      %v1149 = vpop.permute.xlu0 %1148
      %1150 = vrot.lane.b32.xlu0 %v1032, 40
      %v1151 = vpop.permute.xlu0 %1150
      %1152 = vrot.lane.b32.xlu0 %v1145, 40
      %v1153 = vpop.permute.xlu0 %1152
      %v1156 = vsel %vm811, %v442, %v958
      %v1159 = vsel %vm811, %v444, %v960
      %v1162 = vsel %vm811, %v446, %v962
      %v1165 = vsel %vm811, %v448, %v964
      %v1167 = vsel %vm824, %v1156, %v978
      %v1169 = vsel %vm824, %v1159, %v980
      %v1171 = vsel %vm824, %v1162, %v982
      %v1173 = vsel %vm824, %v1165, %v984
      %v1175 = vsel %vm833, %v1167, %v998
      %v1177 = vsel %vm833, %v1169, %v1000
      %v1179 = vsel %vm833, %v1171, %v1002
      %v1181 = vsel %vm833, %v1173, %v1004
      %v1183 = vsel %vm842, %v1175, %v1034
      %v1185 = vsel %vm842, %v1177, %v1036
      %v1187 = vsel %vm842, %v1179, %v1038
      %v1189 = vsel %vm842, %v1181, %v1040
      %v1191 = vsel %vm851, %v1183, %v1054
      %v1193 = vsel %vm851, %v1185, %v1056
      %v1195 = vsel %vm851, %v1187, %v1058
      %v1197 = vsel %vm851, %v1189, %v1060
      %v1199 = vsel %vm860, %v1191, %v1074
      %v1201 = vsel %vm860, %v1193, %v1076
      %v1203 = vsel %vm860, %v1195, %v1078
      %v1205 = vsel %vm860, %v1197, %v1080
      %v1207 = vsel %vm869, %v1199, %v1110
      %v1209 = vsel %vm869, %v1201, %v1112
      %v1211 = vsel %vm869, %v1203, %v1114
      %v1213 = vsel %vm869, %v1205, %v1116
      %v1215 = vsel %vm878, %v1207, %v1121
      %v1217 = vsel %vm878, %v1209, %v1123
      %v1219 = vsel %vm878, %v1211, %v1125
      %v1221 = vsel %vm878, %v1213, %v1127
      %v1223 = vsel %vm887, %v1215, %v1132
      %v1225 = vsel %vm887, %v1217, %v1134
      %v1227 = vsel %vm887, %v1219, %v1136
      %v1229 = vsel %vm887, %v1221, %v1138
      %v1231 = vsel %vm896, %v1223, %v1147
      %v1233 = vsel %vm896, %v1225, %v1149
      %v1235 = vsel %vm896, %v1227, %v1151
      %v1237 = vsel %vm896, %v1229, %v1153
      %1242 = vrot.lane.b32.xlu0 %v1231, 64
      %v1243 = vpop.permute.xlu0 %1242
      %1244 = vrot.lane.b32.xlu0 %v1233, 64
      %v1245 = vpop.permute.xlu0 %1244
      %1246 = vrot.lane.b32.xlu0 %v1235, 64
      %v1247 = vpop.permute.xlu0 %1246
      %1248 = vrot.lane.b32.xlu0 %v1237, 64
      %v1249 = vpop.permute.xlu0 %1248
      %vm1250 = vcmask 523264
      %v1252 = vsel %vm1250, %v943, %v1243
      %v1254 = vsel %vm1250, %v945, %v1245
      %v1256 = vsel %vm1250, %v947, %v1247
      %v1258 = vsel %vm1250, %v949, %v1249
      %v1259 = vld [vmem:[%s3] sm:$0xf]
      %v1260 = vld [vmem:[%s3 + $0x4] sm:$0xf]
      %v1261 = vld [vmem:[%s3 + $0x8] sm:$0xf]
      %v1262 = vld [vmem:[%s3 + $0xc] sm:$0xf]
      %v1263 = vld [vmem:[%s3 + $0x10] sm:$0xf]
      %v1264 = vld [vmem:[%s3 + $0x14] sm:$0xf]
      %v1265 = vld [vmem:[%s3 + $0x18] sm:$0xf]
      %v1266 = vld [vmem:[%s3 + $0x1c] sm:$0xf]
      %v1267 = vld [vmem:[%s3 + $0x20] sm:$0xf]
      %v1268 = vld [vmem:[%s3 + $0x24] sm:$0xf]
      %v1269 = vld [vmem:[%s3 + $0x28] sm:$0xf]
      %v1270 = vld [vmem:[%s3 + $0x2c] sm:$0xf]
      %v1271 = vld [vmem:[%s3 + $0x30] sm:$0xf]
      %v1272 = vld [vmem:[%s3 + $0x34] sm:$0x3]
      %v1277 = vcombine.low %v1252, %v1254
      %v1278 = vcombine.low %v1256, %v1258
      %v1280 = vunpack.c.l.s4 1983009808
      %v1281 = vunpack.c.0.s8 %v1280
      %v1282 = vlaneseq
      %v1283 = vshrl.u32 %v1282, 7
      %v1284 = vsub.s32 %v1281, %v1283
      %v1285 = vrot.slane %v1277, %v1284
      %v1287 = vunpack.c.l.s4 1983009808
      %v1288 = vunpack.c.0.s8 %v1287
      %v1289 = vlaneseq
      %v1290 = vshrl.u32 %v1289, 7
      %v1291 = vsub.s32 %v1288, %v1290
      %v1292 = vrot.slane %v1278, %v1291
      %v1293 = vcombine.low %v1285, %v1292
      %v1308 = vunpack.c.l.b16 %v1259
      %v1309 = vunpack.c.l.b16 %v1260
      %v1310 = vunpack.c.l.b16 %v1261
      %v1311 = vunpack.c.l.b16 %v1262
      %v1312 = vunpack.c.l.b16 %v1263
      %v1313 = vunpack.c.l.b16 %v1264
      %v1314 = vunpack.c.l.b16 %v1265
      %v1315 = vunpack.c.l.b16 %v1266
      %v1316 = vunpack.c.l.b16 %v1267
      %v1317 = vunpack.c.l.b16 %v1268
      %v1318 = vunpack.c.l.b16 %v1269
      %v1319 = vunpack.c.l.b16 %v1270
      %v1320 = vunpack.c.l.b16 %v1271
      %v1321 = vunpack.c.l.b16 %v1272
      %v1322 = vpack.c.b16 %v1309, %v1308
      %v1323 = vpack.c.b16 %v1311, %v1310
      %v1324 = vpack.c.b16 %v1313, %v1312
      %v1325 = vpack.c.b16 %v1315, %v1314
      %v1326 = vpack.c.b16 %v1317, %v1316
      %v1327 = vpack.c.b16 %v1319, %v1318
      %v1328 = vpack.c.b16 %v1321, %v1320
      %vm1335 = vcmask 883712
      %v1337 = vsel %vm1335, %v1293, 0
      %vm1339 = vcmask 1045504
      %v1341 = vsel %vm1339, %v1328, 0
      %1343 = vmatprep.subr.bf16.mxu0 0
      %1344 = vmatpush1.bf16.msra.mxu0 %v1322
      %1345 = vmatprep.subr.bf16.mxu0 0
      %1346 = vmatpush1.bf16.msra.mxu0 %v1323
      %1347 = vmatprep.subr.bf16.mxu0 0
      %1348 = vmatpush1.bf16.msra.mxu0 %v1324
      %1349 = vmatprep.subr.bf16.mxu0 0
      %1350 = vmatpush1.bf16.msra.mxu0 %v1325
      %1351 = vmatprep.subr.bf16.mxu0 0
      %1352 = vmatpush1.bf16.msra.mxu0 %v1326
      %1353 = vmatprep.subr.bf16.mxu0 0
      %1354 = vmatpush1.bf16.msra.mxu0 %v1327
      %1355 = vmatprep.subr.bf16.mxu0 0
      %1356 = vmatpush1.bf16.msra.mxu0 %v1341
      %1357 = vmatprep.subr.bf16.mxu0 0
      %1358 = vmatpush1.bf16.msra.mxu0 0
      %1359 = vmatprep.subr.bf16.mxu0 0
      %1360 = vmatpush1.bf16.msra.mxu0 0
      %1361 = vmatprep.subr.bf16.mxu0 0
      %1362 = vmatpush1.bf16.msra.mxu0 0
      %1363 = vmatprep.subr.bf16.mxu0 0
      %1364 = vmatpush1.bf16.msra.mxu0 0
      %1365 = vmatprep.subr.bf16.mxu0 0
      %1366 = vmatpush1.bf16.msra.mxu0 0
      %1367 = vmatprep.subr.bf16.mxu0 0
      %1368 = vmatpush1.bf16.msra.mxu0 0
      %1369 = vmatprep.subr.bf16.mxu0 0
      %1370 = vmatpush1.bf16.msra.mxu0 0
      %1371 = vmatprep.subr.bf16.mxu0 0
      %1372 = vmatpush1.bf16.msra.mxu0 0
      %1373 = vmatprep.subr.bf16.mxu0 0
      %1374 = vmatpush1.bf16.msra.mxu0 0
      %1375 = vmatprep.mubr.bf16.mxu0 0
      %1376 = vmatmul.mubr.bf16.gmra.mrb[0].mxu0 %v1337
      %v1377 = vpop.f32.mrb[0].mxu0
      %v1378 = vadd.f32 0.0, %v1377
      %v1379 = vpop.f32.mrb[0].mxu0
      %v1380 = vpop.f32.mrb[0].mxu0
      %v1381 = vadd.f32 0.0, %v1380
      %v1382 = vpop.f32.mrb[0].mxu0
      %1383 = vdwg.mxu0
      %v1384 = vsel %vm824, %v1378, 0.0
      %v1385 = vsel %vm824, %v1381, 0.0
      %v1386 = vadd.f32 %v1384, %v1385
      %v1387 = vrot.slane %v1386, 4
      %v1388 = vadd.f32 %v1386, %v1387
      %v1389 = vrot.slane %v1388, 2
      %v1390 = vadd.f32 %v1388, %v1389
      %v1391 = vrot.slane %v1390, 1
      %v1392 = vadd.f32 %v1390, %v1391
      %v1393 = vmul.f32 %v1378, %v1378
      %v1394 = vmul.f32 %v1381, %v1381
      %v1395 = vsel %vm824, %v1393, 0.0
      %v1396 = vsel %vm824, %v1394, 0.0
      %v1397 = vadd.f32 %v1395, %v1396
      %v1398 = vrot.slane %v1397, 4
      %v1399 = vadd.f32 %v1397, %v1398
      %v1400 = vrot.slane %v1399, 2
      %v1401 = vadd.f32 %v1399, %v1400
      %v1402 = vrot.slane %v1401, 1
      %v1403 = vadd.f32 %v1401, %v1402
      %vm1404 = vcmask 1040384
      %v1405 = vsel %vm1404, %v1392, %v1403
      %vm1406 = vcmask 58368
      %1407 = vst.msk [vmem:[%s411] sm:$0x3] %vm1406, %v1405
      %v1408 = vld [vmem:[%s4] sm:$0x1]
      %v1410 = vlaneseq
      %v1411 = vshrl.u32 %v1410, 7
      %v1412 = vsub.s32 0, %v1411
      %v1413 = vrot.slane %v1408, %v1412
      %v1415 = vadd.f32 %v1378, %v1413
      %v1416 = vadd.f32 %v1381, %v1413
      %v1419 = vcombine.high %v1415, %v1415
      %v1420 = vcombine.high %v1416, %v1416
      %v1423 = vpack.c.bf16 %v1415, %v1415
      %v1424 = vpack.c.bf16 %v1419, %v1419
      %v1425 = vpack.c.bf16 %v1416, %v1416
      %v1426 = vpack.c.bf16 %v1420, %v1420
      %1427 = vst.msk [vmem:[%s403] sm:$0x3] %vm1406, %v1423
      %1428 = vst.msk [vmem:[%s403 + $0x2] sm:$0x3] %vm1406, %v1424
      %1429 = vst.msk [vmem:[%s403 + $0x4] sm:$0x3] %vm1406, %v1425
      %1430 = vst.msk [vmem:[%s403 + $0x6] sm:$0x3] %vm1406, %v1426
      %p1431 = scmp.lt.s32.totalorder %s22, 1
      %s1432 = scalar_select %p1431, %s22, 1
      %p1433 = scmp.lt.s32.totalorder %s23, 3
      %s1434 = scalar_select %p1433, %s23, 3
      %s1435 = smul.addr %s1434, 4
      %s1436 = smul.addr %s1432, 16
      %s1437 = sadd.s32 %s1435, %s1436
      %s1438 = smul.addr %s1437, 2
      %s1439 = scalar_lea.vmem %s5, %s1438
      %p1440 = scmp.lt.s32.totalorder %s22, 1
      %s1441 = scalar_select %p1440, %s22, 1
      %p1442 = scmp.lt.s32.totalorder %s23, 3
      %s1443 = scalar_select %p1442, %s23, 3
      %s1444 = smul.addr %s1441, 4
      %s1445 = sadd.s32 %s1443, %s1444
      %s1446 = smul.addr %s1445, 2
      %s1447 = scalar_lea.vmem %s6, %s1446
      // Predicated region
      $region41: #{down_block_forward.3} parent=39 // pred_check
        %p1448 = pneg %p186
      $region42: #{down_block_forward.3} parent=39 // pred_check_branch
        %1450 = sbr.rel (%p1448) target = $region44
      $region43: #{down_block_forward.3} parent=39 // pred_region
        _
      $region44: #{down_block_forward.3} parent=39 // pred_fallthru
        _
      // Predicated region
      $region45: #{down_block_forward.3} parent=39 // pred_check
        %p1451 = pneg %p214
      $region46: #{down_block_forward.3} parent=39 // pred_check_branch
        %1453 = sbr.rel (%p1451) target = $region48
      $region47: #{down_block_forward.3} parent=39 // pred_region
        _
      $region48: #{down_block_forward.3} parent=39 // pred_fallthru
        _
    $region40: #{down_block_forward.3} parent=5 // pred_fallthru
      _
    %p1454 = scmp.le.s32.totalorder 2, %s13
    // Predicated region
    $region49: #{down_block_forward.3} parent=5 // pred_check
      %p1455 = pneg %p1454
    $region50: #{down_block_forward.3} parent=5 // pred_check_branch
      %1457 = sbr.rel (%p1455) target = $region52
    $region51: #{down_block_forward.3} parent=5 // pred_region
      %s1458 = ssub.s32 %s13, 2
      // Predicated region
      $region53: #{down_block_forward.3} parent=51 // pred_check
        %p1459 = pneg %p192
      $region54: #{down_block_forward.3} parent=51 // pred_check_branch
        %1461 = sbr.rel (%p1459) target = $region56
      $region55: #{down_block_forward.3} parent=51 // pred_region
        %p1462 = scmp.lt.s32.totalorder %s24, 1
        %s1463 = scalar_select %p1462, %s24, 1
        %p1464 = scmp.lt.s32.totalorder %s25, 3
        %s1465 = scalar_select %p1464, %s25, 3
        %s1466 = smul.addr %s1465, 4
        %s1467 = smul.addr %s1463, 16
        %s1468 = sadd.s32 %s1466, %s1467
        %s1469 = smul.addr %s1468, 2
        %s1470 = scalar_lea.vmem %s5, %s1469
      $region56: #{down_block_forward.3} parent=51 // pred_fallthru
        _
      // Predicated region
      $region57: #{down_block_forward.3} parent=51 // pred_check
        %p1471 = pneg %p220
      $region58: #{down_block_forward.3} parent=51 // pred_check_branch
        %1473 = sbr.rel (%p1471) target = $region60
      $region59: #{down_block_forward.3} parent=51 // pred_region
        %p1474 = scmp.lt.s32.totalorder %s24, 1
        %s1475 = scalar_select %p1474, %s24, 1
        %p1476 = scmp.lt.s32.totalorder %s25, 3
        %s1477 = scalar_select %p1476, %s25, 3
        %s1478 = smul.addr %s1475, 4
        %s1479 = sadd.s32 %s1477, %s1478
        %s1480 = smul.addr %s1479, 2
        %s1481 = scalar_lea.vmem %s6, %s1480
      $region60: #{down_block_forward.3} parent=51 // pred_fallthru
        _
    $region52: #{down_block_forward.3} parent=5 // pred_fallthru
      _
  $region6: #{down_block_forward.3} parent=0 // loop_footer
    %s17 = sadd.s32 1, %s13
  $region7: #{down_block_forward.3} parent=0 // loop_footer_branch
    %12 = sbr.rel target = $region3
  $region8: #{down_block_forward.3} parent=0 // loop_exit
    _

// kernel: down_block_forward.5
$region0: #{down_block_forward.5}
  #allocation0 [shape = 'u32[]', space=smem, size = 0x4, offset = 0x4, fixed_abs, tag = 'smem constant byte address 0x4 - core index']
  #allocation1 [shape = 'u32[144,128]{1,0:T(1,128)}', space=vmem, size = 0x12000, scoped, tag = 'internal scratch']
  %s0 = inlined_call_operand.vmem [shape: bf16[2,4,4,4,8], index: 0, kind: input, shape index: {}]
  %s1 = inlined_call_operand.vmem [shape: f32[2,1,8], index: 1, kind: input, shape index: {}]
  %s2 = inlined_call_operand.vmem [shape: f32[2,1,8], index: 2, kind: input, shape index: {}]
  %s3 = inlined_call_operand.hbm [shape: f32[2,4,4,4,8], index: 3, kind: output, shape index: {}]
  %s4 = sld [smem:[#allocation0]]
  $region45: #{down_block_forward.5} parent=0
    _
  %s6 = ssub.s32 1, %s4
  %s7 = scalar_select 0, %s6, %s4
  $region1: #{down_block_forward.5} parent=0
    #allocation2 [shape = 'u8[16384]{0}', space=vmem, size = 0x4000, scoped, tag = 'output window, operand 0']
    #allocation3 [shape = 's32[2]{0}', space=sflag, size = 0x8, scoped, tag = 'scoped memory for down_block_forward.5']
    %8 = vsyncpa [#allocation3], 0
    %s9 = scalar_lea.sflag [#allocation3], 1
    %10 = vsyncpa %s9, 0
    loop: start=0, step=1, limit=10
    $region2: #{down_block_forward.5} parent=1 // loop_pre_header
      _
    $region3: #{down_block_forward.5} parent=1 // loop_header
      %s12 = sphi 0, %s16
      %p13 = scmp.ge.s32.totalorder %s12, 10
      %s19 = sphi 0, %s31
      %s20 = sphi 0, %s27
      %s21 = sphi 0, %s19
      %s22 = sphi 0, %s20
      %s23 = sphi 0, %s21
      %s24 = sphi 0, %s22
      %s36 = sphi 0, %s38
      %s39 = sphi 0, %s36
      %s40 = sphi 0, %s39
      %s56 = sphi 0, %s40
      %s62 = sphi 0, %s64
      %s65 = sphi 0, %s62
      %s66 = sphi 0, %s65
      %s82 = sphi 0, %s66
      %s88 = sphi 0, %s90
      %s91 = sphi 0, %s88
      %s92 = sphi 0, %s91
      %s108 = sphi 0, %s92
      %s116 = sphi 0, %s118
      %s119 = sphi 0, %s116
      %s120 = sphi 0, %s119
      %s136 = sphi 0, %s120
    $region4: #{down_block_forward.5} parent=1 // loop_header_branch
      %15 = sbr.rel (%p13) target = $region8
    $region5: #{down_block_forward.5} parent=1 // loop_body
      %s17 = ssub.s32 %s12, 1
      %s18 = ssub.s32 %s12, 2
      %s25 = sadd.s32 1, %s20
      %p26 = scmp.ge.s32.totalorder %s25, 4
      %s27 = scalar_select %p26, 0, %s25
      %s28 = sadd.s32 1, %s19
      %s29 = scalar_select %p26, %s28, %s19
      %p30 = scmp.ge.s32.totalorder %s29, 2
      %s31 = scalar_select %p30, 0, %s29
      %s32 = ssub.s32 %s19, %s31
      %s33 = ssub.s32 %s20, %s27
      %s34 = sor.u32 %s32, %s33
      %p35 = scmp.eq.s32.totalorder %s34, 0
      %s37 = sadd.s32 %s36, 1
      %s38 = scalar_select %p35, %s36, %s37
      %p41 = pneg %p35
      %p42 = scmp.eq.s32.totalorder %s12, 7
      %p43 = por %p41, %p42
      %p44 = scmp.ne.s32.totalorder %s36, %s39
      %p45 = scmp.eq.s32.totalorder %s12, 0
      %p46 = por %p44, %p45
      %p47 = scmp.ne.s32.totalorder %s36, %s39
      %p48 = scmp.eq.s32.totalorder %s17, 7
      %p49 = por %p47, %p48
      %p50 = scmp.ne.s32.totalorder %s39, %s40
      %p51 = scmp.eq.s32.totalorder %s17, 0
      %p52 = por %p50, %p51
      %p53 = scmp.ne.s32.totalorder %s39, %s40
      %p54 = scmp.eq.s32.totalorder %s18, 7
      %p55 = por %p53, %p54
      %p57 = scmp.ne.s32.totalorder %s40, %s56
      %p58 = scmp.eq.s32.totalorder %s18, 0
      %p59 = por %p57, %p58
      %s60 = ssub.s32 %s19, %s31
      %p61 = scmp.eq.s32.totalorder %s60, 0
      %s63 = sadd.s32 %s62, 1
      %s64 = scalar_select %p61, %s62, %s63
      %p67 = pneg %p61
      %p68 = scmp.eq.s32.totalorder %s12, 7
      %p69 = por %p67, %p68
      %p70 = scmp.ne.s32.totalorder %s62, %s65
      %p71 = scmp.eq.s32.totalorder %s12, 0
      %p72 = por %p70, %p71
      %p73 = scmp.ne.s32.totalorder %s62, %s65
      %p74 = scmp.eq.s32.totalorder %s17, 7
      %p75 = por %p73, %p74
      %p76 = scmp.ne.s32.totalorder %s65, %s66
      %p77 = scmp.eq.s32.totalorder %s17, 0
      %p78 = por %p76, %p77
      %p79 = scmp.ne.s32.totalorder %s65, %s66
      %p80 = scmp.eq.s32.totalorder %s18, 7
      %p81 = por %p79, %p80
      %p83 = scmp.ne.s32.totalorder %s66, %s82
      %p84 = scmp.eq.s32.totalorder %s18, 0
      %p85 = por %p83, %p84
      %s86 = ssub.s32 %s19, %s31
      %p87 = scmp.eq.s32.totalorder %s86, 0
      %s89 = sadd.s32 %s88, 1
      %s90 = scalar_select %p87, %s88, %s89
      %p93 = pneg %p87
      %p94 = scmp.eq.s32.totalorder %s12, 7
      %p95 = por %p93, %p94
      %p96 = scmp.ne.s32.totalorder %s88, %s91
      %p97 = scmp.eq.s32.totalorder %s12, 0
      %p98 = por %p96, %p97
      %p99 = scmp.ne.s32.totalorder %s88, %s91
      %p100 = scmp.eq.s32.totalorder %s17, 7
      %p101 = por %p99, %p100
      %p102 = scmp.ne.s32.totalorder %s91, %s92
      %p103 = scmp.eq.s32.totalorder %s17, 0
      %p104 = por %p102, %p103
      %p105 = scmp.ne.s32.totalorder %s91, %s92
      %p106 = scmp.eq.s32.totalorder %s18, 7
      %p107 = por %p105, %p106
      %p109 = scmp.ne.s32.totalorder %s92, %s108
      %p110 = scmp.eq.s32.totalorder %s18, 0
      %p111 = por %p109, %p110
      %s112 = ssub.s32 %s19, %s31
      %s113 = ssub.s32 %s20, %s27
      %s114 = sor.u32 %s112, %s113
      %p115 = scmp.eq.s32.totalorder %s114, 0
      %s117 = sadd.s32 %s116, 1
      %s118 = scalar_select %p115, %s116, %s117
      %p121 = pneg %p115
      %p122 = scmp.eq.s32.totalorder %s12, 7
      %p123 = por %p121, %p122
      %p124 = scmp.ne.s32.totalorder %s116, %s119
      %p125 = scmp.eq.s32.totalorder %s12, 0
      %p126 = por %p124, %p125
      %p127 = scmp.ne.s32.totalorder %s116, %s119
      %p128 = scmp.eq.s32.totalorder %s17, 7
      %p129 = por %p127, %p128
      %p130 = scmp.ne.s32.totalorder %s119, %s120
      %p131 = scmp.eq.s32.totalorder %s17, 0
      %p132 = por %p130, %p131
      %p133 = scmp.ne.s32.totalorder %s119, %s120
      %p134 = scmp.eq.s32.totalorder %s18, 7
      %p135 = por %p133, %p134
      %p137 = scmp.ne.s32.totalorder %s120, %s136
      %p138 = scmp.eq.s32.totalorder %s18, 0
      %p139 = por %p137, %p138
      %p140 = scmp.le.s32.totalorder 1, %s12
      %p141 = scmp.lt.s32.totalorder %s12, 9
      %p142 = pnand %p140, %p141
      %p143 = pneg %p142
      // Predicated region
      $region9: #{down_block_forward.5} parent=5 // pred_check
        _
      $region10: #{down_block_forward.5} parent=5 // pred_check_branch
        %145 = sbr.rel (%p142) target = $region12
      $region11: #{down_block_forward.5} parent=5 // pred_region
        %s146 = ssub.s32 %s12, 1
      $region12: #{down_block_forward.5} parent=5 // pred_fallthru
        _
      %p147 = scmp.lt.s32.totalorder %s12, 8
      // Predicated region
      $region13: #{down_block_forward.5} parent=5 // pred_check
        %p148 = pneg %p147
      $region14: #{down_block_forward.5} parent=5 // pred_check_branch
        %150 = sbr.rel (%p148) target = $region16
      $region15: #{down_block_forward.5} parent=5 // pred_region
        // Predicated region
        $region17: #{down_block_forward.5} parent=15 // pred_check
          %p151 = pneg %p46
        $region18: #{down_block_forward.5} parent=15 // pred_check_branch
          %153 = sbr.rel (%p151) target = $region20
        $region19: #{down_block_forward.5} parent=15 // pred_region
          %p154 = scmp.lt.s32.totalorder %s19, 1
          %s155 = scalar_select %p154, %s19, 1
          %p156 = scmp.lt.s32.totalorder %s20, 3
          %s157 = scalar_select %p156, %s20, 3
          %s158 = smul.addr %s157, 4
          %s159 = smul.addr %s155, 16
          %s160 = sadd.s32 %s158, %s159
          %s161 = smul.addr %s160, 2
          %s162 = scalar_lea.vmem %s0, %s161
        $region20: #{down_block_forward.5} parent=15 // pred_fallthru
          _
        // Predicated region
        $region21: #{down_block_forward.5} parent=15 // pred_check
          %p163 = pneg %p72
        $region22: #{down_block_forward.5} parent=15 // pred_check_branch
          %165 = sbr.rel (%p163) target = $region24
        $region23: #{down_block_forward.5} parent=15 // pred_region
          %p166 = scmp.lt.s32.totalorder %s19, 1
          %s167 = scalar_select %p166, %s19, 1
          %s168 = scalar_lea.vmem %s1, %s167
        $region24: #{down_block_forward.5} parent=15 // pred_fallthru
          _
        // Predicated region
        $region25: #{down_block_forward.5} parent=15 // pred_check
          %p169 = pneg %p98
        $region26: #{down_block_forward.5} parent=15 // pred_check_branch
          %171 = sbr.rel (%p169) target = $region28
        $region27: #{down_block_forward.5} parent=15 // pred_region
          %p172 = scmp.lt.s32.totalorder %s19, 1
          %s173 = scalar_select %p172, %s19, 1
          %s174 = scalar_lea.vmem %s2, %s173
        $region28: #{down_block_forward.5} parent=15 // pred_fallthru
          _
      $region16: #{down_block_forward.5} parent=5 // pred_fallthru
        _
      %p175 = scmp.le.s32.totalorder 1, %s12
      %p176 = scmp.lt.s32.totalorder %s12, 9
      %p177 = pnand %p175, %p176
      %p178 = pneg %p177
      // Predicated region
      $region29: #{down_block_forward.5} parent=5 // pred_check
        _
      $region30: #{down_block_forward.5} parent=5 // pred_check_branch
        %180 = sbr.rel (%p177) target = $region32
      $region31: #{down_block_forward.5} parent=5 // pred_region
        %s181 = ssub.s32 %s12, 1
        %p182 = scmp.lt.s32.totalorder %s21, 1
        %s183 = scalar_select %p182, %s21, 1
        %p184 = scmp.lt.s32.totalorder %s22, 3
        %s185 = scalar_select %p184, %s22, 3
        %s186 = smul.addr %s185, 4
        %s187 = smul.addr %s183, 16
        %s188 = sadd.s32 %s186, %s187
        %s189 = smul.addr %s188, 2
        %s190 = scalar_lea.vmem %s0, %s189
        %p191 = pneg %p52
        %p192 = pneg %p49
        %p193 = scmp.lt.s32.totalorder %s21, 1
        %s194 = scalar_select %p193, %s21, 1
        %s195 = scalar_lea.vmem %s1, %s194
        %p196 = pneg %p78
        %p197 = pneg %p75
        %p198 = scmp.lt.s32.totalorder %s21, 1
        %s199 = scalar_select %p198, %s21, 1
        %s200 = scalar_lea.vmem %s2, %s199
        %p201 = pneg %p104
        %p202 = pneg %p101
        %p203 = pneg %p132
        %p204 = pneg %p129
        %s205 = sand.u32 %s119, 1
        %s206 = scalar_lea.sflag [#allocation3], %s205
        %s207 = sand.u32 %s119, 1
        %s208 = smul.addr %s207, 16
        %s209 = scalar_lea.vmem [#allocation2], %s208
        %p210 = scmp.lt.s32.totalorder %s21, 1
        %s211 = scalar_select %p210, %s21, 1
        %p212 = scmp.lt.s32.totalorder %s22, 3
        %s213 = scalar_select %p212, %s22, 3
        %s214 = smul.addr %s213, 4
        %s215 = smul.addr %s211, 16
        %s216 = sadd.s32 %s214, %s215
        %s217 = smul.addr %s216, 2
        %s218 = scalar_lea.vmem %s0, %s217
        %p219 = scmp.lt.s32.totalorder %s21, 1
        %s220 = scalar_select %p219, %s21, 1
        %s221 = scalar_lea.vmem %s1, %s220
        %p222 = scmp.lt.s32.totalorder %s21, 1
        %s223 = scalar_select %p222, %s21, 1
        %s224 = scalar_lea.vmem %s2, %s223
        %v225 = vld [vmem:[%s218] sm:$0x3]
        %v226 = vld [vmem:[%s218 + $0x2] sm:$0x3]
        %v227 = vld [vmem:[%s218 + $0x4] sm:$0x3]
        %v228 = vld [vmem:[%s218 + $0x6] sm:$0x3]
        %v229 = vunpack.c.l.bf16 %v225
        %v230 = vunpack.c.l.bf16 %v226
        %v231 = vunpack.c.l.bf16 %v227
        %v232 = vunpack.c.l.bf16 %v228
        %v233 = vld [vmem:[%s221] sm:$0x1]
        %v234 = vld [vmem:[%s224] sm:$0x1]
        %v236 = vlaneseq
        %v237 = vshrl.u32 %v236, 7
        %v238 = vsub.s32 0, %v237
        %v239 = vrot.slane %v233, %v238
        %v241 = vsub.f32 %v229, %v239
        %v242 = vsub.f32 %v230, %v239
        %v243 = vsub.f32 %v231, %v239
        %v244 = vsub.f32 %v232, %v239
        %v246 = vlaneseq
        %v247 = vshrl.u32 %v246, 7
        %v248 = vsub.s32 0, %v247
        %v249 = vrot.slane %v234, %v248
        %v251 = vmul.f32 %v241, %v249
        %v252 = vmul.f32 %v242, %v249
        %v253 = vmul.f32 %v243, %v249
        %v254 = vmul.f32 %v244, %v249
        %vm255 = vcmp.ge.f32.partialorder %v251, 0.0
        %vm256 = vcmp.ge.f32.partialorder %v252, 0.0
        %vm257 = vcmp.ge.f32.partialorder %v253, 0.0
        %vm258 = vcmp.ge.f32.partialorder %v254, 0.0
        %v259 = vmul.f32 %v251, 0.2
        %v260 = vmul.f32 %v252, 0.2
        %v261 = vmul.f32 %v253, 0.2
        %v262 = vmul.f32 %v254, 0.2
        %v263 = vsel %vm255, %v251, %v259
        %v264 = vsel %vm256, %v252, %v260
        %v265 = vsel %vm257, %v253, %v261
        %v266 = vsel %vm258, %v254, %v262
        %vm267 = vcmask 60416
        %268 = vst.msk [vmem:[%s209] sm:$0xf] %vm267, %v263
        %269 = vst.msk [vmem:[%s209 + $0x4] sm:$0xf] %vm267, %v264
        %270 = vst.msk [vmem:[%s209 + $0x8] sm:$0xf] %vm267, %v265
        %271 = vst.msk [vmem:[%s209 + $0xc] sm:$0xf] %vm267, %v266
        %s272 = sand.u32 %s119, 1
        %s273 = scalar_lea.sflag [#allocation3], %s272
        %s274 = sand.u32 %s119, 1
        %s275 = smul.addr %s274, 16
        %s276 = scalar_lea.vmem [#allocation2], %s275
        // Predicated region
        $region33: #{down_block_forward.5} parent=31 // pred_check
          %p277 = pneg %p129
        $region34: #{down_block_forward.5} parent=31 // pred_check_branch
          %279 = sbr.rel (%p277) target = $region36
        $region35: #{down_block_forward.5} parent=31 // pred_region
          %s281 = ssub.s32 256, 256
          %282 = vsyncadd %s273, %s281
          %s283 = smul.addr %s22, 4
          %s284 = smul.addr %s21, 16
          %s285 = sadd.s32 %s283, %s284
          %s286 = smul.addr %s285, 64
          %s287 = scalar_lea.hbm %s3, %s286
          %s288 = sshll.u32 %s276, 4
          %s289 = int_to_ptr.vmem [resolvable:$true] %s288
          %294 = dma.vmem_to_hbm [thread:$0]  %s289, 256, %s287, %s273, 64, 64, 4
        $region36: #{down_block_forward.5} parent=31 // pred_fallthru
          _
      $region32: #{down_block_forward.5} parent=5 // pred_fallthru
        _
      %p295 = scmp.le.s32.totalorder 2, %s12
      // Predicated region
      $region37: #{down_block_forward.5} parent=5 // pred_check
        %p296 = pneg %p295
      $region38: #{down_block_forward.5} parent=5 // pred_check_branch
        %298 = sbr.rel (%p296) target = $region40
      $region39: #{down_block_forward.5} parent=5 // pred_region
        %s299 = ssub.s32 %s12, 2
        // Predicated region
        $region41: #{down_block_forward.5} parent=39 // pred_check
          %p300 = pneg %p135
        $region42: #{down_block_forward.5} parent=39 // pred_check_branch
          %302 = sbr.rel (%p300) target = $region44
        $region43: #{down_block_forward.5} parent=39 // pred_region
          %s303 = sand.u32 %s120, 1
          %s304 = scalar_lea.sflag [#allocation3], %s303
          %s305 = sand.u32 %s120, 1
          %s306 = smul.addr %s305, 16
          %s307 = scalar_lea.vmem [#allocation2], %s306
          %308 = dma.done %s304, 256
        $region44: #{down_block_forward.5} parent=39 // pred_fallthru
          _
      $region40: #{down_block_forward.5} parent=5 // pred_fallthru
        _
    $region6: #{down_block_forward.5} parent=1 // loop_footer
      %s16 = sadd.s32 1, %s12
    $region7: #{down_block_forward.5} parent=1 // loop_footer_branch
      %11 = sbr.rel target = $region3
    $region8: #{down_block_forward.5} parent=1 // loop_exit
      _
    %309 = vsyncpa [#allocation3], 1
    %s310 = scalar_lea.sflag [#allocation3], 1
    %311 = vsyncpa %s310, 1

// kernel: down_block_forward.4
$region0: #{down_block_forward.4}
  #allocation0 [shape = 'u32[]', space=smem, size = 0x4, offset = 0x4, fixed_abs, tag = 'smem constant byte address 0x4 - core index']
  #allocation1 [shape = 'u32[144,128]{1,0:T(1,128)}', space=vmem, size = 0x12000, scoped, tag = 'internal scratch']
  %s0 = inlined_call_operand.vmem [shape: bf16[2,4,4,4,8], index: 0, kind: input, shape index: {}, may-alias: {0,1,2}]
  %s1 = inlined_call_operand.vmem [shape: bf16[2,4,4,4,8], index: 1, kind: input, shape index: {}, may-alias: {0,1,2}]
  %s2 = inlined_call_operand.vmem [shape: bf16[2,4,4,4,8], index: 2, kind: input, shape index: {}, may-alias: {0,1,2}]
  %s3 = inlined_call_operand.vmem [shape: f32[2,1,8], index: 3, kind: input, shape index: {}]
  %s4 = inlined_call_operand.vmem [shape: f32[2,1,8], index: 4, kind: input, shape index: {}]
  %s5 = inlined_call_operand.vmem [shape: bf16[216,8], index: 5, kind: input, shape index: {}]
  %s6 = inlined_call_operand.vmem [shape: f32[1,8], index: 6, kind: input, shape index: {}]
  %s7 = inlined_call_operand.vmem [shape: bf16[2,4,4,4,8], index: 7, kind: output, shape index: {0}]
  %s8 = inlined_call_operand.vmem [shape: f32[2,4,2,8], index: 8, kind: output, shape index: {1}]
  %9 = xla_tuple %s7, %s8
  %s10 = sld [smem:[#allocation0]]
  $region69: #{down_block_forward.4} parent=0
    _
  %s12 = ssub.s32 1, %s10
  %s13 = scalar_select 0, %s12, %s10
  loop: start=0, step=1, limit=10
  $region2: #{down_block_forward.4} parent=0 // loop_pre_header
    _
  $region3: #{down_block_forward.4} parent=0 // loop_header
    %s15 = sphi 0, %s19
    %p16 = scmp.ge.s32.totalorder %s15, 10
    %s22 = sphi 0, %s34
    %s23 = sphi 0, %s30
    %s24 = sphi 0, %s22
    %s25 = sphi 0, %s23
    %s26 = sphi 0, %s24
    %s27 = sphi 0, %s25
    %s45 = sphi 0, %s47
    %s48 = sphi 0, %s45
    %s49 = sphi 0, %s48
    %s65 = sphi 0, %s49
    %s73 = sphi 0, %s75
    %s76 = sphi 0, %s73
    %s77 = sphi 0, %s76
    %s93 = sphi 0, %s77
    %s107 = sphi 0, %s109
    %s110 = sphi 0, %s107
    %s111 = sphi 0, %s110
    %s127 = sphi 0, %s111
    %s133 = sphi 0, %s135
    %s136 = sphi 0, %s133
    %s137 = sphi 0, %s136
    %s153 = sphi 0, %s137
    %s159 = sphi 0, %s161
    %s162 = sphi 0, %s159
    %s163 = sphi 0, %s162
    %s179 = sphi 0, %s163
    %s183 = sphi 0, %s183
    %s185 = sphi 0, %s183
    %s186 = sphi 0, %s185
    %s200 = sphi 0, %s186
    %s204 = sphi 0, %s204
    %s206 = sphi 0, %s204
    %s207 = sphi 0, %s206
    %s221 = sphi 0, %s207
    %s229 = sphi 0, %s231
    %s232 = sphi 0, %s229
    %s233 = sphi 0, %s232
    %s249 = sphi 0, %s233
    %s257 = sphi 0, %s259
    %s260 = sphi 0, %s257
    %s261 = sphi 0, %s260
    %s277 = sphi 0, %s261
  $region4: #{down_block_forward.4} parent=0 // loop_header_branch
    %18 = sbr.rel (%p16) target = $region8
  $region5: #{down_block_forward.4} parent=0 // loop_body
    %s20 = ssub.s32 %s15, 1
    %s21 = ssub.s32 %s15, 2
    %s28 = sadd.s32 1, %s23
    %p29 = scmp.ge.s32.totalorder %s28, 4
    %s30 = scalar_select %p29, 0, %s28
    %s31 = sadd.s32 1, %s22
    %s32 = scalar_select %p29, %s31, %s22
    %p33 = scmp.ge.s32.totalorder %s32, 2
    %s34 = scalar_select %p33, 0, %s32
    %s35 = ssub.s32 %s23, 1
    %p36 = scmp.gt.s32.totalorder %s35, 0
    %s37 = scalar_select %p36, %s35, 0
    %s38 = ssub.s32 %s30, 1
    %p39 = scmp.gt.s32.totalorder %s38, 0
    %s40 = scalar_select %p39, %s38, 0
    %s41 = ssub.s32 %s22, %s34
    %s42 = ssub.s32 %s37, %s40
    %s43 = sor.u32 %s41, %s42
    %p44 = scmp.eq.s32.totalorder %s43, 0
    %s46 = sadd.s32 %s45, 1
    %s47 = scalar_select %p44, %s45, %s46
    %p50 = pneg %p44
    %p51 = scmp.eq.s32.totalorder %s15, 7
    %p52 = por %p50, %p51
    %p53 = scmp.ne.s32.totalorder %s45, %s48
    %p54 = scmp.eq.s32.totalorder %s15, 0
    %p55 = por %p53, %p54
    %p56 = scmp.ne.s32.totalorder %s45, %s48
    %p57 = scmp.eq.s32.totalorder %s20, 7
    %p58 = por %p56, %p57
    %p59 = scmp.ne.s32.totalorder %s48, %s49
    %p60 = scmp.eq.s32.totalorder %s20, 0
    %p61 = por %p59, %p60
    %p62 = scmp.ne.s32.totalorder %s48, %s49
    %p63 = scmp.eq.s32.totalorder %s21, 7
    %p64 = por %p62, %p63
    %p66 = scmp.ne.s32.totalorder %s49, %s65
    %p67 = scmp.eq.s32.totalorder %s21, 0
    %p68 = por %p66, %p67
    %s69 = ssub.s32 %s22, %s34
    %s70 = ssub.s32 %s23, %s30
    %s71 = sor.u32 %s69, %s70
    %p72 = scmp.eq.s32.totalorder %s71, 0
    %s74 = sadd.s32 %s73, 1
    %s75 = scalar_select %p72, %s73, %s74
    %p78 = pneg %p72
    %p79 = scmp.eq.s32.totalorder %s15, 7
    %p80 = por %p78, %p79
    %p81 = scmp.ne.s32.totalorder %s73, %s76
    %p82 = scmp.eq.s32.totalorder %s15, 0
    %p83 = por %p81, %p82
    %p84 = scmp.ne.s32.totalorder %s73, %s76
    %p85 = scmp.eq.s32.totalorder %s20, 7
    %p86 = por %p84, %p85
    %p87 = scmp.ne.s32.totalorder %s76, %s77
    %p88 = scmp.eq.s32.totalorder %s20, 0
    %p89 = por %p87, %p88
    %p90 = scmp.ne.s32.totalorder %s76, %s77
    %p91 = scmp.eq.s32.totalorder %s21, 7
    %p92 = por %p90, %p91
    %p94 = scmp.ne.s32.totalorder %s77, %s93
    %p95 = scmp.eq.s32.totalorder %s21, 0
    %p96 = por %p94, %p95
    %s97 = sadd.s32 %s23, 1
    %p98 = scmp.lt.s32.totalorder %s97, 3
    %s99 = scalar_select %p98, %s97, 3
    %s100 = sadd.s32 %s30, 1
    %p101 = scmp.lt.s32.totalorder %s100, 3
    %s102 = scalar_select %p101, %s100, 3
    %s103 = ssub.s32 %s22, %s34
    %s104 = ssub.s32 %s99, %s102
    %s105 = sor.u32 %s103, %s104
    %p106 = scmp.eq.s32.totalorder %s105, 0
    %s108 = sadd.s32 %s107, 1
    %s109 = scalar_select %p106, %s107, %s108
    %p112 = pneg %p106
    %p113 = scmp.eq.s32.totalorder %s15, 7
    %p114 = por %p112, %p113
    %p115 = scmp.ne.s32.totalorder %s107, %s110
    %p116 = scmp.eq.s32.totalorder %s15, 0
    %p117 = por %p115, %p116
    %p118 = scmp.ne.s32.totalorder %s107, %s110
    %p119 = scmp.eq.s32.totalorder %s20, 7
    %p120 = por %p118, %p119
    %p121 = scmp.ne.s32.totalorder %s110, %s111
    %p122 = scmp.eq.s32.totalorder %s20, 0
    %p123 = por %p121, %p122
    %p124 = scmp.ne.s32.totalorder %s110, %s111
    %p125 = scmp.eq.s32.totalorder %s21, 7
    %p126 = por %p124, %p125
    %p128 = scmp.ne.s32.totalorder %s111, %s127
    %p129 = scmp.eq.s32.totalorder %s21, 0
    %p130 = por %p128, %p129
    %s131 = ssub.s32 %s22, %s34
    %p132 = scmp.eq.s32.totalorder %s131, 0
    %s134 = sadd.s32 %s133, 1
    %s135 = scalar_select %p132, %s133, %s134
    %p138 = pneg %p132
    %p139 = scmp.eq.s32.totalorder %s15, 7
    %p140 = por %p138, %p139
    %p141 = scmp.ne.s32.totalorder %s133, %s136
    %p142 = scmp.eq.s32.totalorder %s15, 0
    %p143 = por %p141, %p142
    %p144 = scmp.ne.s32.totalorder %s133, %s136
    %p145 = scmp.eq.s32.totalorder %s20, 7
    %p146 = por %p144, %p145
    %p147 = scmp.ne.s32.totalorder %s136, %s137
    %p148 = scmp.eq.s32.totalorder %s20, 0
    %p149 = por %p147, %p148
    %p150 = scmp.ne.s32.totalorder %s136, %s137
    %p151 = scmp.eq.s32.totalorder %s21, 7
    %p152 = por %p150, %p151
    %p154 = scmp.ne.s32.totalorder %s137, %s153
    %p155 = scmp.eq.s32.totalorder %s21, 0
    %p156 = por %p154, %p155
    %s157 = ssub.s32 %s22, %s34
    %p158 = scmp.eq.s32.totalorder %s157, 0
    %s160 = sadd.s32 %s159, 1
    %s161 = scalar_select %p158, %s159, %s160
    %p164 = pneg %p158
    %p165 = scmp.eq.s32.totalorder %s15, 7
    %p166 = por %p164, %p165
    %p167 = scmp.ne.s32.totalorder %s159, %s162
    %p168 = scmp.eq.s32.totalorder %s15, 0
    %p169 = por %p167, %p168
    %p170 = scmp.ne.s32.totalorder %s159, %s162
    %p171 = scmp.eq.s32.totalorder %s20, 7
    %p172 = por %p170, %p171
    %p173 = scmp.ne.s32.totalorder %s162, %s163
    %p174 = scmp.eq.s32.totalorder %s20, 0
    %p175 = por %p173, %p174
    %p176 = scmp.ne.s32.totalorder %s162, %s163
    %p177 = scmp.eq.s32.totalorder %s21, 7
    %p178 = por %p176, %p177
    %p180 = scmp.ne.s32.totalorder %s163, %s179
    %p181 = scmp.eq.s32.totalorder %s21, 0
    %p182 = por %p180, %p181
    %s184 = sadd.s32 %s183, 1
    %p187 = scmp.eq.s32.totalorder %s15, 7
    %p188 = scmp.ne.s32.totalorder %s183, %s185
    %p189 = scmp.eq.s32.totalorder %s15, 0
    %p190 = por %p188, %p189
    %p191 = scmp.ne.s32.totalorder %s183, %s185
    %p192 = scmp.eq.s32.totalorder %s20, 7
    %p193 = por %p191, %p192
    %p194 = scmp.ne.s32.totalorder %s185, %s186
    %p195 = scmp.eq.s32.totalorder %s20, 0
    %p196 = por %p194, %p195
    %p197 = scmp.ne.s32.totalorder %s185, %s186
    %p198 = scmp.eq.s32.totalorder %s21, 7
    %p199 = por %p197, %p198
    %p201 = scmp.ne.s32.totalorder %s186, %s200
    %p202 = scmp.eq.s32.totalorder %s21, 0
    %p203 = por %p201, %p202
    %s205 = sadd.s32 %s204, 1
    %p208 = scmp.eq.s32.totalorder %s15, 7
    %p209 = scmp.ne.s32.totalorder %s204, %s206
    %p210 = scmp.eq.s32.totalorder %s15, 0
    %p211 = por %p209, %p210
    %p212 = scmp.ne.s32.totalorder %s204, %s206
    %p213 = scmp.eq.s32.totalorder %s20, 7
    %p214 = por %p212, %p213
    %p215 = scmp.ne.s32.totalorder %s206, %s207
    %p216 = scmp.eq.s32.totalorder %s20, 0
    %p217 = por %p215, %p216
    %p218 = scmp.ne.s32.totalorder %s206, %s207
    %p219 = scmp.eq.s32.totalorder %s21, 7
    %p220 = por %p218, %p219
    %p222 = scmp.ne.s32.totalorder %s207, %s221
    %p223 = scmp.eq.s32.totalorder %s21, 0
    %p224 = por %p222, %p223
    %s225 = ssub.s32 %s22, %s34
    %s226 = ssub.s32 %s23, %s30
    %s227 = sor.u32 %s225, %s226
    %p228 = scmp.eq.s32.totalorder %s227, 0
    %s230 = sadd.s32 %s229, 1
    %s231 = scalar_select %p228, %s229, %s230
    %p234 = pneg %p228
    %p235 = scmp.eq.s32.totalorder %s15, 7
    %p236 = por %p234, %p235
    %p237 = scmp.ne.s32.totalorder %s229, %s232
    %p238 = scmp.eq.s32.totalorder %s15, 0
    %p239 = por %p237, %p238
    %p240 = scmp.ne.s32.totalorder %s229, %s232
    %p241 = scmp.eq.s32.totalorder %s20, 7
    %p242 = por %p240, %p241
    %p243 = scmp.ne.s32.totalorder %s232, %s233
    %p244 = scmp.eq.s32.totalorder %s20, 0
    %p245 = por %p243, %p244
    %p246 = scmp.ne.s32.totalorder %s232, %s233
    %p247 = scmp.eq.s32.totalorder %s21, 7
    %p248 = por %p246, %p247
    %p250 = scmp.ne.s32.totalorder %s233, %s249
    %p251 = scmp.eq.s32.totalorder %s21, 0
    %p252 = por %p250, %p251
    %s253 = ssub.s32 %s22, %s34
    %s254 = ssub.s32 %s23, %s30
    %s255 = sor.u32 %s253, %s254
    %p256 = scmp.eq.s32.totalorder %s255, 0
    %s258 = sadd.s32 %s257, 1
    %s259 = scalar_select %p256, %s257, %s258
    %p262 = pneg %p256
    %p263 = scmp.eq.s32.totalorder %s15, 7
    %p264 = por %p262, %p263
    %p265 = scmp.ne.s32.totalorder %s257, %s260
    %p266 = scmp.eq.s32.totalorder %s15, 0
    %p267 = por %p265, %p266
    %p268 = scmp.ne.s32.totalorder %s257, %s260
    %p269 = scmp.eq.s32.totalorder %s20, 7
    %p270 = por %p268, %p269
    %p271 = scmp.ne.s32.totalorder %s260, %s261
    %p272 = scmp.eq.s32.totalorder %s20, 0
    %p273 = por %p271, %p272
    %p274 = scmp.ne.s32.totalorder %s260, %s261
    %p275 = scmp.eq.s32.totalorder %s21, 7
    %p276 = por %p274, %p275
    %p278 = scmp.ne.s32.totalorder %s261, %s277
    %p279 = scmp.eq.s32.totalorder %s21, 0
    %p280 = por %p278, %p279
    %p281 = scmp.le.s32.totalorder 1, %s15
    %p282 = scmp.lt.s32.totalorder %s15, 9
    %p283 = pnand %p281, %p282
    %p284 = pneg %p283
    // Predicated region
    $region9: #{down_block_forward.4} parent=5 // pred_check
      _
    $region10: #{down_block_forward.4} parent=5 // pred_check_branch
      %286 = sbr.rel (%p283) target = $region12
    $region11: #{down_block_forward.4} parent=5 // pred_region
      %s287 = ssub.s32 %s15, 1
      // Predicated region
      $region13: #{down_block_forward.4} parent=11 // pred_check
        %p288 = pneg %p196
      $region14: #{down_block_forward.4} parent=11 // pred_check_branch
        %290 = sbr.rel (%p288) target = $region16
      $region15: #{down_block_forward.4} parent=11 // pred_region
        _
      $region16: #{down_block_forward.4} parent=11 // pred_fallthru
        _
      // Predicated region
      $region17: #{down_block_forward.4} parent=11 // pred_check
        %p291 = pneg %p217
      $region18: #{down_block_forward.4} parent=11 // pred_check_branch
        %293 = sbr.rel (%p291) target = $region20
      $region19: #{down_block_forward.4} parent=11 // pred_region
        _
      $region20: #{down_block_forward.4} parent=11 // pred_fallthru
        _
    $region12: #{down_block_forward.4} parent=5 // pred_fallthru
      _
    %p294 = scmp.lt.s32.totalorder %s15, 8
    // Predicated region
    $region21: #{down_block_forward.4} parent=5 // pred_check
      %p295 = pneg %p294
    $region22: #{down_block_forward.4} parent=5 // pred_check_branch
      %297 = sbr.rel (%p295) target = $region24
    $region23: #{down_block_forward.4} parent=5 // pred_region
      // Predicated region
      $region25: #{down_block_forward.4} parent=23 // pred_check
        %p298 = pneg %p55
      $region26: #{down_block_forward.4} parent=23 // pred_check_branch
        %300 = sbr.rel (%p298) target = $region28
      $region27: #{down_block_forward.4} parent=23 // pred_region
        %s301 = ssub.s32 %s23, 1
        %p302 = scmp.gt.s32.totalorder %s301, 0
        %s303 = scalar_select %p302, %s301, 0
        %p304 = scmp.lt.s32.totalorder %s22, 1
        %s305 = scalar_select %p304, %s22, 1
        %p306 = scmp.lt.s32.totalorder %s303, 3
        %s307 = scalar_select %p306, %s303, 3
        %s308 = smul.addr %s307, 4
        %s309 = smul.addr %s305, 16
        %s310 = sadd.s32 %s308, %s309
        %s311 = smul.addr %s310, 2
        %s312 = scalar_lea.vmem %s0, %s311
        %s313 = ssub.s32 %s23, 1
        %p314 = scmp.gt.s32.totalorder %s313, 0
        %s315 = scalar_select %p314, %s313, 0
      $region28: #{down_block_forward.4} parent=23 // pred_fallthru
        _
      // Predicated region
      $region29: #{down_block_forward.4} parent=23 // pred_check
        %p316 = pneg %p83
      $region30: #{down_block_forward.4} parent=23 // pred_check_branch
        %318 = sbr.rel (%p316) target = $region32
      $region31: #{down_block_forward.4} parent=23 // pred_region
        %p319 = scmp.lt.s32.totalorder %s22, 1
        %s320 = scalar_select %p319, %s22, 1
        %p321 = scmp.lt.s32.totalorder %s23, 3
        %s322 = scalar_select %p321, %s23, 3
        %s323 = smul.addr %s322, 4
        %s324 = smul.addr %s320, 16
        %s325 = sadd.s32 %s323, %s324
        %s326 = smul.addr %s325, 2
        %s327 = scalar_lea.vmem %s1, %s326
      $region32: #{down_block_forward.4} parent=23 // pred_fallthru
        _
      // Predicated region
      $region33: #{down_block_forward.4} parent=23 // pred_check
        %p328 = pneg %p117
      $region34: #{down_block_forward.4} parent=23 // pred_check_branch
        %330 = sbr.rel (%p328) target = $region36
      $region35: #{down_block_forward.4} parent=23 // pred_region
        %s331 = sadd.s32 %s23, 1
        %p332 = scmp.lt.s32.totalorder %s331, 3
        %s333 = scalar_select %p332, %s331, 3
        %p334 = scmp.lt.s32.totalorder %s22, 1
        %s335 = scalar_select %p334, %s22, 1
        %p336 = scmp.lt.s32.totalorder %s333, 3
        %s337 = scalar_select %p336, %s333, 3
        %s338 = smul.addr %s337, 4
        %s339 = smul.addr %s335, 16
        %s340 = sadd.s32 %s338, %s339
        %s341 = smul.addr %s340, 2
        %s342 = scalar_lea.vmem %s2, %s341
        %s343 = sadd.s32 %s23, 1
        %p344 = scmp.lt.s32.totalorder %s343, 3
        %s345 = scalar_select %p344, %s343, 3
      $region36: #{down_block_forward.4} parent=23 // pred_fallthru
        _
      // Predicated region
      $region37: #{down_block_forward.4} parent=23 // pred_check
        %p346 = pneg %p143
      $region38: #{down_block_forward.4} parent=23 // pred_check_branch
        %348 = sbr.rel (%p346) target = $region40
      $region39: #{down_block_forward.4} parent=23 // pred_region
        %p349 = scmp.lt.s32.totalorder %s22, 1
        %s350 = scalar_select %p349, %s22, 1
        %s351 = scalar_lea.vmem %s3, %s350
      $region40: #{down_block_forward.4} parent=23 // pred_fallthru
        _
      // Predicated region
      $region41: #{down_block_forward.4} parent=23 // pred_check
        %p352 = pneg %p169
      $region42: #{down_block_forward.4} parent=23 // pred_check_branch
        %354 = sbr.rel (%p352) target = $region44
      $region43: #{down_block_forward.4} parent=23 // pred_region
        %p355 = scmp.lt.s32.totalorder %s22, 1
        %s356 = scalar_select %p355, %s22, 1
        %s357 = scalar_lea.vmem %s4, %s356
      $region44: #{down_block_forward.4} parent=23 // pred_fallthru
        _
    $region24: #{down_block_forward.4} parent=5 // pred_fallthru
      _
    %p358 = scmp.le.s32.totalorder 1, %s15
    %p359 = scmp.lt.s32.totalorder %s15, 9
    %p360 = pnand %p358, %p359
    %p361 = pneg %p360
    // Predicated region
    $region45: #{down_block_forward.4} parent=5 // pred_check
      _
    $region46: #{down_block_forward.4} parent=5 // pred_check_branch
      %363 = sbr.rel (%p360) target = $region48
    $region47: #{down_block_forward.4} parent=5 // pred_region
      %s364 = ssub.s32 %s15, 1
      %s365 = ssub.s32 %s25, 1
      %p366 = scmp.gt.s32.totalorder %s365, 0
      %s367 = scalar_select %p366, %s365, 0
      %p368 = scmp.lt.s32.totalorder %s24, 1
      %s369 = scalar_select %p368, %s24, 1
      %p370 = scmp.lt.s32.totalorder %s367, 3
      %s371 = scalar_select %p370, %s367, 3
      %s372 = smul.addr %s371, 4
      %s373 = smul.addr %s369, 16
      %s374 = sadd.s32 %s372, %s373
      %s375 = smul.addr %s374, 2
      %s376 = scalar_lea.vmem %s0, %s375
      %p377 = pneg %p61
      %p378 = pneg %p58
      %p379 = scmp.lt.s32.totalorder %s24, 1
      %s380 = scalar_select %p379, %s24, 1
      %p381 = scmp.lt.s32.totalorder %s25, 3
      %s382 = scalar_select %p381, %s25, 3
      %s383 = smul.addr %s382, 4
      %s384 = smul.addr %s380, 16
      %s385 = sadd.s32 %s383, %s384
      %s386 = smul.addr %s385, 2
      %s387 = scalar_lea.vmem %s1, %s386
      %p388 = pneg %p89
      %p389 = pneg %p86
      %s390 = sadd.s32 %s25, 1
      %p391 = scmp.lt.s32.totalorder %s390, 3
      %s392 = scalar_select %p391, %s390, 3
      %p393 = scmp.lt.s32.totalorder %s24, 1
      %s394 = scalar_select %p393, %s24, 1
      %p395 = scmp.lt.s32.totalorder %s392, 3
      %s396 = scalar_select %p395, %s392, 3
      %s397 = smul.addr %s396, 4
      %s398 = smul.addr %s394, 16
      %s399 = sadd.s32 %s397, %s398
      %s400 = smul.addr %s399, 2
      %s401 = scalar_lea.vmem %s2, %s400
      %p402 = pneg %p123
      %p403 = pneg %p120
      %p404 = scmp.lt.s32.totalorder %s24, 1
      %s405 = scalar_select %p404, %s24, 1
      %s406 = scalar_lea.vmem %s3, %s405
      %p407 = pneg %p149
      %p408 = pneg %p146
      %p409 = scmp.lt.s32.totalorder %s24, 1
      %s410 = scalar_select %p409, %s24, 1
      %s411 = scalar_lea.vmem %s4, %s410
      %p412 = pneg %p175
      %p413 = pneg %p172
      %p414 = pneg %p196
      %p415 = pneg %p193
      %p416 = pneg %p217
      %p417 = pneg %p214
      %p418 = pneg %p245
      %p419 = pneg %p242
      %p420 = scmp.lt.s32.totalorder %s24, 1
      %s421 = scalar_select %p420, %s24, 1
      %p422 = scmp.lt.s32.totalorder %s25, 3
      %s423 = scalar_select %p422, %s25, 3
      %s424 = smul.addr %s423, 4
      %s425 = smul.addr %s421, 16
      %s426 = sadd.s32 %s424, %s425
      %s427 = smul.addr %s426, 2
      %s428 = scalar_lea.vmem %s7, %s427
      %p429 = pneg %p273
      %p430 = pneg %p270
      %p431 = scmp.lt.s32.totalorder %s24, 1
      %s432 = scalar_select %p431, %s24, 1
      %p433 = scmp.lt.s32.totalorder %s25, 3
      %s434 = scalar_select %p433, %s25, 3
      %s435 = smul.addr %s432, 4
      %s436 = sadd.s32 %s434, %s435
      %s437 = smul.addr %s436, 2
      %s438 = scalar_lea.vmem %s8, %s437
      %s439 = ssub.s32 %s25, 1
      %p440 = scmp.gt.s32.totalorder %s439, 0
      %s441 = scalar_select %p440, %s439, 0
      %p442 = scmp.lt.s32.totalorder %s24, 1
      %s443 = scalar_select %p442, %s24, 1
      %p444 = scmp.lt.s32.totalorder %s441, 3
      %s445 = scalar_select %p444, %s441, 3
      %s446 = smul.addr %s445, 4
      %s447 = smul.addr %s443, 16
      %s448 = sadd.s32 %s446, %s447
      %s449 = smul.addr %s448, 2
      %s450 = scalar_lea.vmem %s0, %s449
      %s451 = ssub.s32 %s25, 1
      %p452 = scmp.gt.s32.totalorder %s451, 0
      %s453 = scalar_select %p452, %s451, 0
      %p454 = scmp.lt.s32.totalorder %s24, 1
      %s455 = scalar_select %p454, %s24, 1
      %p456 = scmp.lt.s32.totalorder %s25, 3
      %s457 = scalar_select %p456, %s25, 3
      %s458 = smul.addr %s457, 4
      %s459 = smul.addr %s455, 16
      %s460 = sadd.s32 %s458, %s459
      %s461 = smul.addr %s460, 2
      %s462 = scalar_lea.vmem %s1, %s461
      %s463 = sadd.s32 %s25, 1
      %p464 = scmp.lt.s32.totalorder %s463, 3
      %s465 = scalar_select %p464, %s463, 3
      %p466 = scmp.lt.s32.totalorder %s24, 1
      %s467 = scalar_select %p466, %s24, 1
      %p468 = scmp.lt.s32.totalorder %s465, 3
      %s469 = scalar_select %p468, %s465, 3
      %s470 = smul.addr %s469, 4
      %s471 = smul.addr %s467, 16
      %s472 = sadd.s32 %s470, %s471
      %s473 = smul.addr %s472, 2
      %s474 = scalar_lea.vmem %s2, %s473
      %s475 = sadd.s32 %s25, 1
      %p476 = scmp.lt.s32.totalorder %s475, 3
      %s477 = scalar_select %p476, %s475, 3
      %p478 = scmp.lt.s32.totalorder %s24, 1
      %s479 = scalar_select %p478, %s24, 1
      %s480 = scalar_lea.vmem %s3, %s479
      %p481 = scmp.lt.s32.totalorder %s24, 1
      %s482 = scalar_select %p481, %s24, 1
      %s483 = scalar_lea.vmem %s4, %s482
      %p484 = scmp.lt.s32.totalorder %s24, 1
      %s485 = scalar_select %p484, %s24, 1
      %p486 = scmp.lt.s32.totalorder %s25, 3
      %s487 = scalar_select %p486, %s25, 3
      %s488 = smul.addr %s487, 4
      %s489 = smul.addr %s485, 16
      %s490 = sadd.s32 %s488, %s489
      %s491 = smul.addr %s490, 2
      %s492 = scalar_lea.vmem %s7, %s491
      %p493 = scmp.lt.s32.totalorder %s24, 1
      %s494 = scalar_select %p493, %s24, 1
      %p495 = scmp.lt.s32.totalorder %s25, 3
      %s496 = scalar_select %p495, %s25, 3
      %s497 = smul.addr %s494, 4
      %s498 = sadd.s32 %s496, %s497
      %s499 = smul.addr %s498, 2
      %s500 = scalar_lea.vmem %s8, %s499
      %v502 = vld [vmem:[%s480] sm:$0x1]
      %v503 = vld [vmem:[%s483] sm:$0x1]
      %v504 = vld [vmem:[%s450] sm:$0x3]
      %v505 = vld [vmem:[%s450 + $0x2] sm:$0x3]
      %v506 = vld [vmem:[%s450 + $0x4] sm:$0x3]
      %v507 = vld [vmem:[%s450 + $0x6] sm:$0x3]
      %v508 = vunpack.c.l.bf16 %v504
      %v509 = vunpack.c.l.bf16 %v505
      %v510 = vunpack.c.l.bf16 %v506
      %v511 = vunpack.c.l.bf16 %v507
      %v513 = vlaneseq
      %v514 = vshrl.u32 %v513, 7
      %v515 = vsub.s32 0, %v514
      %v516 = vrot.slane %v502, %v515
      %v518 = vsub.f32 %v508, %v516
      %v519 = vsub.f32 %v509, %v516
      %v520 = vsub.f32 %v510, %v516
      %v521 = vsub.f32 %v511, %v516
      %v523 = vlaneseq
      %v524 = vshrl.u32 %v523, 7
      %v525 = vsub.s32 0, %v524
      %v526 = vrot.slane %v503, %v525
      %v528 = vmul.f32 %v518, %v526
      %v529 = vmul.f32 %v519, %v526
      %v530 = vmul.f32 %v520, %v526
      %v531 = vmul.f32 %v521, %v526
      %vm532 = vcmp.ge.f32.partialorder %v528, 0.0
      %vm533 = vcmp.ge.f32.partialorder %v529, 0.0
      %vm534 = vcmp.ge.f32.partialorder %v530, 0.0
      %vm535 = vcmp.ge.f32.partialorder %v531, 0.0
      %v536 = vmul.f32 %v528, 0.2
      %v537 = vmul.f32 %v529, 0.2
      %v538 = vmul.f32 %v530, 0.2
      %v539 = vmul.f32 %v531, 0.2
      %v540 = vsel %vm532, %v528, %v536
      %v541 = vsel %vm533, %v529, %v537
      %v542 = vsel %vm534, %v530, %v538
      %v543 = vsel %vm535, %v531, %v539
      %p544 = scmp.gt.s32.totalorder %s25, 0
      %s545 = scalar_select %p544, 1, 0
      %v546 = vstv %s545
      %vm547 = vcmp.eq.s32.totalorder %v546, 1
      %v548 = vsel %vm547, %v540, 0.0
      %v549 = vsel %vm547, %v541, 0.0
      %v550 = vsel %vm547, %v542, 0.0
      %v551 = vsel %vm547, %v543, 0.0
      %v552 = vpack.c.bf16 %v548, %v548
      %v553 = vpack.c.bf16 %v549, %v549
      %v554 = vpack.c.bf16 %v550, %v550
      %v555 = vpack.c.bf16 %v551, %v551
      %v557 = vshrl.u32 0, 16
      %v559 = vrot.slane %v557, 7
      %v560 = vshll.u32 0, 16
      %v562 = vor.u32 %v559, %v560
      %v564 = vshrl.u32 %v552, 16
      %v566 = vrot.slane %v564, 7
      %v567 = vshll.u32 %v552, 16
      %v569 = vor.u32 %v566, %v567
      %v571 = vshrl.u32 %v553, 16
      %v573 = vrot.slane %v571, 7
      %v574 = vshll.u32 %v553, 16
      %v576 = vor.u32 %v573, %v574
      %v578 = vshrl.u32 %v554, 16
      %v580 = vrot.slane %v578, 7
      %v581 = vshll.u32 %v554, 16
      %v583 = vor.u32 %v580, %v581
      %v585 = vshrl.u32 %v555, 16
      %v587 = vrot.slane %v585, 7
      %v588 = vshll.u32 %v555, 16
      %v590 = vor.u32 %v587, %v588
      %vm596 = vcmask 1040384
      %vm597 = vsmask.f32 256
      %vm598 = vmand %vm596, %vm597
      %v599 = vsel %vm598, 0, %v562
      %v600 = vsel %vm598, 0, %v569
      %v601 = vsel %vm598, 0, %v576
      %v602 = vsel %vm598, 0, %v583
      %v603 = vsel %vm598, 0, %v590
      %vm604 = vcmask 1042432
      %vm605 = vsmask.f32 2304
      %vm606 = vmand %vm604, %vm605
      %v607 = vsel %vm606, %v599, 0
      %v608 = vsel %vm606, %v600, 0
      %v609 = vsel %vm606, %v601, 0
      %v610 = vsel %vm606, %v602, 0
      %v611 = vsel %vm606, %v603, 0
      %v612 = vld [vmem:[%s462] sm:$0x3]
      %v613 = vld [vmem:[%s462 + $0x2] sm:$0x3]
      %v614 = vld [vmem:[%s462 + $0x4] sm:$0x3]
      %v615 = vld [vmem:[%s462 + $0x6] sm:$0x3]
      %v616 = vunpack.c.l.bf16 %v612
      %v617 = vunpack.c.l.bf16 %v613
      %v618 = vunpack.c.l.bf16 %v614
      %v619 = vunpack.c.l.bf16 %v615
      %v620 = vsub.f32 %v616, %v516
      %v621 = vsub.f32 %v617, %v516
      %v622 = vsub.f32 %v618, %v516
      %v623 = vsub.f32 %v619, %v516
      %v624 = vmul.f32 %v620, %v526
      %v625 = vmul.f32 %v621, %v526
      %v626 = vmul.f32 %v622, %v526
      %v627 = vmul.f32 %v623, %v526
      %vm628 = vcmp.ge.f32.partialorder %v624, 0.0
      %vm629 = vcmp.ge.f32.partialorder %v625, 0.0
      %vm630 = vcmp.ge.f32.partialorder %v626, 0.0
      %vm631 = vcmp.ge.f32.partialorder %v627, 0.0
      %v632 = vmul.f32 %v624, 0.2
      %v633 = vmul.f32 %v625, 0.2
      %v634 = vmul.f32 %v626, 0.2
      %v635 = vmul.f32 %v627, 0.2
      %v636 = vsel %vm628, %v624, %v632
      %v637 = vsel %vm629, %v625, %v633
      %v638 = vsel %vm630, %v626, %v634
      %v639 = vsel %vm631, %v627, %v635
      %v640 = vpack.c.bf16 %v636, %v636
      %v641 = vpack.c.bf16 %v637, %v637
      %v642 = vpack.c.bf16 %v638, %v638
      %v643 = vpack.c.bf16 %v639, %v639
      %v645 = vshrl.u32 %v640, 16
      %v647 = vrot.slane %v645, 7
      %v648 = vshll.u32 %v640, 16
      %v650 = vor.u32 %v647, %v648
      %v652 = vshrl.u32 %v641, 16
      %v654 = vrot.slane %v652, 7
      %v655 = vshll.u32 %v641, 16
      %v657 = vor.u32 %v654, %v655
      %v659 = vshrl.u32 %v642, 16
      %v661 = vrot.slane %v659, 7
      %v662 = vshll.u32 %v642, 16
      %v664 = vor.u32 %v661, %v662
      %v666 = vshrl.u32 %v643, 16
      %v668 = vrot.slane %v666, 7
      %v669 = vshll.u32 %v643, 16
      %v671 = vor.u32 %v668, %v669
      %v676 = vsel %vm598, 0, %v650
      %v677 = vsel %vm598, 0, %v657
      %v678 = vsel %vm598, 0, %v664
      %v679 = vsel %vm598, 0, %v671
      %v680 = vsel %vm606, %v676, 0
      %v681 = vsel %vm606, %v677, 0
      %v682 = vsel %vm606, %v678, 0
      %v683 = vsel %vm606, %v679, 0
      %v684 = vld [vmem:[%s474] sm:$0x3]
      %v685 = vld [vmem:[%s474 + $0x2] sm:$0x3]
      %v686 = vld [vmem:[%s474 + $0x4] sm:$0x3]
      %v687 = vld [vmem:[%s474 + $0x6] sm:$0x3]
      %v688 = vunpack.c.l.bf16 %v684
      %v689 = vunpack.c.l.bf16 %v685
      %v690 = vunpack.c.l.bf16 %v686
      %v691 = vunpack.c.l.bf16 %v687
      %v692 = vsub.f32 %v688, %v516
      %v693 = vsub.f32 %v689, %v516
      %v694 = vsub.f32 %v690, %v516
      %v695 = vsub.f32 %v691, %v516
      %v696 = vmul.f32 %v692, %v526
      %v697 = vmul.f32 %v693, %v526
      %v698 = vmul.f32 %v694, %v526
      %v699 = vmul.f32 %v695, %v526
      %vm700 = vcmp.ge.f32.partialorder %v696, 0.0
      %vm701 = vcmp.ge.f32.partialorder %v697, 0.0
      %vm702 = vcmp.ge.f32.partialorder %v698, 0.0
      %vm703 = vcmp.ge.f32.partialorder %v699, 0.0
      %v704 = vmul.f32 %v696, 0.2
      %v705 = vmul.f32 %v697, 0.2
      %v706 = vmul.f32 %v698, 0.2
      %v707 = vmul.f32 %v699, 0.2
      %v708 = vsel %vm700, %v696, %v704
      %v709 = vsel %vm701, %v697, %v705
      %v710 = vsel %vm702, %v698, %v706
      %v711 = vsel %vm703, %v699, %v707
      %s712 = sadd.s32 %s25, 1
      %p713 = scmp.lt.s32.totalorder %s712, 4
      %s714 = scalar_select %p713, 1, 0
      %v715 = vstv %s714
      %vm716 = vcmp.eq.s32.totalorder %v715, 1
      %v717 = vsel %vm716, %v708, 0.0
      %v718 = vsel %vm716, %v709, 0.0
      %v719 = vsel %vm716, %v710, 0.0
      %v720 = vsel %vm716, %v711, 0.0
      %v721 = vpack.c.bf16 %v717, %v717
      %v722 = vpack.c.bf16 %v718, %v718
      %v723 = vpack.c.bf16 %v719, %v719
      %v724 = vpack.c.bf16 %v720, %v720
      %v726 = vshrl.u32 %v721, 16
      %v728 = vrot.slane %v726, 7
      %v729 = vshll.u32 %v721, 16
      %v731 = vor.u32 %v728, %v729
      %v733 = vshrl.u32 %v722, 16
      %v735 = vrot.slane %v733, 7
      %v736 = vshll.u32 %v722, 16
      %v738 = vor.u32 %v735, %v736
      %v740 = vshrl.u32 %v723, 16
      %v742 = vrot.slane %v740, 7
      %v743 = vshll.u32 %v723, 16
      %v745 = vor.u32 %v742, %v743
      %v747 = vshrl.u32 %v724, 16
      %v749 = vrot.slane %v747, 7
      %v750 = vshll.u32 %v724, 16
      %v752 = vor.u32 %v749, %v750
      %v757 = vsel %vm598, 0, %v731
      %v758 = vsel %vm598, 0, %v738
      %v759 = vsel %vm598, 0, %v745
      %v760 = vsel %vm598, 0, %v752
      %v761 = vsel %vm606, %v757, 0
      %v762 = vsel %vm606, %v758, 0
      %v763 = vsel %vm606, %v759, 0
      %v764 = vsel %vm606, %v760, 0
      %v766 = vshrl.u32 %v607, 16
      %v768 = vshll.u32 %v607, 16
      %v770 = vrot.slane %v768, 1
      %v771 = vor.u32 %v766, %v770
      %v773 = vshrl.u32 %v608, 16
      %v775 = vshll.u32 %v608, 16
      %v777 = vrot.slane %v775, 1
      %v778 = vor.u32 %v773, %v777
      %v780 = vshrl.u32 %v609, 16
      %v782 = vshll.u32 %v609, 16
      %v784 = vrot.slane %v782, 1
      %v785 = vor.u32 %v780, %v784
      %v787 = vshrl.u32 %v610, 16
      %v789 = vshll.u32 %v610, 16
      %v791 = vrot.slane %v789, 1
      %v792 = vor.u32 %v787, %v791
      %793 = vrot.lane.b32.xlu0 %v771, 8
      %v794 = vpop.permute.xlu0 %793
      %795 = vrot.lane.b32.xlu0 %v778, 8
      %v796 = vpop.permute.xlu0 %795
      %797 = vrot.lane.b32.xlu0 %v785, 8
      %v798 = vpop.permute.xlu0 %797
      %799 = vrot.lane.b32.xlu0 %v792, 8
      %v800 = vpop.permute.xlu0 %799
      %v805 = vrot.slane %v607, 1
      %v806 = vrot.slane %v608, 1
      %v807 = vrot.slane %v609, 1
      %v808 = vrot.slane %v610, 1
      %809 = vrot.lane.b32.xlu0 %v805, 16
      %v810 = vpop.permute.xlu0 %809
      %811 = vrot.lane.b32.xlu0 %v806, 16
      %v812 = vpop.permute.xlu0 %811
      %813 = vrot.lane.b32.xlu0 %v807, 16
      %v814 = vpop.permute.xlu0 %813
      %815 = vrot.lane.b32.xlu0 %v808, 16
      %v816 = vpop.permute.xlu0 %815
      %818 = vrot.lane.b32.xlu0 %v608, 24
      %v819 = vpop.permute.xlu0 %818
      %820 = vrot.lane.b32.xlu0 %v609, 24
      %v821 = vpop.permute.xlu0 %820
      %822 = vrot.lane.b32.xlu0 %v610, 24
      %v823 = vpop.permute.xlu0 %822
      %824 = vrot.lane.b32.xlu0 %v611, 24
      %v825 = vpop.permute.xlu0 %824
      %v827 = vshrl.u32 %v611, 16
      %v829 = vshll.u32 %v611, 16
      %v831 = vrot.slane %v829, 1
      %v832 = vor.u32 %v827, %v831
      %833 = vrot.lane.b32.xlu0 %v778, 32
      %v834 = vpop.permute.xlu0 %833
      %835 = vrot.lane.b32.xlu0 %v785, 32
      %v836 = vpop.permute.xlu0 %835
      %837 = vrot.lane.b32.xlu0 %v792, 32
      %v838 = vpop.permute.xlu0 %837
      %839 = vrot.lane.b32.xlu0 %v832, 32
      %v840 = vpop.permute.xlu0 %839
      %v841 = vrot.slane %v611, 1
      %842 = vrot.lane.b32.xlu0 %v806, 40
      %v843 = vpop.permute.xlu0 %842
      %844 = vrot.lane.b32.xlu0 %v807, 40
      %v845 = vpop.permute.xlu0 %844
      %846 = vrot.lane.b32.xlu0 %v808, 40
      %v847 = vpop.permute.xlu0 %846
      %848 = vrot.lane.b32.xlu0 %v841, 40
      %v849 = vpop.permute.xlu0 %848
      %850 = vrot.lane.b32.xlu0 %v609, 48
      %v851 = vpop.permute.xlu0 %850
      %852 = vrot.lane.b32.xlu0 %v610, 48
      %v853 = vpop.permute.xlu0 %852
      %854 = vrot.lane.b32.xlu0 %v611, 48
      %v855 = vpop.permute.xlu0 %854
      %856 = vrot.lane.b32.xlu0 %v607, 48
      %v857 = vpop.permute.xlu0 %856
      %858 = vrot.lane.b32.xlu0 %v785, 56
      %v859 = vpop.permute.xlu0 %858
      %860 = vrot.lane.b32.xlu0 %v792, 56
      %v861 = vpop.permute.xlu0 %860
      %862 = vrot.lane.b32.xlu0 %v832, 56
      %v863 = vpop.permute.xlu0 %862
      %864 = vrot.lane.b32.xlu0 %v771, 56
      %v865 = vpop.permute.xlu0 %864
      %866 = vrot.lane.b32.xlu0 %v807, 64
      %v867 = vpop.permute.xlu0 %866
      %868 = vrot.lane.b32.xlu0 %v808, 64
      %v869 = vpop.permute.xlu0 %868
      %870 = vrot.lane.b32.xlu0 %v841, 64
      %v871 = vpop.permute.xlu0 %870
      %872 = vrot.lane.b32.xlu0 %v805, 64
      %v873 = vpop.permute.xlu0 %872
      %877 = vrot.lane.b32.xlu0 %v607, 72
      %v878 = vpop.permute.xlu0 %877
      %879 = vrot.lane.b32.xlu0 %v680, 72
      %v880 = vpop.permute.xlu0 %879
      %881 = vrot.lane.b32.xlu0 %v681, 72
      %v882 = vpop.permute.xlu0 %881
      %883 = vrot.lane.b32.xlu0 %v682, 72
      %v884 = vpop.permute.xlu0 %883
      %v886 = vshrl.u32 %v680, 16
      %v888 = vshll.u32 %v680, 16
      %v890 = vrot.slane %v888, 1
      %v891 = vor.u32 %v886, %v890
      %v893 = vshrl.u32 %v681, 16
      %v895 = vshll.u32 %v681, 16
      %v897 = vrot.slane %v895, 1
      %v898 = vor.u32 %v893, %v897
      %v900 = vshrl.u32 %v682, 16
      %v902 = vshll.u32 %v682, 16
      %v904 = vrot.slane %v902, 1
      %v905 = vor.u32 %v900, %v904
      %906 = vrot.lane.b32.xlu0 %v771, 80
      %v907 = vpop.permute.xlu0 %906
      %908 = vrot.lane.b32.xlu0 %v891, 80
      %v909 = vpop.permute.xlu0 %908
      %910 = vrot.lane.b32.xlu0 %v898, 80
      %v911 = vpop.permute.xlu0 %910
      %912 = vrot.lane.b32.xlu0 %v905, 80
      %v913 = vpop.permute.xlu0 %912
      %v914 = vrot.slane %v680, 1
      %v915 = vrot.slane %v681, 1
      %v916 = vrot.slane %v682, 1
      %917 = vrot.lane.b32.xlu0 %v805, 88
      %v918 = vpop.permute.xlu0 %917
      %919 = vrot.lane.b32.xlu0 %v914, 88
      %v920 = vpop.permute.xlu0 %919
      %921 = vrot.lane.b32.xlu0 %v915, 88
      %v922 = vpop.permute.xlu0 %921
      %923 = vrot.lane.b32.xlu0 %v916, 88
      %v924 = vpop.permute.xlu0 %923
      %926 = vrot.lane.b32.xlu0 %v680, 96
      %v927 = vpop.permute.xlu0 %926
      %928 = vrot.lane.b32.xlu0 %v681, 96
      %v929 = vpop.permute.xlu0 %928
      %930 = vrot.lane.b32.xlu0 %v682, 96
      %v931 = vpop.permute.xlu0 %930
      %932 = vrot.lane.b32.xlu0 %v683, 96
      %v933 = vpop.permute.xlu0 %932
      %v935 = vshrl.u32 %v683, 16
      %v937 = vshll.u32 %v683, 16
      %v939 = vrot.slane %v937, 1
      %v940 = vor.u32 %v935, %v939
      %941 = vrot.lane.b32.xlu0 %v891, 104
      %v942 = vpop.permute.xlu0 %941
      %943 = vrot.lane.b32.xlu0 %v898, 104
      %v944 = vpop.permute.xlu0 %943
      %945 = vrot.lane.b32.xlu0 %v905, 104
      %v946 = vpop.permute.xlu0 %945
      %947 = vrot.lane.b32.xlu0 %v940, 104
      %v948 = vpop.permute.xlu0 %947
      %v949 = vrot.slane %v683, 1
      %950 = vrot.lane.b32.xlu0 %v914, 112
      %v951 = vpop.permute.xlu0 %950
      %952 = vrot.lane.b32.xlu0 %v915, 112
      %v953 = vpop.permute.xlu0 %952
      %954 = vrot.lane.b32.xlu0 %v916, 112
      %v955 = vpop.permute.xlu0 %954
      %956 = vrot.lane.b32.xlu0 %v949, 112
      %v957 = vpop.permute.xlu0 %956
      %958 = vrot.lane.b32.xlu0 %v681, 120
      %v959 = vpop.permute.xlu0 %958
      %960 = vrot.lane.b32.xlu0 %v682, 120
      %v961 = vpop.permute.xlu0 %960
      %962 = vrot.lane.b32.xlu0 %v683, 120
      %v963 = vpop.permute.xlu0 %962
      %964 = vrot.lane.b32.xlu0 %v607, 120
      %v965 = vpop.permute.xlu0 %964
      %vm966 = vcmask 64512
      %v968 = vsel %vm966, %v607, %v794
      %v970 = vsel %vm966, %v608, %v796
      %v972 = vsel %vm966, %v609, %v798
      %v974 = vsel %vm966, %v610, %v800
      %vm975 = vcmask 130048
      %v977 = vsel %vm975, %v968, %v810
      %v979 = vsel %vm975, %v970, %v812
      %v981 = vsel %vm975, %v972, %v814
      %v983 = vsel %vm975, %v974, %v816
      %vm984 = vcmask 195584
      %v986 = vsel %vm984, %v977, %v819
      %v988 = vsel %vm984, %v979, %v821
      %v990 = vsel %vm984, %v981, %v823
      %v992 = vsel %vm984, %v983, %v825
      %vm993 = vcmask 261120
      %v995 = vsel %vm993, %v986, %v834
      %v997 = vsel %vm993, %v988, %v836
      %v999 = vsel %vm993, %v990, %v838
      %v1001 = vsel %vm993, %v992, %v840
      %vm1002 = vcmask 326656
      %v1004 = vsel %vm1002, %v995, %v843
      %v1006 = vsel %vm1002, %v997, %v845
      %v1008 = vsel %vm1002, %v999, %v847
      %v1010 = vsel %vm1002, %v1001, %v849
      %vm1011 = vcmask 392192
      %v1013 = vsel %vm1011, %v1004, %v851
      %v1015 = vsel %vm1011, %v1006, %v853
      %v1017 = vsel %vm1011, %v1008, %v855
      %v1019 = vsel %vm1011, %v1010, %v857
      %vm1020 = vcmask 457728
      %v1022 = vsel %vm1020, %v1013, %v859
      %v1024 = vsel %vm1020, %v1015, %v861
      %v1026 = vsel %vm1020, %v1017, %v863
      %v1028 = vsel %vm1020, %v1019, %v865
      %vm1029 = vcmask 523264
      %v1031 = vsel %vm1029, %v1022, %v867
      %v1033 = vsel %vm1029, %v1024, %v869
      %v1035 = vsel %vm1029, %v1026, %v871
      %v1037 = vsel %vm1029, %v1028, %v873
      %vm1038 = vcmask 588800
      %v1040 = vsel %vm1038, %v1031, %v878
      %v1042 = vsel %vm1038, %v1033, %v880
      %v1044 = vsel %vm1038, %v1035, %v882
      %v1046 = vsel %vm1038, %v1037, %v884
      %vm1047 = vcmask 654336
      %v1049 = vsel %vm1047, %v1040, %v907
      %v1051 = vsel %vm1047, %v1042, %v909
      %v1053 = vsel %vm1047, %v1044, %v911
      %v1055 = vsel %vm1047, %v1046, %v913
      %vm1056 = vcmask 719872
      %v1058 = vsel %vm1056, %v1049, %v918
      %v1060 = vsel %vm1056, %v1051, %v920
      %v1062 = vsel %vm1056, %v1053, %v922
      %v1064 = vsel %vm1056, %v1055, %v924
      %vm1065 = vcmask 785408
      %v1067 = vsel %vm1065, %v1058, %v927
      %v1069 = vsel %vm1065, %v1060, %v929
      %v1071 = vsel %vm1065, %v1062, %v931
      %v1073 = vsel %vm1065, %v1064, %v933
      %vm1074 = vcmask 850944
      %v1076 = vsel %vm1074, %v1067, %v942
      %v1078 = vsel %vm1074, %v1069, %v944
      %v1080 = vsel %vm1074, %v1071, %v946
      %v1082 = vsel %vm1074, %v1073, %v948
      %vm1083 = vcmask 916480
      %v1085 = vsel %vm1083, %v1076, %v951
      %v1087 = vsel %vm1083, %v1078, %v953
      %v1089 = vsel %vm1083, %v1080, %v955
      %v1091 = vsel %vm1083, %v1082, %v957
      %vm1092 = vcmask 982016
      %v1094 = vsel %vm1092, %v1085, %v959
      %v1096 = vsel %vm1092, %v1087, %v961
      %v1098 = vsel %vm1092, %v1089, %v963
      %v1100 = vsel %vm1092, %v1091, %v965
      %1101 = vrot.lane.b32.xlu0 %v898, 8
      %v1102 = vpop.permute.xlu0 %1101
      %1103 = vrot.lane.b32.xlu0 %v905, 8
      %v1104 = vpop.permute.xlu0 %1103
      %1105 = vrot.lane.b32.xlu0 %v940, 8
      %v1106 = vpop.permute.xlu0 %1105
      %v1107 = vrot.slane %v766, 7
      %v1108 = vor.u32 %v1107, %v768
      %v1110 = vshrl.u32 %v761, 16
      %v1112 = vrot.slane %v1110, 7
      %v1113 = vshll.u32 %v761, 16
      %v1115 = vor.u32 %v1112, %v1113
      %v1117 = vshrl.u32 %v762, 16
      %v1119 = vrot.slane %v1117, 7
      %v1120 = vshll.u32 %v762, 16
      %v1122 = vor.u32 %v1119, %v1120
      %v1124 = vshrl.u32 %v763, 16
      %v1126 = vrot.slane %v1124, 7
      %v1127 = vshll.u32 %v763, 16
      %v1129 = vor.u32 %v1126, %v1127
      %1130 = vrot.lane.b32.xlu0 %v1108, 16
      %v1131 = vpop.permute.xlu0 %1130
      %1132 = vrot.lane.b32.xlu0 %v1115, 16
      %v1133 = vpop.permute.xlu0 %1132
      %1134 = vrot.lane.b32.xlu0 %v1122, 16
      %v1135 = vpop.permute.xlu0 %1134
      %1136 = vrot.lane.b32.xlu0 %v1129, 16
      %v1137 = vpop.permute.xlu0 %1136
      %1141 = vrot.lane.b32.xlu0 %v607, 24
      %v1142 = vpop.permute.xlu0 %1141
      %1143 = vrot.lane.b32.xlu0 %v761, 24
      %v1144 = vpop.permute.xlu0 %1143
      %1145 = vrot.lane.b32.xlu0 %v762, 24
      %v1146 = vpop.permute.xlu0 %1145
      %1147 = vrot.lane.b32.xlu0 %v763, 24
      %v1148 = vpop.permute.xlu0 %1147
      %v1149 = vrot.slane %v1113, 1
      %v1150 = vor.u32 %v1110, %v1149
      %v1151 = vrot.slane %v1120, 1
      %v1152 = vor.u32 %v1117, %v1151
      %v1153 = vrot.slane %v1127, 1
      %v1154 = vor.u32 %v1124, %v1153
      %1155 = vrot.lane.b32.xlu0 %v771, 32
      %v1156 = vpop.permute.xlu0 %1155
      %1157 = vrot.lane.b32.xlu0 %v1150, 32
      %v1158 = vpop.permute.xlu0 %1157
      %1159 = vrot.lane.b32.xlu0 %v1152, 32
      %v1160 = vpop.permute.xlu0 %1159
      %1161 = vrot.lane.b32.xlu0 %v1154, 32
      %v1162 = vpop.permute.xlu0 %1161
      %v1164 = vshrl.u32 %v764, 16
      %v1166 = vrot.slane %v1164, 7
      %v1167 = vshll.u32 %v764, 16
      %v1169 = vor.u32 %v1166, %v1167
      %1170 = vrot.lane.b32.xlu0 %v1115, 40
      %v1171 = vpop.permute.xlu0 %1170
      %1172 = vrot.lane.b32.xlu0 %v1122, 40
      %v1173 = vpop.permute.xlu0 %1172
      %1174 = vrot.lane.b32.xlu0 %v1129, 40
      %v1175 = vpop.permute.xlu0 %1174
      %1176 = vrot.lane.b32.xlu0 %v1169, 40
      %v1177 = vpop.permute.xlu0 %1176
      %1179 = vrot.lane.b32.xlu0 %v761, 48
      %v1180 = vpop.permute.xlu0 %1179
      %1181 = vrot.lane.b32.xlu0 %v762, 48
      %v1182 = vpop.permute.xlu0 %1181
      %1183 = vrot.lane.b32.xlu0 %v763, 48
      %v1184 = vpop.permute.xlu0 %1183
      %1185 = vrot.lane.b32.xlu0 %v764, 48
      %v1186 = vpop.permute.xlu0 %1185
      %v1187 = vrot.slane %v1167, 1
      %v1188 = vor.u32 %v1164, %v1187
      %1189 = vrot.lane.b32.xlu0 %v1150, 56
      %v1190 = vpop.permute.xlu0 %1189
      %1191 = vrot.lane.b32.xlu0 %v1152, 56
      %v1192 = vpop.permute.xlu0 %1191
      %1193 = vrot.lane.b32.xlu0 %v1154, 56
      %v1194 = vpop.permute.xlu0 %1193
      %1195 = vrot.lane.b32.xlu0 %v1188, 56
      %v1196 = vpop.permute.xlu0 %1195
      %1197 = vrot.lane.b32.xlu0 %v1122, 64
      %v1198 = vpop.permute.xlu0 %1197
      %1199 = vrot.lane.b32.xlu0 %v1129, 64
      %v1200 = vpop.permute.xlu0 %1199
      %1201 = vrot.lane.b32.xlu0 %v1169, 64
      %v1202 = vpop.permute.xlu0 %1201
      %1203 = vrot.lane.b32.xlu0 %v1108, 64
      %v1204 = vpop.permute.xlu0 %1203
      %1205 = vrot.lane.b32.xlu0 %v762, 72
      %v1206 = vpop.permute.xlu0 %1205
      %1207 = vrot.lane.b32.xlu0 %v763, 72
      %v1208 = vpop.permute.xlu0 %1207
      %1209 = vrot.lane.b32.xlu0 %v764, 72
      %v1210 = vpop.permute.xlu0 %1209
      %1211 = vrot.lane.b32.xlu0 %v1152, 80
      %v1212 = vpop.permute.xlu0 %1211
      %1213 = vrot.lane.b32.xlu0 %v1154, 80
      %v1214 = vpop.permute.xlu0 %1213
      %1215 = vrot.lane.b32.xlu0 %v1188, 80
      %v1216 = vpop.permute.xlu0 %1215
      %v1218 = vsel %vm966, %v681, %v1102
      %v1220 = vsel %vm966, %v682, %v1104
      %v1222 = vsel %vm966, %v683, %v1106
      %v1224 = vsel %vm975, %v1218, %v1131
      %v1226 = vsel %vm975, %v1220, %v1133
      %v1228 = vsel %vm975, %v1222, %v1135
      %v1230 = vsel %vm975, %v968, %v1137
      %v1232 = vsel %vm984, %v1224, %v1142
      %v1234 = vsel %vm984, %v1226, %v1144
      %v1236 = vsel %vm984, %v1228, %v1146
      %v1238 = vsel %vm984, %v1230, %v1148
      %v1240 = vsel %vm993, %v1232, %v1156
      %v1242 = vsel %vm993, %v1234, %v1158
      %v1244 = vsel %vm993, %v1236, %v1160
      %v1246 = vsel %vm993, %v1238, %v1162
      %v1248 = vsel %vm1002, %v1240, %v1171
      %v1250 = vsel %vm1002, %v1242, %v1173
      %v1252 = vsel %vm1002, %v1244, %v1175
      %v1254 = vsel %vm1002, %v1246, %v1177
      %v1256 = vsel %vm1011, %v1248, %v1180
      %v1258 = vsel %vm1011, %v1250, %v1182
      %v1260 = vsel %vm1011, %v1252, %v1184
      %v1262 = vsel %vm1011, %v1254, %v1186
      %v1264 = vsel %vm1020, %v1256, %v1190
      %v1266 = vsel %vm1020, %v1258, %v1192
      %v1268 = vsel %vm1020, %v1260, %v1194
      %v1270 = vsel %vm1020, %v1262, %v1196
      %v1272 = vsel %vm1029, %v1264, %v1198
      %v1274 = vsel %vm1029, %v1266, %v1200
      %v1276 = vsel %vm1029, %v1268, %v1202
      %v1278 = vsel %vm1029, %v1270, %v1204
      %v1280 = vsel %vm1038, %v1272, %v1206
      %v1282 = vsel %vm1038, %v1274, %v1208
      %v1284 = vsel %vm1038, %v1276, %v1210
      %v1285 = vsel %vm1038, %v1278, %v878
      %v1287 = vsel %vm1047, %v1280, %v1212
      %v1289 = vsel %vm1047, %v1282, %v1214
      %v1291 = vsel %vm1047, %v1284, %v1216
      %v1292 = vsel %vm1047, %v1285, %v907
      %v1293 = vshrl.u32 %v1287, 16
      %v1295 = vshll.u32 %v1287, 16
      %v1297 = vrot.slane %v1295, 1
      %v1298 = vor.u32 %v1293, %v1297
      %v1299 = vshrl.u32 %v1289, 16
      %v1301 = vshll.u32 %v1289, 16
      %v1303 = vrot.slane %v1301, 1
      %v1304 = vor.u32 %v1299, %v1303
      %v1305 = vshrl.u32 %v1291, 16
      %v1307 = vshll.u32 %v1291, 16
      %v1309 = vrot.slane %v1307, 1
      %v1310 = vor.u32 %v1305, %v1309
      %v1311 = vshrl.u32 %v1292, 16
      %v1313 = vshll.u32 %v1292, 16
      %v1315 = vrot.slane %v1313, 1
      %v1316 = vor.u32 %v1311, %v1315
      %v1321 = vcombine.low %v1094, %v1298
      %v1323 = vunpack.c.l.s4 1983009808
      %v1324 = vunpack.c.0.s8 %v1323
      %v1325 = vlaneseq
      %v1326 = vshrl.u32 %v1325, 7
      %v1327 = vsub.s32 %v1324, %v1326
      %v1328 = vrot.slane %v1321, %v1327
      %v1329 = vcombine.low %v1096, %v1304
      %v1331 = vunpack.c.l.s4 1983009808
      %v1332 = vunpack.c.0.s8 %v1331
      %v1333 = vlaneseq
      %v1334 = vshrl.u32 %v1333, 7
      %v1335 = vsub.s32 %v1332, %v1334
      %v1336 = vrot.slane %v1329, %v1335
      %v1337 = vcombine.low %v1098, %v1310
      %v1339 = vunpack.c.l.s4 1983009808
      %v1340 = vunpack.c.0.s8 %v1339
      %v1341 = vlaneseq
      %v1342 = vshrl.u32 %v1341, 7
      %v1343 = vsub.s32 %v1340, %v1342
      %v1344 = vrot.slane %v1337, %v1343
      %v1345 = vcombine.low %v1100, %v1316
      %v1347 = vunpack.c.l.s4 1983009808
      %v1348 = vunpack.c.0.s8 %v1347
      %v1349 = vlaneseq
      %v1350 = vshrl.u32 %v1349, 7
      %v1351 = vsub.s32 %v1348, %v1350
      %v1352 = vrot.slane %v1345, %v1351
      %v1353 = vld [vmem:[%s5] sm:$0xf]
      %v1354 = vld [vmem:[%s5 + $0x4] sm:$0xf]
      %v1355 = vld [vmem:[%s5 + $0x8] sm:$0xf]
      %v1356 = vld [vmem:[%s5 + $0xc] sm:$0xf]
      %v1357 = vld [vmem:[%s5 + $0x10] sm:$0xf]
      %v1358 = vld [vmem:[%s5 + $0x14] sm:$0xf]
      %v1359 = vld [vmem:[%s5 + $0x18] sm:$0xf]
      %v1360 = vld [vmem:[%s5 + $0x1c] sm:$0xf]
      %v1361 = vld [vmem:[%s5 + $0x20] sm:$0xf]
      %v1362 = vld [vmem:[%s5 + $0x24] sm:$0xf]
      %v1363 = vld [vmem:[%s5 + $0x28] sm:$0xf]
      %v1364 = vld [vmem:[%s5 + $0x2c] sm:$0xf]
      %v1365 = vld [vmem:[%s5 + $0x30] sm:$0xf]
      %v1366 = vld [vmem:[%s5 + $0x34] sm:$0xf]
      %v1367 = vld [vmem:[%s5 + $0x38] sm:$0xf]
      %v1368 = vld [vmem:[%s5 + $0x3c] sm:$0xf]
      %v1369 = vld [vmem:[%s5 + $0x40] sm:$0xf]
      %v1370 = vld [vmem:[%s5 + $0x44] sm:$0xf]
      %v1371 = vld [vmem:[%s5 + $0x48] sm:$0xf]
      %v1372 = vld [vmem:[%s5 + $0x4c] sm:$0xf]
      %v1373 = vld [vmem:[%s5 + $0x50] sm:$0xf]
      %v1374 = vld [vmem:[%s5 + $0x54] sm:$0xf]
      %v1375 = vld [vmem:[%s5 + $0x58] sm:$0xf]
      %v1376 = vld [vmem:[%s5 + $0x5c] sm:$0xf]
      %v1377 = vld [vmem:[%s5 + $0x60] sm:$0xf]
      %v1378 = vld [vmem:[%s5 + $0x64] sm:$0xf]
      %v1379 = vld [vmem:[%s5 + $0x68] sm:$0xf]
      %v1380 = vcombine.low %v1328, %v1336
      %v1381 = vcombine.low %v1344, %v1352
      %v1383 = vunpack.c.l.s4 1983009808
      %v1384 = vunpack.c.0.s8 %v1383
      %v1385 = vlaneseq
      %v1386 = vshrl.u32 %v1385, 7
      %v1387 = vsub.s32 %v1384, %v1386
      %v1388 = vrot.slane %v1380, %v1387
      %v1390 = vunpack.c.l.s4 1983009808
      %v1391 = vunpack.c.0.s8 %v1390
      %v1392 = vlaneseq
      %v1393 = vshrl.u32 %v1392, 7
      %v1394 = vsub.s32 %v1391, %v1393
      %v1395 = vrot.slane %v1381, %v1394
      %v1396 = vcombine.low %v1388, %v1395
      %v1397 = vcombine.high %v1388, %v1395
      %v1426 = vunpack.c.l.b16 %v1353
      %v1427 = vunpack.c.l.b16 %v1354
      %v1428 = vunpack.c.l.b16 %v1355
      %v1429 = vunpack.c.l.b16 %v1356
      %v1430 = vunpack.c.l.b16 %v1357
      %v1431 = vunpack.c.l.b16 %v1358
      %v1432 = vunpack.c.l.b16 %v1359
      %v1433 = vunpack.c.l.b16 %v1360
      %v1434 = vunpack.c.l.b16 %v1361
      %v1435 = vunpack.c.l.b16 %v1362
      %v1436 = vunpack.c.l.b16 %v1363
      %v1437 = vunpack.c.l.b16 %v1364
      %v1438 = vunpack.c.l.b16 %v1365
      %v1439 = vunpack.c.l.b16 %v1366
      %v1440 = vunpack.c.l.b16 %v1367
      %v1441 = vunpack.c.l.b16 %v1368
      %v1442 = vunpack.c.l.b16 %v1369
      %v1443 = vunpack.c.l.b16 %v1370
      %v1444 = vunpack.c.l.b16 %v1371
      %v1445 = vunpack.c.l.b16 %v1372
      %v1446 = vunpack.c.l.b16 %v1373
      %v1447 = vunpack.c.l.b16 %v1374
      %v1448 = vunpack.c.l.b16 %v1375
      %v1449 = vunpack.c.l.b16 %v1376
      %v1450 = vunpack.c.l.b16 %v1377
      %v1451 = vunpack.c.l.b16 %v1378
      %v1452 = vunpack.c.l.b16 %v1379
      %v1453 = vpack.c.b16 %v1427, %v1426
      %v1454 = vpack.c.b16 %v1429, %v1428
      %v1455 = vpack.c.b16 %v1431, %v1430
      %v1456 = vpack.c.b16 %v1433, %v1432
      %v1457 = vpack.c.b16 %v1435, %v1434
      %v1458 = vpack.c.b16 %v1437, %v1436
      %v1459 = vpack.c.b16 %v1439, %v1438
      %v1460 = vpack.c.b16 %v1441, %v1440
      %v1461 = vpack.c.b16 %v1443, %v1442
      %v1462 = vpack.c.b16 %v1445, %v1444
      %v1463 = vpack.c.b16 %v1447, %v1446
      %v1464 = vpack.c.b16 %v1449, %v1448
      %v1465 = vpack.c.b16 %v1451, %v1450
      %v1466 = vpack.c.b16 %v1452, %v1452
      %v1481 = vsel %vm1056, %v1397, 0
      %vm1483 = vcmask 1043456
      %v1485 = vsel %vm1483, %v1466, 0
      %1487 = vmatprep.subr.bf16.mxu0 0
      %1488 = vmatpush1.bf16.msra.mxu0 %v1453
      %1489 = vmatprep.subr.bf16.mxu0 0
      %1490 = vmatpush1.bf16.msra.mxu0 %v1454
      %1491 = vmatprep.subr.bf16.mxu0 0
      %1492 = vmatpush1.bf16.msra.mxu0 %v1455
      %1493 = vmatprep.subr.bf16.mxu0 0
      %1494 = vmatpush1.bf16.msra.mxu0 %v1456
      %1495 = vmatprep.subr.bf16.mxu0 0
      %1496 = vmatpush1.bf16.msra.mxu0 %v1457
      %1497 = vmatprep.subr.bf16.mxu0 0
      %1498 = vmatpush1.bf16.msra.mxu0 %v1458
      %1499 = vmatprep.subr.bf16.mxu0 0
      %1500 = vmatpush1.bf16.msra.mxu0 %v1459
      %1501 = vmatprep.subr.bf16.mxu0 0
      %1502 = vmatpush1.bf16.msra.mxu0 %v1460
      %1503 = vmatprep.subr.bf16.mxu0 0
      %1504 = vmatpush1.bf16.msra.mxu0 %v1461
      %1505 = vmatprep.subr.bf16.mxu0 0
      %1506 = vmatpush1.bf16.msra.mxu0 %v1462
      %1507 = vmatprep.subr.bf16.mxu0 0
      %1508 = vmatpush1.bf16.msra.mxu0 %v1463
      %1509 = vmatprep.subr.bf16.mxu0 0
      %1510 = vmatpush1.bf16.msra.mxu0 %v1464
      %1511 = vmatprep.subr.bf16.mxu0 0
      %1512 = vmatpush1.bf16.msra.mxu0 %v1465
      %1513 = vmatprep.subr.bf16.mxu0 0
      %1514 = vmatpush1.bf16.msra.mxu0 %v1485
      %1515 = vmatprep.subr.bf16.mxu0 0
      %1516 = vmatpush1.bf16.msra.mxu0 0
      %1517 = vmatprep.subr.bf16.mxu0 0
      %1518 = vmatpush1.bf16.msra.mxu0 0
      %1519 = vmatprep.mubr.bf16.mxu0 %v1481
      %1520 = vmatmul.mubr.bf16.gmra.mrb[0].mxu0 %v1396
      %v1521 = vpop.f32.mrb[0].mxu0
      %v1522 = vadd.f32 0.0, %v1521
      %v1523 = vpop.f32.mrb[0].mxu0
      %v1524 = vpop.f32.mrb[0].mxu0
      %v1525 = vadd.f32 0.0, %v1524
      %v1526 = vpop.f32.mrb[0].mxu0
      %1527 = vdwg.mxu0
      %v1528 = vsel %vm966, %v1522, 0.0
      %v1529 = vsel %vm966, %v1525, 0.0
      %v1530 = vadd.f32 %v1528, %v1529
      %v1531 = vrot.slane %v1530, 4
      %v1532 = vadd.f32 %v1530, %v1531
      %v1533 = vrot.slane %v1532, 2
      %v1534 = vadd.f32 %v1532, %v1533
      %v1535 = vrot.slane %v1534, 1
      %v1536 = vadd.f32 %v1534, %v1535
      %v1537 = vmul.f32 %v1522, %v1522
      %v1538 = vmul.f32 %v1525, %v1525
      %v1539 = vsel %vm966, %v1537, 0.0
      %v1540 = vsel %vm966, %v1538, 0.0
      %v1541 = vadd.f32 %v1539, %v1540
      %v1542 = vrot.slane %v1541, 4
      %v1543 = vadd.f32 %v1541, %v1542
      %v1544 = vrot.slane %v1543, 2
      %v1545 = vadd.f32 %v1543, %v1544
      %v1546 = vrot.slane %v1545, 1
      %v1547 = vadd.f32 %v1545, %v1546
      %vm1548 = vcmask 1040384
      %v1549 = vsel %vm1548, %v1536, %v1547
      %vm1550 = vcmask 58368
      %1551 = vst.msk [vmem:[%s500] sm:$0x3] %vm1550, %v1549
      %v1552 = vld [vmem:[%s6] sm:$0x1]
      %v1554 = vlaneseq
      %v1555 = vshrl.u32 %v1554, 7
      %v1556 = vsub.s32 0, %v1555
      %v1557 = vrot.slane %v1552, %v1556
      %v1559 = vadd.f32 %v1522, %v1557
      %v1560 = vadd.f32 %v1525, %v1557
      %v1563 = vcombine.high %v1559, %v1559
      %v1564 = vcombine.high %v1560, %v1560
      %v1567 = vpack.c.bf16 %v1559, %v1559
      %v1568 = vpack.c.bf16 %v1563, %v1563
      %v1569 = vpack.c.bf16 %v1560, %v1560
      %v1570 = vpack.c.bf16 %v1564, %v1564
      %1571 = vst.msk [vmem:[%s492] sm:$0x3] %vm1550, %v1567
      %1572 = vst.msk [vmem:[%s492 + $0x2] sm:$0x3] %vm1550, %v1568
      %1573 = vst.msk [vmem:[%s492 + $0x4] sm:$0x3] %vm1550, %v1569
      %1574 = vst.msk [vmem:[%s492 + $0x6] sm:$0x3] %vm1550, %v1570
      %p1575 = scmp.lt.s32.totalorder %s24, 1
      %s1576 = scalar_select %p1575, %s24, 1
      %p1577 = scmp.lt.s32.totalorder %s25, 3
      %s1578 = scalar_select %p1577, %s25, 3
      %s1579 = smul.addr %s1578, 4
      %s1580 = smul.addr %s1576, 16
      %s1581 = sadd.s32 %s1579, %s1580
      %s1582 = smul.addr %s1581, 2
      %s1583 = scalar_lea.vmem %s7, %s1582
      %p1584 = scmp.lt.s32.totalorder %s24, 1
      %s1585 = scalar_select %p1584, %s24, 1
      %p1586 = scmp.lt.s32.totalorder %s25, 3
      %s1587 = scalar_select %p1586, %s25, 3
      %s1588 = smul.addr %s1585, 4
      %s1589 = sadd.s32 %s1587, %s1588
      %s1590 = smul.addr %s1589, 2
      %s1591 = scalar_lea.vmem %s8, %s1590
      // Predicated region
      $region49: #{down_block_forward.4} parent=47 // pred_check
        %p1592 = pneg %p242
      $region50: #{down_block_forward.4} parent=47 // pred_check_branch
        %1594 = sbr.rel (%p1592) target = $region52
      $region51: #{down_block_forward.4} parent=47 // pred_region
        _
      $region52: #{down_block_forward.4} parent=47 // pred_fallthru
        _
      // Predicated region
      $region53: #{down_block_forward.4} parent=47 // pred_check
        %p1595 = pneg %p270
      $region54: #{down_block_forward.4} parent=47 // pred_check_branch
        %1597 = sbr.rel (%p1595) target = $region56
      $region55: #{down_block_forward.4} parent=47 // pred_region
        _
      $region56: #{down_block_forward.4} parent=47 // pred_fallthru
        _
    $region48: #{down_block_forward.4} parent=5 // pred_fallthru
      _
    %p1598 = scmp.le.s32.totalorder 2, %s15
    // Predicated region
    $region57: #{down_block_forward.4} parent=5 // pred_check
      %p1599 = pneg %p1598
    $region58: #{down_block_forward.4} parent=5 // pred_check_branch
      %1601 = sbr.rel (%p1599) target = $region60
    $region59: #{down_block_forward.4} parent=5 // pred_region
      %s1602 = ssub.s32 %s15, 2
      // Predicated region
      $region61: #{down_block_forward.4} parent=59 // pred_check
        %p1603 = pneg %p248
      $region62: #{down_block_forward.4} parent=59 // pred_check_branch
        %1605 = sbr.rel (%p1603) target = $region64
      $region63: #{down_block_forward.4} parent=59 // pred_region
        %p1606 = scmp.lt.s32.totalorder %s26, 1
        %s1607 = scalar_select %p1606, %s26, 1
        %p1608 = scmp.lt.s32.totalorder %s27, 3
        %s1609 = scalar_select %p1608, %s27, 3
        %s1610 = smul.addr %s1609, 4
        %s1611 = smul.addr %s1607, 16
        %s1612 = sadd.s32 %s1610, %s1611
        %s1613 = smul.addr %s1612, 2
        %s1614 = scalar_lea.vmem %s7, %s1613
      $region64: #{down_block_forward.4} parent=59 // pred_fallthru
        _
      // Predicated region
      $region65: #{down_block_forward.4} parent=59 // pred_check
        %p1615 = pneg %p276
      $region66: #{down_block_forward.4} parent=59 // pred_check_branch
        %1617 = sbr.rel (%p1615) target = $region68
      $region67: #{down_block_forward.4} parent=59 // pred_region
        %p1618 = scmp.lt.s32.totalorder %s26, 1
        %s1619 = scalar_select %p1618, %s26, 1
        %p1620 = scmp.lt.s32.totalorder %s27, 3
        %s1621 = scalar_select %p1620, %s27, 3
        %s1622 = smul.addr %s1619, 4
        %s1623 = sadd.s32 %s1621, %s1622
        %s1624 = smul.addr %s1623, 2
        %s1625 = scalar_lea.vmem %s8, %s1624
      $region68: #{down_block_forward.4} parent=59 // pred_fallthru
        _
    $region60: #{down_block_forward.4} parent=5 // pred_fallthru
      _
  $region6: #{down_block_forward.4} parent=0 // loop_footer
    %s19 = sadd.s32 1, %s15
  $region7: #{down_block_forward.4} parent=0 // loop_footer_branch
    %14 = sbr.rel target = $region3
  $region8: #{down_block_forward.4} parent=0 // loop_exit
    _

</llo_original>
